<compile_context>
chip_gen: v6e
topology: v6e:2x2x1
jax: 0.10.0
libtpu: 0.0.40
codegen_flags: <defaults>
</compile_context>

<pallas_src>
import functools

import jax
import jax.numpy as jnp
from jax import lax
from jax.experimental import pallas as pl
from jax.experimental.pallas import tpu as pltpu

EPS = 1e-5  # torch.nn.GroupNorm default eps

# Shared 3x3 tap order for the host-side im2col, the reordered weights and the in-kernel
# conv2 slab.  Center tap first so the 1x1 skip conv can read lanes [0:CIN).
TAPS = ((1, 1), (0, 0), (0, 1), (0, 2), (1, 0), (1, 2), (2, 0), (2, 1), (2, 2))


def _round_up(v, m):
    return (v + m - 1) // m * m


def _silu(x):
    # exp and the approximate reciprocal both run on the EUP slot; avoids a VPU divide.
    return x * pl.reciprocal(1.0 + jnp.exp(-x), approx=True)


def _group_norm(h, gamma, beta, p):
    """GroupNorm over a masked (rows, C) tile.

    `h` must already be zero at invalid (padding) rows/columns.  `p` is the folded
    (C, C) matrix (group_onehot @ group_onehot.T) / count, so the per-channel group
    mean and E[x^2] come out of ONE small (2, C) @ (C, C) matmul.  Variance is clamped
    at 0 (single-pass E[x^2]-E[x]^2; fine at these magnitudes — switch to a two-pass
    variance if channel magnitudes grow).  Matches torch GroupNorm (biased var).
    """
    s1 = jnp.sum(h, axis=0, keepdims=True)            # (1, C)
    s2 = jnp.sum(h * h, axis=0, keepdims=True)        # (1, C)
    stats = jnp.concatenate([s1, s2], axis=0)          # (2, C)
    ms = jnp.dot(stats, p, preferred_element_type=jnp.float32)   # (2, C)
    mean, ex2 = ms[0:1], ms[1:2]
    var = jnp.maximum(ex2 - mean * mean, 0.0)
    return (h - mean) * lax.rsqrt(var + EPS) * gamma + beta


def _resblock_kernel(xcol_ref, mask_ref,
                     w1_ref, b1_ref, g1_ref, be1_ref,
                     w2_ref, b2_ref, g2_ref, be2_ref,
                     wskip_ref, bskip_ref, eo_ref, p_ref,
                     out_ref, slab_ref, *, rows, wp):
    """Whole ResBlock for one batch element.

    xcol_ref: (rows_blk, 9*CIN) bf16 host-built im2col of padded x in the "padded-width"
              flat layout (flat row r = y*wp + x, x in [0, W+2)); the two x >= W columns
              per image row are garbage and masked out.
    slab_ref: (rows_blk, 9*COUT) f32 VMEM scratch: in-kernel im2col of h for conv2
              (kept f32 so the odd-row-offset scatter stores stay simple; cast to bf16
              right at the MXU).
    out_ref:  (rows_blk, COUT) f32 in the same flat layout (pad columns dropped by the
              wrapper).
    """
    cin = wskip_ref.shape[0]
    cout = out_ref.shape[-1]
    rows_blk = out_ref.shape[0]
    mask = mask_ref[...]                               # (rows_blk, 1): 1.0 where x < W

    # ---- in_layers: Conv3x3(x) as ONE im2col matmul -> GroupNorm -> SiLU ----
    h = jnp.dot(xcol_ref[...], w1_ref[...], preferred_element_type=jnp.float32)
    h = (h + b1_ref[...]) * mask                       # zero pad columns before GN stats
    h = _silu(_group_norm(h, g1_ref[...], be1_ref[...], p_ref[...]))
    h = (h + eo_ref[0]) * mask                         # hoisted emb projection; re-mask

    # ---- build conv2's (rows, 9*COUT) im2col slab in VMEM ----
    # For tap (dy, dx), output row r needs h at flat row r + s with s = (dy-1)*wp+(dx-1).
    # The masked garbage columns double as the horizontal zero padding; only the boundary
    # rows a tap's store cannot cover (vertical zero padding) are zeroed explicitly
    # (~110 rows total, instead of re-zeroing the whole scratch every step).
    for t, (dy, dx) in enumerate(TAPS):
        s = (dy - 1) * wp + (dx - 1)
        lo, hi = t * cout, (t + 1) * cout
        if s >= 0:
            slab_ref[0:rows - s, lo:hi] = h[s:rows, :]
            if s > 0:
                slab_ref[rows - s:rows, lo:hi] = jnp.zeros((s, cout), jnp.float32)
        else:
            slab_ref[-s:rows, lo:hi] = h[0:rows + s, :]
            slab_ref[0:-s, lo:hi] = jnp.zeros((-s, cout), jnp.float32)
    if rows_blk > rows:   # sublane-padding rows feed only masked outputs; keep them finite
        slab_ref[rows:rows_blk, :] = jnp.zeros((rows_blk - rows, 9 * cout), jnp.float32)

    # ---- out_layers: Conv3x3(h) as ONE K=9*COUT bf16 matmul -> GroupNorm -> SiLU ----
    # TODO(synk): training-mode stochastic dropout mask not implemented (eval mode).
    h2 = jnp.dot(slab_ref[...].astype(jnp.bfloat16), w2_ref[...],
                 preferred_element_type=jnp.float32)
    h2 = (h2 + b2_ref[...]) * mask
    h2 = _silu(_group_norm(h2, g2_ref[...], be2_ref[...], p_ref[...]))

    # ---- skip_connection: Conv1x1(x) (center-tap lanes of xcol) + residual ----
    skip = jnp.dot(xcol_ref[...][:, :cin], wskip_ref[...],
                   preferred_element_type=jnp.float32)
    out_ref[...] = skip + bskip_ref[...] + h2


def resblock_forward(x_nchw, emb, params, *, groups):
    n, cin, hh, ww = x_nchw.shape
    cout = params["w1"].shape[-1]
    wp = ww + 2                 # padded-width flat layout: the 2 extra columns per image
    rows = hh * wp              # row double as the conv's horizontal zero padding
    rows_blk = _round_up(rows, 16)

    # --- host-side layout prep (in a full UNet, activations would stay NHWC so the two
    #     transposes below disappear; the im2col only inflates the tiny CIN=4 input) ---
    x_nhwc = jnp.transpose(x_nchw, (0, 2, 3, 1)).astype(jnp.float32)
    xpad = jnp.pad(x_nhwc, ((0, 0), (1, 1), (1, 3), (0, 0)))       # (N, H+2, W+4, CIN)
    xcol = jnp.concatenate([xpad[:, dy:dy + hh, dx:dx + wp, :] for dy, dx in TAPS],
                           axis=-1)                                # (N, H, W+2, 9*CIN)
    xcol = xcol.reshape(n, rows, 9 * cin)
    if rows_blk != rows:
        xcol = jnp.pad(xcol, ((0, 0), (0, rows_blk - rows), (0, 0)))
    xcol = xcol.reshape(n * rows_blk, 9 * cin).astype(jnp.bfloat16)

    # Column-validity mask of the flat (H, W+2) layout (plus any sublane row padding).
    ridx = jnp.arange(rows_blk)
    mask = ((ridx < rows) & (ridx % wp < ww)).astype(jnp.float32).reshape(rows_blk, 1)

    # emb_layers hoisted out of the kernel: SiLU -> Linear (one row per batch element).
    eo = jax.nn.silu(emb.astype(jnp.float32)) @ params["wemb"] + params["bemb"]
    eo = eo.reshape(n, 1, cout)

    # GroupNorm folded group map: mean_c = (per-channel sums over valid pixels) @ P.
    cpg = cout // groups
    m = (jnp.arange(cout)[:, None] // cpg ==
         jnp.arange(groups)[None, :]).astype(jnp.float32)           # (C, G)
    p = (m @ m.T) / float(hh * ww * cpg)                            # (C, C)

    # Conv weights reordered to the shared tap order and flattened for the single
    # im2col matmuls; bf16 MXU operands (accumulation stays f32 in-kernel).
    w1col = jnp.concatenate([params["w1"][dy, dx] for dy, dx in TAPS],
                            axis=0).astype(jnp.bfloat16)            # (9*CIN, COUT)
    w2col = jnp.concatenate([params["w2"][dy, dx] for dy, dx in TAPS],
                            axis=0).astype(jnp.bfloat16)            # (9*COUT, COUT)
    wskip = params["wskip"].astype(jnp.bfloat16)

    row2 = lambda v: v.reshape(1, -1).astype(jnp.float32)
    const2 = lambda i: (0, 0)

    kernel = functools.partial(_resblock_kernel, rows=rows, wp=wp)

    out_flat = pl.pallas_call(
        kernel,
        out_shape=jax.ShapeDtypeStruct((n * rows_blk, cout), jnp.float32),
        grid=(n,),
        in_specs=[
            pl.BlockSpec((rows_blk, 9 * cin), lambda i: (i, 0)),    # x im2col (per batch)
            pl.BlockSpec((rows_blk, 1), const2),                    # validity mask
            pl.BlockSpec((9 * cin, cout), const2),                  # conv1 weight (im2col)
            pl.BlockSpec((1, cout), const2),                        # conv1 bias
            pl.BlockSpec((1, cout), const2),                        # gn1 gamma
            pl.BlockSpec((1, cout), const2),                        # gn1 beta
            pl.BlockSpec((9 * cout, cout), const2),                 # conv2 weight (im2col)
            pl.BlockSpec((1, cout), const2),                        # conv2 bias
            pl.BlockSpec((1, cout), const2),                        # gn2 gamma
            pl.BlockSpec((1, cout), const2),                        # gn2 beta
            pl.BlockSpec((cin, cout), const2),                      # skip 1x1 weight
            pl.BlockSpec((1, cout), const2),                        # skip bias
            pl.BlockSpec((1, 1, cout), lambda i: (i, 0, 0)),        # hoisted emb proj
            pl.BlockSpec((cout, cout), const2),                     # GN group-fold matrix
        ],
        out_specs=pl.BlockSpec((rows_blk, cout), lambda i: (i, 0)),
        scratch_shapes=[pltpu.VMEM((rows_blk, 9 * cout), jnp.float32)],
        compiler_params=pltpu.CompilerParams(dimension_semantics=("parallel",)),
    )(xcol, mask, w1col, row2(params["b1"]), row2(params["g1"]), row2(params["be1"]),
      w2col, row2(params["b2"]), row2(params["g2"]), row2(params["be2"]),
      wskip, row2(params["bskip"]), eo, p)

    out = out_flat.reshape(n, rows_blk, cout)[:, :rows, :]
    out = out.reshape(n, hh, wp, cout)[:, :, :ww, :]                # drop the 2 pad cols
    return jnp.transpose(out, (0, 3, 1, 2))                         # NHWC -> NCHW


def resblock_reference(x_nchw, emb, params, *, groups):
    """Pure-JAX reference of the PyTorch forward (for validation)."""
    x = jnp.transpose(x_nchw, (0, 2, 3, 1)).astype(jnp.float32)

    def conv3(v, w_hwio, b):
        y = lax.conv_general_dilated(v, w_hwio, (1, 1), "SAME",
                                     dimension_numbers=("NHWC", "HWIO", "NHWC"))
        return y + b

    def gn(v, gamma, beta):
        n_, h_, w_, c = v.shape
        vg = v.reshape(n_, h_ * w_, groups, c // groups)
        mean = vg.mean(axis=(1, 3), keepdims=True)
        var = vg.var(axis=(1, 3), keepdims=True)
        vn = ((vg - mean) / jnp.sqrt(var + EPS)).reshape(n_, h_, w_, c)
        return vn * gamma + beta

    h = jax.nn.silu(gn(conv3(x, params["w1"], params["b1"]),
                       params["g1"], params["be1"]))
    eo = jax.nn.silu(emb.astype(jnp.float32)) @ params["wemb"] + params["bemb"]
    h = h + eo[:, None, None, :]
    h = jax.nn.silu(gn(conv3(h, params["w2"], params["b2"]),
                       params["g2"], params["be2"]))
    skip = jnp.einsum("nhwc,cd->nhwd", x, params["wskip"]) + params["bskip"]
    return jnp.transpose(skip + h, (0, 3, 1, 2))


if __name__ == "__main__":
    # Module hyper-params: in_channels=4, emb_channels=8, out_channels=32, groupnorm=16
    N, CIN, H, W = 2, 4, 16, 16
    COUT, E, G = 32, 8, 16

    ks = jax.random.split(jax.random.PRNGKey(0), 14)
    params = {
        "w1": 0.1 * jax.random.normal(ks[0], (3, 3, CIN, COUT), jnp.float32),
        "b1": 0.1 * jax.random.normal(ks[1], (COUT,), jnp.float32),
        "g1": 1.0 + 0.1 * jax.random.normal(ks[2], (COUT,), jnp.float32),
        "be1": 0.1 * jax.random.normal(ks[3], (COUT,), jnp.float32),
        "wemb": 0.1 * jax.random.normal(ks[4], (E, COUT), jnp.float32),
        "bemb": 0.1 * jax.random.normal(ks[5], (COUT,), jnp.float32),
        "w2": 0.1 * jax.random.normal(ks[6], (3, 3, COUT, COUT), jnp.float32),
        "b2": 0.1 * jax.random.normal(ks[7], (COUT,), jnp.float32),
        "g2": 1.0 + 0.1 * jax.random.normal(ks[8], (COUT,), jnp.float32),
        "be2": 0.1 * jax.random.normal(ks[9], (COUT,), jnp.float32),
        "wskip": 0.1 * jax.random.normal(ks[10], (CIN, COUT), jnp.float32),
        "bskip": 0.1 * jax.random.normal(ks[11], (COUT,), jnp.float32),
    }
    x = jax.random.normal(ks[12], (N, CIN, H, W), jnp.float32)
    emb = jax.random.normal(ks[13], (N, E), jnp.float32)

    fwd = jax.jit(functools.partial(resblock_forward, groups=G))
    out = jax.block_until_ready(fwd(x, emb, params))

    ref = resblock_reference(x, emb, params, groups=G)
    assert out.shape == (N, COUT, H, W), out.shape
    err = float(jnp.max(jnp.abs(out - ref)))
    # bf16 MXU operands through two chained convs + GroupNorms (+ EUP approx reciprocal
    # in SiLU) vs the f32 reference -> ~1e-2-level absolute error is expected.
    assert jnp.allclose(out, ref, atol=5e-2, rtol=5e-2), err
    print("KERNEL_OK")
</pallas_src>

<mosaic_0001>
module attributes {stable_mosaic.version = 11 : i64} {
  func.func @_resblock_kernel(%arg0: i32, %arg1: memref<288x36xbf16, #tpu.memory_space<vmem>>, %arg2: memref<288x1xf32, #tpu.memory_space<vmem>>, %arg3: memref<36x32xbf16, #tpu.memory_space<vmem>>, %arg4: memref<1x32xf32, #tpu.memory_space<vmem>>, %arg5: memref<1x32xf32, #tpu.memory_space<vmem>>, %arg6: memref<1x32xf32, #tpu.memory_space<vmem>>, %arg7: memref<288x32xbf16, #tpu.memory_space<vmem>>, %arg8: memref<1x32xf32, #tpu.memory_space<vmem>>, %arg9: memref<1x32xf32, #tpu.memory_space<vmem>>, %arg10: memref<1x32xf32, #tpu.memory_space<vmem>>, %arg11: memref<4x32xbf16, #tpu.memory_space<vmem>>, %arg12: memref<1x32xf32, #tpu.memory_space<vmem>>, %arg13: memref<1x1x32xf32, #tpu.memory_space<vmem>>, %arg14: memref<32x32xf32, #tpu.memory_space<vmem>>, %arg15: memref<288x32xf32, #tpu.memory_space<vmem>>, %arg16: memref<288x288xf32, #tpu.memory_space<vmem>>) attributes {dimension_semantics = [#tpu.dimension_semantics<parallel>], iteration_bounds = array<i64: 2>, scalar_prefetch = 0 : i64, scratch_operands = 1 : i64, tpu.core_type = #tpu.core_type<tc>, window_params = [{transform_indices = @transform_0, window_bounds = array<i64: 288, 36>}, {pipeline_mode = #tpu.pipeline_mode<synchronous>, transform_indices = @transform_1, window_bounds = array<i64: 288, 1>}, {pipeline_mode = #tpu.pipeline_mode<synchronous>, transform_indices = @transform_2, window_bounds = array<i64: 36, 32>}, {pipeline_mode = #tpu.pipeline_mode<synchronous>, transform_indices = @transform_3, window_bounds = array<i64: 1, 32>}, {pipeline_mode = #tpu.pipeline_mode<synchronous>, transform_indices = @transform_4, window_bounds = array<i64: 1, 32>}, {pipeline_mode = #tpu.pipeline_mode<synchronous>, transform_indices = @transform_5, window_bounds = array<i64: 1, 32>}, {pipeline_mode = #tpu.pipeline_mode<synchronous>, transform_indices = @transform_6, window_bounds = array<i64: 288, 32>}, {pipeline_mode = #tpu.pipeline_mode<synchronous>, transform_indices = @transform_7, window_bounds = array<i64: 1, 32>}, {pipeline_mode = #tpu.pipeline_mode<synchronous>, transform_indices = @transform_8, window_bounds = array<i64: 1, 32>}, {pipeline_mode = #tpu.pipeline_mode<synchronous>, transform_indices = @transform_9, window_bounds = array<i64: 1, 32>}, {pipeline_mode = #tpu.pipeline_mode<synchronous>, transform_indices = @transform_10, window_bounds = array<i64: 4, 32>}, {pipeline_mode = #tpu.pipeline_mode<synchronous>, transform_indices = @transform_11, window_bounds = array<i64: 1, 32>}, {transform_indices = @transform_12, window_bounds = array<i64: 1, 1, 32>}, {pipeline_mode = #tpu.pipeline_mode<synchronous>, transform_indices = @transform_13, window_bounds = array<i64: 32, 32>}, {transform_indices = @transform_14, window_bounds = array<i64: 288, 32>}]} {
    %c0 = arith.constant 0 : index
    %c0_0 = arith.constant 0 : index
    %0 = vector.load %arg2[%c0, %c0_0] : memref<288x1xf32, #tpu.memory_space<vmem>>, vector<288x1xf32>
    %c0_1 = arith.constant 0 : index
    %c0_2 = arith.constant 0 : index
    %1 = vector.load %arg1[%c0_1, %c0_2] : memref<288x36xbf16, #tpu.memory_space<vmem>>, vector<288x36xbf16>
    %c0_3 = arith.constant 0 : index
    %c0_4 = arith.constant 0 : index
    %2 = vector.load %arg3[%c0_3, %c0_4] : memref<36x32xbf16, #tpu.memory_space<vmem>>, vector<36x32xbf16>
    %cst = arith.constant dense<0.000000e+00> : vector<288x32xf32>
    %3 = tpu.matmul %1, %2, %cst {dimension_numbers = #tpu.dot_dimension_numbers<[1], [0], [0], [1], [0, 0, 1, 1], [], []>} : vector<288x36xbf16>, vector<36x32xbf16>, vector<288x32xf32> -> vector<288x32xf32>
    %c0_5 = arith.constant 0 : index
    %c0_6 = arith.constant 0 : index
    %4 = vector.load %arg4[%c0_5, %c0_6] : memref<1x32xf32, #tpu.memory_space<vmem>>, vector<1x32xf32>
    %5 = vector.broadcast %4 : vector<1x32xf32> to vector<288x32xf32>
    %6 = arith.addf %3, %5 : vector<288x32xf32>
    %7 = vector.broadcast %0 : vector<288x1xf32> to vector<288x32xf32>
    %8 = arith.mulf %6, %7 : vector<288x32xf32>
    %c0_7 = arith.constant 0 : index
    %c0_8 = arith.constant 0 : index
    %9 = vector.load %arg5[%c0_7, %c0_8] : memref<1x32xf32, #tpu.memory_space<vmem>>, vector<1x32xf32>
    %c0_9 = arith.constant 0 : index
    %c0_10 = arith.constant 0 : index
    %10 = vector.load %arg6[%c0_9, %c0_10] : memref<1x32xf32, #tpu.memory_space<vmem>>, vector<1x32xf32>
    %c0_11 = arith.constant 0 : index
    %c0_12 = arith.constant 0 : index
    %11 = vector.load %arg14[%c0_11, %c0_12] : memref<32x32xf32, #tpu.memory_space<vmem>>, vector<32x32xf32>
    %cst_13 = arith.constant dense<0.000000e+00> : vector<32xf32>
    %12 = vector.multi_reduction <add>, %8, %cst_13 [0] : vector<288x32xf32> to vector<32xf32>
    %13 = vector.shape_cast %12 : vector<32xf32> to vector<1x32xf32>
    %14 = arith.mulf %8, %8 : vector<288x32xf32>
    %cst_14 = arith.constant dense<0.000000e+00> : vector<32xf32>
    %15 = vector.multi_reduction <add>, %14, %cst_14 [0] : vector<288x32xf32> to vector<32xf32>
    %16 = vector.shape_cast %15 : vector<32xf32> to vector<1x32xf32>
    %17 = tpu.concatenate %13, %16 in 0 : vector<1x32xf32>, vector<1x32xf32> -> vector<2x32xf32>
    %cst_15 = arith.constant dense<0.000000e+00> : vector<2x32xf32>
    %18 = tpu.matmul %17, %11, %cst_15 {dimension_numbers = #tpu.dot_dimension_numbers<[1], [0], [0], [1], [0, 0, 1, 1], [], []>} : vector<2x32xf32>, vector<32x32xf32>, vector<2x32xf32> -> vector<2x32xf32>
    %19 = vector.extract_strided_slice %18 {offsets = [0, 0], sizes = [1, 32], strides = [1, 1]} : vector<2x32xf32> to vector<1x32xf32>
    %20 = vector.extract_strided_slice %18 {offsets = [1, 0], sizes = [1, 32], strides = [1, 1]} : vector<2x32xf32> to vector<1x32xf32>
    %21 = arith.mulf %19, %19 : vector<1x32xf32>
    %22 = arith.subf %20, %21 : vector<1x32xf32>
    %cst_16 = arith.constant 0.000000e+00 : f32
    %23 = vector.broadcast %cst_16 : f32 to vector<1x32xf32>
    %24 = arith.maximumf %22, %23 : vector<1x32xf32>
    %25 = vector.broadcast %19 : vector<1x32xf32> to vector<288x32xf32>
    %26 = arith.subf %8, %25 : vector<288x32xf32>
    %cst_17 = arith.constant 9.99999974E-6 : f32
    %27 = vector.broadcast %cst_17 : f32 to vector<1x32xf32>
    %28 = arith.addf %24, %27 : vector<1x32xf32>
    %29 = math.rsqrt %28 : vector<1x32xf32>
    %30 = vector.broadcast %29 : vector<1x32xf32> to vector<288x32xf32>
    %31 = arith.mulf %26, %30 : vector<288x32xf32>
    %32 = vector.broadcast %9 : vector<1x32xf32> to vector<288x32xf32>
    %33 = arith.mulf %31, %32 : vector<288x32xf32>
    %34 = vector.broadcast %10 : vector<1x32xf32> to vector<288x32xf32>
    %35 = arith.addf %33, %34 : vector<288x32xf32>
    %cst_18 = arith.constant 0.000000e+00 : f32
    %36 = vector.broadcast %cst_18 : f32 to vector<288x32xf32>
    %37 = arith.subf %36, %35 : vector<288x32xf32>
    %38 = math.exp %37 : vector<288x32xf32>
    %cst_19 = arith.constant 1.000000e+00 : f32
    %39 = vector.broadcast %cst_19 : f32 to vector<288x32xf32>
    %40 = arith.addf %39, %38 : vector<288x32xf32>
    %41 = tpu.reciprocal %40 {approx = true} : vector<288x32xf32> -> vector<288x32xf32>
    %42 = arith.mulf %35, %41 : vector<288x32xf32>
    %c0_20 = arith.constant 0 : index
    %c0_21 = arith.constant 0 : index
    %c0_22 = arith.constant 0 : index
    %43 = vector.load %arg13[%c0_20, %c0_21, %c0_22] : memref<1x1x32xf32, #tpu.memory_space<vmem>>, vector<1x1x32xf32>
    %44 = vector.shape_cast %43 : vector<1x1x32xf32> to vector<1x32xf32>
    %45 = vector.broadcast %44 : vector<1x32xf32> to vector<288x32xf32>
    %46 = arith.addf %42, %45 : vector<288x32xf32>
    %47 = vector.broadcast %0 : vector<288x1xf32> to vector<288x32xf32>
    %48 = arith.mulf %46, %47 : vector<288x32xf32>
    %c0_23 = arith.constant 0 : index
    %c0_24 = arith.constant 0 : index
    %49 = vector.load %arg16[%c0_23, %c0_24] : memref<288x288xf32, #tpu.memory_space<vmem>>, vector<288x32xf32>
    tpu.vector_store %arg16[%c0_23, %c0_24], %48 {strides = array<i32>} : memref<288x288xf32, #tpu.memory_space<vmem>>, vector<288x32xf32>,
    %50 = vector.extract_strided_slice %48 {offsets = [0, 0], sizes = [269, 32], strides = [1, 1]} : vector<288x32xf32> to vector<269x32xf32>
    %c19 = arith.constant 19 : index
    %c32 = arith.constant 32 : index
    %51 = vector.load %arg16[%c19, %c32] : memref<288x288xf32, #tpu.memory_space<vmem>>, vector<269x32xf32>
    tpu.vector_store %arg16[%c19, %c32], %50 {strides = array<i32>} : memref<288x288xf32, #tpu.memory_space<vmem>>, vector<269x32xf32>,
    %cst_25 = arith.constant 0.000000e+00 : f32
    %52 = vector.broadcast %cst_25 : f32 to vector<19x32xf32>
    %c0_26 = arith.constant 0 : index
    %c32_27 = arith.constant 32 : index
    %53 = vector.load %arg16[%c0_26, %c32_27] : memref<288x288xf32, #tpu.memory_space<vmem>>, vector<19x32xf32>
    tpu.vector_store %arg16[%c0_26, %c32_27], %52 {strides = array<i32>} : memref<288x288xf32, #tpu.memory_space<vmem>>, vector<19x32xf32>,
    %54 = vector.extract_strided_slice %48 {offsets = [0, 0], sizes = [270, 32], strides = [1, 1]} : vector<288x32xf32> to vector<270x32xf32>
    %c18 = arith.constant 18 : index
    %c64 = arith.constant 64 : index
    %55 = vector.load %arg16[%c18, %c64] : memref<288x288xf32, #tpu.memory_space<vmem>>, vector<270x32xf32>
    tpu.vector_store %arg16[%c18, %c64], %54 {strides = array<i32>} : memref<288x288xf32, #tpu.memory_space<vmem>>, vector<270x32xf32>,
    %cst_28 = arith.constant 0.000000e+00 : f32
    %56 = vector.broadcast %cst_28 : f32 to vector<18x32xf32>
    %c0_29 = arith.constant 0 : index
    %c64_30 = arith.constant 64 : index
    %57 = vector.load %arg16[%c0_29, %c64_30] : memref<288x288xf32, #tpu.memory_space<vmem>>, vector<18x32xf32>
    tpu.vector_store %arg16[%c0_29, %c64_30], %56 {strides = array<i32>} : memref<288x288xf32, #tpu.memory_space<vmem>>, vector<18x32xf32>,
    %58 = vector.extract_strided_slice %48 {offsets = [0, 0], sizes = [271, 32], strides = [1, 1]} : vector<288x32xf32> to vector<271x32xf32>
    %c17 = arith.constant 17 : index
    %c96 = arith.constant 96 : index
    %59 = vector.load %arg16[%c17, %c96] : memref<288x288xf32, #tpu.memory_space<vmem>>, vector<271x32xf32>
    tpu.vector_store %arg16[%c17, %c96], %58 {strides = array<i32>} : memref<288x288xf32, #tpu.memory_space<vmem>>, vector<271x32xf32>,
    %cst_31 = arith.constant 0.000000e+00 : f32
    %60 = vector.broadcast %cst_31 : f32 to vector<17x32xf32>
    %c0_32 = arith.constant 0 : index
    %c96_33 = arith.constant 96 : index
    %61 = vector.load %arg16[%c0_32, %c96_33] : memref<288x288xf32, #tpu.memory_space<vmem>>, vector<17x32xf32>
    tpu.vector_store %arg16[%c0_32, %c96_33], %60 {strides = array<i32>} : memref<288x288xf32, #tpu.memory_space<vmem>>, vector<17x32xf32>,
    %62 = vector.extract_strided_slice %48 {offsets = [0, 0], sizes = [287, 32], strides = [1, 1]} : vector<288x32xf32> to vector<287x32xf32>
    %c1 = arith.constant 1 : index
    %c128 = arith.constant 128 : index
    %63 = vector.load %arg16[%c1, %c128] : memref<288x288xf32, #tpu.memory_space<vmem>>, vector<287x32xf32>
    tpu.vector_store %arg16[%c1, %c128], %62 {strides = array<i32>} : memref<288x288xf32, #tpu.memory_space<vmem>>, vector<287x32xf32>,
    %cst_34 = arith.constant 0.000000e+00 : f32
    %64 = vector.broadcast %cst_34 : f32 to vector<1x32xf32>
    %c0_35 = arith.constant 0 : index
    %c128_36 = arith.constant 128 : index
    %65 = vector.load %arg16[%c0_35, %c128_36] : memref<288x288xf32, #tpu.memory_space<vmem>>, vector<1x32xf32>
    tpu.vector_store %arg16[%c0_35, %c128_36], %64 {strides = array<i32>} : memref<288x288xf32, #tpu.memory_space<vmem>>, vector<1x32xf32>,
    %66 = vector.extract_strided_slice %48 {offsets = [1, 0], sizes = [287, 32], strides = [1, 1]} : vector<288x32xf32> to vector<287x32xf32>
    %c0_37 = arith.constant 0 : index
    %c160 = arith.constant 160 : index
    %67 = vector.load %arg16[%c0_37, %c160] : memref<288x288xf32, #tpu.memory_space<vmem>>, vector<287x32xf32>
    tpu.vector_store %arg16[%c0_37, %c160], %66 {strides = array<i32>} : memref<288x288xf32, #tpu.memory_space<vmem>>, vector<287x32xf32>,
    %cst_38 = arith.constant 0.000000e+00 : f32
    %68 = vector.broadcast %cst_38 : f32 to vector<1x32xf32>
    %c287 = arith.constant 287 : index
    %c160_39 = arith.constant 160 : index
    %69 = vector.load %arg16[%c287, %c160_39] : memref<288x288xf32, #tpu.memory_space<vmem>>, vector<1x32xf32>
    tpu.vector_store %arg16[%c287, %c160_39], %68 {strides = array<i32>} : memref<288x288xf32, #tpu.memory_space<vmem>>, vector<1x32xf32>,
    %70 = vector.extract_strided_slice %48 {offsets = [17, 0], sizes = [271, 32], strides = [1, 1]} : vector<288x32xf32> to vector<271x32xf32>
    %c0_40 = arith.constant 0 : index
    %c192 = arith.constant 192 : index
    %71 = vector.load %arg16[%c0_40, %c192] : memref<288x288xf32, #tpu.memory_space<vmem>>, vector<271x32xf32>
    tpu.vector_store %arg16[%c0_40, %c192], %70 {strides = array<i32>} : memref<288x288xf32, #tpu.memory_space<vmem>>, vector<271x32xf32>,
    %cst_41 = arith.constant 0.000000e+00 : f32
    %72 = vector.broadcast %cst_41 : f32 to vector<17x32xf32>
    %c271 = arith.constant 271 : index
    %c192_42 = arith.constant 192 : index
    %73 = vector.load %arg16[%c271, %c192_42] : memref<288x288xf32, #tpu.memory_space<vmem>>, vector<17x32xf32>
    tpu.vector_store %arg16[%c271, %c192_42], %72 {strides = array<i32>} : memref<288x288xf32, #tpu.memory_space<vmem>>, vector<17x32xf32>,
    %74 = vector.extract_strided_slice %48 {offsets = [18, 0], sizes = [270, 32], strides = [1, 1]} : vector<288x32xf32> to vector<270x32xf32>
    %c0_43 = arith.constant 0 : index
    %c224 = arith.constant 224 : index
    %75 = vector.load %arg16[%c0_43, %c224] : memref<288x288xf32, #tpu.memory_space<vmem>>, vector<270x32xf32>
    tpu.vector_store %arg16[%c0_43, %c224], %74 {strides = array<i32>} : memref<288x288xf32, #tpu.memory_space<vmem>>, vector<270x32xf32>,
    %cst_44 = arith.constant 0.000000e+00 : f32
    %76 = vector.broadcast %cst_44 : f32 to vector<18x32xf32>
    %c270 = arith.constant 270 : index
    %c224_45 = arith.constant 224 : index
    %77 = vector.load %arg16[%c270, %c224_45] : memref<288x288xf32, #tpu.memory_space<vmem>>, vector<18x32xf32>
    tpu.vector_store %arg16[%c270, %c224_45], %76 {strides = array<i32>} : memref<288x288xf32, #tpu.memory_space<vmem>>, vector<18x32xf32>,
    %78 = vector.extract_strided_slice %48 {offsets = [19, 0], sizes = [269, 32], strides = [1, 1]} : vector<288x32xf32> to vector<269x32xf32>
    %c0_46 = arith.constant 0 : index
    %c256 = arith.constant 256 : index
    %79 = vector.load %arg16[%c0_46, %c256] : memref<288x288xf32, #tpu.memory_space<vmem>>, vector<269x32xf32>
    tpu.vector_store %arg16[%c0_46, %c256], %78 {strides = array<i32>} : memref<288x288xf32, #tpu.memory_space<vmem>>, vector<269x32xf32>,
    %cst_47 = arith.constant 0.000000e+00 : f32
    %80 = vector.broadcast %cst_47 : f32 to vector<19x32xf32>
    %c269 = arith.constant 269 : index
    %c256_48 = arith.constant 256 : index
    %81 = vector.load %arg16[%c269, %c256_48] : memref<288x288xf32, #tpu.memory_space<vmem>>, vector<19x32xf32>
    tpu.vector_store %arg16[%c269, %c256_48], %80 {strides = array<i32>} : memref<288x288xf32, #tpu.memory_space<vmem>>, vector<19x32xf32>,
    %c0_49 = arith.constant 0 : index
    %c0_50 = arith.constant 0 : index
    %82 = vector.load %arg16[%c0_49, %c0_50] : memref<288x288xf32, #tpu.memory_space<vmem>>, vector<288x288xf32>
    %83 = arith.truncf %82 : vector<288x288xf32> to vector<288x288xbf16>
    %c0_51 = arith.constant 0 : index
    %c0_52 = arith.constant 0 : index
    %84 = vector.load %arg7[%c0_51, %c0_52] : memref<288x32xbf16, #tpu.memory_space<vmem>>, vector<288x32xbf16>
    %cst_53 = arith.constant dense<0.000000e+00> : vector<288x32xf32>
    %85 = tpu.matmul %83, %84, %cst_53 {dimension_numbers = #tpu.dot_dimension_numbers<[1], [0], [0], [1], [0, 0, 1, 1], [], []>} : vector<288x288xbf16>, vector<288x32xbf16>, vector<288x32xf32> -> vector<288x32xf32>
    %c0_54 = arith.constant 0 : index
    %c0_55 = arith.constant 0 : index
    %86 = vector.load %arg8[%c0_54, %c0_55] : memref<1x32xf32, #tpu.memory_space<vmem>>, vector<1x32xf32>
    %87 = vector.broadcast %86 : vector<1x32xf32> to vector<288x32xf32>
    %88 = arith.addf %85, %87 : vector<288x32xf32>
    %89 = vector.broadcast %0 : vector<288x1xf32> to vector<288x32xf32>
    %90 = arith.mulf %88, %89 : vector<288x32xf32>
    %c0_56 = arith.constant 0 : index
    %c0_57 = arith.constant 0 : index
    %91 = vector.load %arg9[%c0_56, %c0_57] : memref<1x32xf32, #tpu.memory_space<vmem>>, vector<1x32xf32>
    %c0_58 = arith.constant 0 : index
    %c0_59 = arith.constant 0 : index
    %92 = vector.load %arg10[%c0_58, %c0_59] : memref<1x32xf32, #tpu.memory_space<vmem>>, vector<1x32xf32>
    %c0_60 = arith.constant 0 : index
    %c0_61 = arith.constant 0 : index
    %93 = vector.load %arg14[%c0_60, %c0_61] : memref<32x32xf32, #tpu.memory_space<vmem>>, vector<32x32xf32>
    %cst_62 = arith.constant dense<0.000000e+00> : vector<32xf32>
    %94 = vector.multi_reduction <add>, %90, %cst_62 [0] : vector<288x32xf32> to vector<32xf32>
    %95 = vector.shape_cast %94 : vector<32xf32> to vector<1x32xf32>
    %96 = arith.mulf %90, %90 : vector<288x32xf32>
    %cst_63 = arith.constant dense<0.000000e+00> : vector<32xf32>
    %97 = vector.multi_reduction <add>, %96, %cst_63 [0] : vector<288x32xf32> to vector<32xf32>
    %98 = vector.shape_cast %97 : vector<32xf32> to vector<1x32xf32>
    %99 = tpu.concatenate %95, %98 in 0 : vector<1x32xf32>, vector<1x32xf32> -> vector<2x32xf32>
    %cst_64 = arith.constant dense<0.000000e+00> : vector<2x32xf32>
    %100 = tpu.matmul %99, %93, %cst_64 {dimension_numbers = #tpu.dot_dimension_numbers<[1], [0], [0], [1], [0, 0, 1, 1], [], []>} : vector<2x32xf32>, vector<32x32xf32>, vector<2x32xf32> -> vector<2x32xf32>
    %101 = vector.extract_strided_slice %100 {offsets = [0, 0], sizes = [1, 32], strides = [1, 1]} : vector<2x32xf32> to vector<1x32xf32>
    %102 = vector.extract_strided_slice %100 {offsets = [1, 0], sizes = [1, 32], strides = [1, 1]} : vector<2x32xf32> to vector<1x32xf32>
    %103 = arith.mulf %101, %101 : vector<1x32xf32>
    %104 = arith.subf %102, %103 : vector<1x32xf32>
    %cst_65 = arith.constant 0.000000e+00 : f32
    %105 = vector.broadcast %cst_65 : f32 to vector<1x32xf32>
    %106 = arith.maximumf %104, %105 : vector<1x32xf32>
    %107 = vector.broadcast %101 : vector<1x32xf32> to vector<288x32xf32>
    %108 = arith.subf %90, %107 : vector<288x32xf32>
    %cst_66 = arith.constant 9.99999974E-6 : f32
    %109 = vector.broadcast %cst_66 : f32 to vector<1x32xf32>
    %110 = arith.addf %106, %109 : vector<1x32xf32>
    %111 = math.rsqrt %110 : vector<1x32xf32>
    %112 = vector.broadcast %111 : vector<1x32xf32> to vector<288x32xf32>
    %113 = arith.mulf %108, %112 : vector<288x32xf32>
    %114 = vector.broadcast %91 : vector<1x32xf32> to vector<288x32xf32>
    %115 = arith.mulf %113, %114 : vector<288x32xf32>
    %116 = vector.broadcast %92 : vector<1x32xf32> to vector<288x32xf32>
    %117 = arith.addf %115, %116 : vector<288x32xf32>
    %cst_67 = arith.constant 0.000000e+00 : f32
    %118 = vector.broadcast %cst_67 : f32 to vector<288x32xf32>
    %119 = arith.subf %118, %117 : vector<288x32xf32>
    %120 = math.exp %119 : vector<288x32xf32>
    %cst_68 = arith.constant 1.000000e+00 : f32
    %121 = vector.broadcast %cst_68 : f32 to vector<288x32xf32>
    %122 = arith.addf %121, %120 : vector<288x32xf32>
    %123 = tpu.reciprocal %122 {approx = true} : vector<288x32xf32> -> vector<288x32xf32>
    %124 = arith.mulf %117, %123 : vector<288x32xf32>
    %c0_69 = arith.constant 0 : index
    %c0_70 = arith.constant 0 : index
    %125 = vector.load %arg1[%c0_69, %c0_70] : memref<288x36xbf16, #tpu.memory_space<vmem>>, vector<288x36xbf16>
    %126 = vector.extract_strided_slice %125 {offsets = [0, 0], sizes = [288, 4], strides = [1, 1]} : vector<288x36xbf16> to vector<288x4xbf16>
    %c0_71 = arith.constant 0 : index
    %c0_72 = arith.constant 0 : index
    %127 = vector.load %arg11[%c0_71, %c0_72] : memref<4x32xbf16, #tpu.memory_space<vmem>>, vector<4x32xbf16>
    %cst_73 = arith.constant dense<0.000000e+00> : vector<288x32xf32>
    %128 = tpu.matmul %126, %127, %cst_73 {dimension_numbers = #tpu.dot_dimension_numbers<[1], [0], [0], [1], [0, 0, 1, 1], [], []>} : vector<288x4xbf16>, vector<4x32xbf16>, vector<288x32xf32> -> vector<288x32xf32>
    %c0_74 = arith.constant 0 : index
    %c0_75 = arith.constant 0 : index
    %129 = vector.load %arg12[%c0_74, %c0_75] : memref<1x32xf32, #tpu.memory_space<vmem>>, vector<1x32xf32>
    %130 = vector.broadcast %129 : vector<1x32xf32> to vector<288x32xf32>
    %131 = arith.addf %128, %130 : vector<288x32xf32>
    %132 = arith.addf %131, %124 : vector<288x32xf32>
    %c0_76 = arith.constant 0 : index
    %c0_77 = arith.constant 0 : index
    %133 = vector.load %arg15[%c0_76, %c0_77] : memref<288x32xf32, #tpu.memory_space<vmem>>, vector<288x32xf32>
    tpu.vector_store %arg15[%c0_76, %c0_77], %132 {strides = array<i32>} : memref<288x32xf32, #tpu.memory_space<vmem>>, vector<288x32xf32>,
    return
  }
  func.func @transform_0(%arg0: i32) -> (i32, i32) {
    %c0_i32 = arith.constant 0 : i32
    %c0_i32_0 = arith.constant 0 : i32
    return %arg0, %c0_i32 : i32, i32
  }
  func.func @transform_1(%arg0: i32) -> (i32, i32) {
    %c0_i32 = arith.constant 0 : i32
    %c0_i32_0 = arith.constant 0 : i32
    %c0_i32_1 = arith.constant 0 : i32
    return %c0_i32, %c0_i32_0 : i32, i32
  }
  func.func @transform_2(%arg0: i32) -> (i32, i32) {
    %c0_i32 = arith.constant 0 : i32
    %c0_i32_0 = arith.constant 0 : i32
    %c0_i32_1 = arith.constant 0 : i32
    return %c0_i32, %c0_i32_0 : i32, i32
  }
  func.func @transform_3(%arg0: i32) -> (i32, i32) {
    %c0_i32 = arith.constant 0 : i32
    %c0_i32_0 = arith.constant 0 : i32
    %c0_i32_1 = arith.constant 0 : i32
    return %c0_i32, %c0_i32_0 : i32, i32
  }
  func.func @transform_4(%arg0: i32) -> (i32, i32) {
    %c0_i32 = arith.constant 0 : i32
    %c0_i32_0 = arith.constant 0 : i32
    %c0_i32_1 = arith.constant 0 : i32
    return %c0_i32, %c0_i32_0 : i32, i32
  }
  func.func @transform_5(%arg0: i32) -> (i32, i32) {
    %c0_i32 = arith.constant 0 : i32
    %c0_i32_0 = arith.constant 0 : i32
    %c0_i32_1 = arith.constant 0 : i32
    return %c0_i32, %c0_i32_0 : i32, i32
  }
  func.func @transform_6(%arg0: i32) -> (i32, i32) {
    %c0_i32 = arith.constant 0 : i32
    %c0_i32_0 = arith.constant 0 : i32
    %c0_i32_1 = arith.constant 0 : i32
    return %c0_i32, %c0_i32_0 : i32, i32
  }
  func.func @transform_7(%arg0: i32) -> (i32, i32) {
    %c0_i32 = arith.constant 0 : i32
    %c0_i32_0 = arith.constant 0 : i32
    %c0_i32_1 = arith.constant 0 : i32
    return %c0_i32, %c0_i32_0 : i32, i32
  }
  func.func @transform_8(%arg0: i32) -> (i32, i32) {
    %c0_i32 = arith.constant 0 : i32
    %c0_i32_0 = arith.constant 0 : i32
    %c0_i32_1 = arith.constant 0 : i32
    return %c0_i32, %c0_i32_0 : i32, i32
  }
  func.func @transform_9(%arg0: i32) -> (i32, i32) {
    %c0_i32 = arith.constant 0 : i32
    %c0_i32_0 = arith.constant 0 : i32
    %c0_i32_1 = arith.constant 0 : i32
    return %c0_i32, %c0_i32_0 : i32, i32
  }
  func.func @transform_10(%arg0: i32) -> (i32, i32) {
    %c0_i32 = arith.constant 0 : i32
    %c0_i32_0 = arith.constant 0 : i32
    %c0_i32_1 = arith.constant 0 : i32
    return %c0_i32, %c0_i32_0 : i32, i32
  }
  func.func @transform_11(%arg0: i32) -> (i32, i32) {
    %c0_i32 = arith.constant 0 : i32
    %c0_i32_0 = arith.constant 0 : i32
    %c0_i32_1 = arith.constant 0 : i32
    return %c0_i32, %c0_i32_0 : i32, i32
  }
  func.func @transform_12(%arg0: i32) -> (i32, i32, i32) {
    %c0_i32 = arith.constant 0 : i32
    %c0_i32_0 = arith.constant 0 : i32
    %c0_i32_1 = arith.constant 0 : i32
    return %arg0, %c0_i32, %c0_i32_0 : i32, i32, i32
  }
  func.func @transform_13(%arg0: i32) -> (i32, i32) {
    %c0_i32 = arith.constant 0 : i32
    %c0_i32_0 = arith.constant 0 : i32
    %c0_i32_1 = arith.constant 0 : i32
    return %c0_i32, %c0_i32_0 : i32, i32
  }
  func.func @transform_14(%arg0: i32) -> (i32, i32) {
    %c0_i32 = arith.constant 0 : i32
    %c0_i32_0 = arith.constant 0 : i32
    return %arg0, %c0_i32 : i32, i32
  }
}

</mosaic_0001>

<llo_original>
// kernel: resblock_forward.1
$region0: #{resblock_forward.1}
  #allocation0 [shape = 'u32[]', space=smem, size = 0x4, offset = 0x4, fixed_abs, tag = 'smem constant byte address 0x4 - core index']
  #allocation1 [shape = 'u32[144,128]{1,0:T(1,128)}', space=vmem, size = 0x12000, scoped, tag = 'internal scratch']
  #allocation2 [shape = 'f32[288,288]{1,0:T(8,128)}', space=vmem, size = 0x6c000, scoped, tag = 'scratch operand']
  %s0 = inlined_call_operand.vmem [shape: bf16[576,36], index: 0, kind: input, shape index: {}]
  %s1 = inlined_call_operand.vmem [shape: f32[288,1], index: 1, kind: input, shape index: {}]
  %s2 = inlined_call_operand.vmem [shape: bf16[36,32], index: 2, kind: input, shape index: {}]
  %s3 = inlined_call_operand.vmem [shape: f32[1,32], index: 3, kind: input, shape index: {}]
  %s4 = inlined_call_operand.vmem [shape: f32[1,32], index: 4, kind: input, shape index: {}]
  %s5 = inlined_call_operand.vmem [shape: f32[1,32], index: 5, kind: input, shape index: {}]
  %s6 = inlined_call_operand.vmem [shape: bf16[288,32], index: 6, kind: input, shape index: {}]
  %s7 = inlined_call_operand.vmem [shape: f32[1,32], index: 7, kind: input, shape index: {}]
  %s8 = inlined_call_operand.vmem [shape: f32[1,32], index: 8, kind: input, shape index: {}]
  %s9 = inlined_call_operand.vmem [shape: f32[1,32], index: 9, kind: input, shape index: {}]
  %s10 = inlined_call_operand.vmem [shape: bf16[4,32], index: 10, kind: input, shape index: {}]
  %s11 = inlined_call_operand.vmem [shape: f32[1,32], index: 11, kind: input, shape index: {}]
  %s12 = inlined_call_operand.vmem [shape: f32[2,1,32], index: 12, kind: input, shape index: {}]
  %s13 = inlined_call_operand.vmem [shape: f32[32,32], index: 13, kind: input, shape index: {}]
  %s14 = inlined_call_operand.vmem [shape: f32[576,32], index: 14, kind: output, shape index: {}]
  %s15 = sld [smem:[#allocation0]]
  $region89: #{resblock_forward.1} parent=0
    _
  %s17 = ssub.s32 1, %s15
  %s18 = scalar_select 0, %s17, %s15
  loop: start=0, step=1, limit=4
  $region2: #{resblock_forward.1} parent=0 // loop_pre_header
    _
  $region3: #{resblock_forward.1} parent=0 // loop_header
    %s20 = sphi 0, %s24
    %p21 = scmp.ge.s32.totalorder %s20, 4
    %s30 = sphi 0, %s32
    %s33 = sphi 0, %s30
    %s34 = sphi 0, %s33
    %s50 = sphi 0, %s34
    %s54 = sphi 0, %s54
    %s56 = sphi 0, %s54
    %s57 = sphi 0, %s56
    %s71 = sphi 0, %s57
    %s75 = sphi 0, %s75
    %s77 = sphi 0, %s75
    %s78 = sphi 0, %s77
    %s92 = sphi 0, %s78
    %s96 = sphi 0, %s96
    %s98 = sphi 0, %s96
    %s99 = sphi 0, %s98
    %s113 = sphi 0, %s99
    %s117 = sphi 0, %s117
    %s119 = sphi 0, %s117
    %s120 = sphi 0, %s119
    %s134 = sphi 0, %s120
    %s138 = sphi 0, %s138
    %s140 = sphi 0, %s138
    %s141 = sphi 0, %s140
    %s155 = sphi 0, %s141
    %s159 = sphi 0, %s159
    %s161 = sphi 0, %s159
    %s162 = sphi 0, %s161
    %s176 = sphi 0, %s162
    %s180 = sphi 0, %s180
    %s182 = sphi 0, %s180
    %s183 = sphi 0, %s182
    %s197 = sphi 0, %s183
    %s201 = sphi 0, %s201
    %s203 = sphi 0, %s201
    %s204 = sphi 0, %s203
    %s218 = sphi 0, %s204
    %s222 = sphi 0, %s222
    %s224 = sphi 0, %s222
    %s225 = sphi 0, %s224
    %s239 = sphi 0, %s225
    %s243 = sphi 0, %s243
    %s245 = sphi 0, %s243
    %s246 = sphi 0, %s245
    %s260 = sphi 0, %s246
    %s264 = sphi 0, %s264
    %s266 = sphi 0, %s264
    %s267 = sphi 0, %s266
    %s281 = sphi 0, %s267
    %s287 = sphi 0, %s289
    %s290 = sphi 0, %s287
    %s291 = sphi 0, %s290
    %s307 = sphi 0, %s291
    %s311 = sphi 0, %s311
    %s313 = sphi 0, %s311
    %s314 = sphi 0, %s313
    %s328 = sphi 0, %s314
    %s334 = sphi 0, %s336
    %s337 = sphi 0, %s334
    %s338 = sphi 0, %s337
    %s354 = sphi 0, %s338
  $region4: #{resblock_forward.1} parent=0 // loop_header_branch
    %23 = sbr.rel (%p21) target = $region8
  $region5: #{resblock_forward.1} parent=0 // loop_body
    %s25 = ssub.s32 %s20, 1
    %s26 = ssub.s32 %s20, 2
    %s27 = sadd.s32 %s20, 1
    %s28 = ssub.s32 %s20, %s27
    %p29 = scmp.eq.s32.totalorder %s28, 0
    %s31 = sadd.s32 %s30, 1
    %s32 = scalar_select %p29, %s30, %s31
    %p35 = pneg %p29
    %p36 = scmp.eq.s32.totalorder %s20, 1
    %p37 = por %p35, %p36
    %p38 = scmp.ne.s32.totalorder %s30, %s33
    %p39 = scmp.eq.s32.totalorder %s20, 0
    %p40 = por %p38, %p39
    %p41 = scmp.ne.s32.totalorder %s30, %s33
    %p42 = scmp.eq.s32.totalorder %s25, 1
    %p43 = por %p41, %p42
    %p44 = scmp.ne.s32.totalorder %s33, %s34
    %p45 = scmp.eq.s32.totalorder %s25, 0
    %p46 = por %p44, %p45
    %p47 = scmp.ne.s32.totalorder %s33, %s34
    %p48 = scmp.eq.s32.totalorder %s26, 1
    %p49 = por %p47, %p48
    %p51 = scmp.ne.s32.totalorder %s34, %s50
    %p52 = scmp.eq.s32.totalorder %s26, 0
    %p53 = por %p51, %p52
    %s55 = sadd.s32 %s54, 1
    %p58 = scmp.eq.s32.totalorder %s20, 1
    %p59 = scmp.ne.s32.totalorder %s54, %s56
    %p60 = scmp.eq.s32.totalorder %s20, 0
    %p61 = por %p59, %p60
    %p62 = scmp.ne.s32.totalorder %s54, %s56
    %p63 = scmp.eq.s32.totalorder %s25, 1
    %p64 = por %p62, %p63
    %p65 = scmp.ne.s32.totalorder %s56, %s57
    %p66 = scmp.eq.s32.totalorder %s25, 0
    %p67 = por %p65, %p66
    %p68 = scmp.ne.s32.totalorder %s56, %s57
    %p69 = scmp.eq.s32.totalorder %s26, 1
    %p70 = por %p68, %p69
    %p72 = scmp.ne.s32.totalorder %s57, %s71
    %p73 = scmp.eq.s32.totalorder %s26, 0
    %p74 = por %p72, %p73
    %s76 = sadd.s32 %s75, 1
    %p79 = scmp.eq.s32.totalorder %s20, 1
    %p80 = scmp.ne.s32.totalorder %s75, %s77
    %p81 = scmp.eq.s32.totalorder %s20, 0
    %p82 = por %p80, %p81
    %p83 = scmp.ne.s32.totalorder %s75, %s77
    %p84 = scmp.eq.s32.totalorder %s25, 1
    %p85 = por %p83, %p84
    %p86 = scmp.ne.s32.totalorder %s77, %s78
    %p87 = scmp.eq.s32.totalorder %s25, 0
    %p88 = por %p86, %p87
    %p89 = scmp.ne.s32.totalorder %s77, %s78
    %p90 = scmp.eq.s32.totalorder %s26, 1
    %p91 = por %p89, %p90
    %p93 = scmp.ne.s32.totalorder %s78, %s92
    %p94 = scmp.eq.s32.totalorder %s26, 0
    %p95 = por %p93, %p94
    %s97 = sadd.s32 %s96, 1
    %p100 = scmp.eq.s32.totalorder %s20, 1
    %p101 = scmp.ne.s32.totalorder %s96, %s98
    %p102 = scmp.eq.s32.totalorder %s20, 0
    %p103 = por %p101, %p102
    %p104 = scmp.ne.s32.totalorder %s96, %s98
    %p105 = scmp.eq.s32.totalorder %s25, 1
    %p106 = por %p104, %p105
    %p107 = scmp.ne.s32.totalorder %s98, %s99
    %p108 = scmp.eq.s32.totalorder %s25, 0
    %p109 = por %p107, %p108
    %p110 = scmp.ne.s32.totalorder %s98, %s99
    %p111 = scmp.eq.s32.totalorder %s26, 1
    %p112 = por %p110, %p111
    %p114 = scmp.ne.s32.totalorder %s99, %s113
    %p115 = scmp.eq.s32.totalorder %s26, 0
    %p116 = por %p114, %p115
    %s118 = sadd.s32 %s117, 1
    %p121 = scmp.eq.s32.totalorder %s20, 1
    %p122 = scmp.ne.s32.totalorder %s117, %s119
    %p123 = scmp.eq.s32.totalorder %s20, 0
    %p124 = por %p122, %p123
    %p125 = scmp.ne.s32.totalorder %s117, %s119
    %p126 = scmp.eq.s32.totalorder %s25, 1
    %p127 = por %p125, %p126
    %p128 = scmp.ne.s32.totalorder %s119, %s120
    %p129 = scmp.eq.s32.totalorder %s25, 0
    %p130 = por %p128, %p129
    %p131 = scmp.ne.s32.totalorder %s119, %s120
    %p132 = scmp.eq.s32.totalorder %s26, 1
    %p133 = por %p131, %p132
    %p135 = scmp.ne.s32.totalorder %s120, %s134
    %p136 = scmp.eq.s32.totalorder %s26, 0
    %p137 = por %p135, %p136
    %s139 = sadd.s32 %s138, 1
    %p142 = scmp.eq.s32.totalorder %s20, 1
    %p143 = scmp.ne.s32.totalorder %s138, %s140
    %p144 = scmp.eq.s32.totalorder %s20, 0
    %p145 = por %p143, %p144
    %p146 = scmp.ne.s32.totalorder %s138, %s140
    %p147 = scmp.eq.s32.totalorder %s25, 1
    %p148 = por %p146, %p147
    %p149 = scmp.ne.s32.totalorder %s140, %s141
    %p150 = scmp.eq.s32.totalorder %s25, 0
    %p151 = por %p149, %p150
    %p152 = scmp.ne.s32.totalorder %s140, %s141
    %p153 = scmp.eq.s32.totalorder %s26, 1
    %p154 = por %p152, %p153
    %p156 = scmp.ne.s32.totalorder %s141, %s155
    %p157 = scmp.eq.s32.totalorder %s26, 0
    %p158 = por %p156, %p157
    %s160 = sadd.s32 %s159, 1
    %p163 = scmp.eq.s32.totalorder %s20, 1
    %p164 = scmp.ne.s32.totalorder %s159, %s161
    %p165 = scmp.eq.s32.totalorder %s20, 0
    %p166 = por %p164, %p165
    %p167 = scmp.ne.s32.totalorder %s159, %s161
    %p168 = scmp.eq.s32.totalorder %s25, 1
    %p169 = por %p167, %p168
    %p170 = scmp.ne.s32.totalorder %s161, %s162
    %p171 = scmp.eq.s32.totalorder %s25, 0
    %p172 = por %p170, %p171
    %p173 = scmp.ne.s32.totalorder %s161, %s162
    %p174 = scmp.eq.s32.totalorder %s26, 1
    %p175 = por %p173, %p174
    %p177 = scmp.ne.s32.totalorder %s162, %s176
    %p178 = scmp.eq.s32.totalorder %s26, 0
    %p179 = por %p177, %p178
    %s181 = sadd.s32 %s180, 1
    %p184 = scmp.eq.s32.totalorder %s20, 1
    %p185 = scmp.ne.s32.totalorder %s180, %s182
    %p186 = scmp.eq.s32.totalorder %s20, 0
    %p187 = por %p185, %p186
    %p188 = scmp.ne.s32.totalorder %s180, %s182
    %p189 = scmp.eq.s32.totalorder %s25, 1
    %p190 = por %p188, %p189
    %p191 = scmp.ne.s32.totalorder %s182, %s183
    %p192 = scmp.eq.s32.totalorder %s25, 0
    %p193 = por %p191, %p192
    %p194 = scmp.ne.s32.totalorder %s182, %s183
    %p195 = scmp.eq.s32.totalorder %s26, 1
    %p196 = por %p194, %p195
    %p198 = scmp.ne.s32.totalorder %s183, %s197
    %p199 = scmp.eq.s32.totalorder %s26, 0
    %p200 = por %p198, %p199
    %s202 = sadd.s32 %s201, 1
    %p205 = scmp.eq.s32.totalorder %s20, 1
    %p206 = scmp.ne.s32.totalorder %s201, %s203
    %p207 = scmp.eq.s32.totalorder %s20, 0
    %p208 = por %p206, %p207
    %p209 = scmp.ne.s32.totalorder %s201, %s203
    %p210 = scmp.eq.s32.totalorder %s25, 1
    %p211 = por %p209, %p210
    %p212 = scmp.ne.s32.totalorder %s203, %s204
    %p213 = scmp.eq.s32.totalorder %s25, 0
    %p214 = por %p212, %p213
    %p215 = scmp.ne.s32.totalorder %s203, %s204
    %p216 = scmp.eq.s32.totalorder %s26, 1
    %p217 = por %p215, %p216
    %p219 = scmp.ne.s32.totalorder %s204, %s218
    %p220 = scmp.eq.s32.totalorder %s26, 0
    %p221 = por %p219, %p220
    %s223 = sadd.s32 %s222, 1
    %p226 = scmp.eq.s32.totalorder %s20, 1
    %p227 = scmp.ne.s32.totalorder %s222, %s224
    %p228 = scmp.eq.s32.totalorder %s20, 0
    %p229 = por %p227, %p228
    %p230 = scmp.ne.s32.totalorder %s222, %s224
    %p231 = scmp.eq.s32.totalorder %s25, 1
    %p232 = por %p230, %p231
    %p233 = scmp.ne.s32.totalorder %s224, %s225
    %p234 = scmp.eq.s32.totalorder %s25, 0
    %p235 = por %p233, %p234
    %p236 = scmp.ne.s32.totalorder %s224, %s225
    %p237 = scmp.eq.s32.totalorder %s26, 1
    %p238 = por %p236, %p237
    %p240 = scmp.ne.s32.totalorder %s225, %s239
    %p241 = scmp.eq.s32.totalorder %s26, 0
    %p242 = por %p240, %p241
    %s244 = sadd.s32 %s243, 1
    %p247 = scmp.eq.s32.totalorder %s20, 1
    %p248 = scmp.ne.s32.totalorder %s243, %s245
    %p249 = scmp.eq.s32.totalorder %s20, 0
    %p250 = por %p248, %p249
    %p251 = scmp.ne.s32.totalorder %s243, %s245
    %p252 = scmp.eq.s32.totalorder %s25, 1
    %p253 = por %p251, %p252
    %p254 = scmp.ne.s32.totalorder %s245, %s246
    %p255 = scmp.eq.s32.totalorder %s25, 0
    %p256 = por %p254, %p255
    %p257 = scmp.ne.s32.totalorder %s245, %s246
    %p258 = scmp.eq.s32.totalorder %s26, 1
    %p259 = por %p257, %p258
    %p261 = scmp.ne.s32.totalorder %s246, %s260
    %p262 = scmp.eq.s32.totalorder %s26, 0
    %p263 = por %p261, %p262
    %s265 = sadd.s32 %s264, 1
    %p268 = scmp.eq.s32.totalorder %s20, 1
    %p269 = scmp.ne.s32.totalorder %s264, %s266
    %p270 = scmp.eq.s32.totalorder %s20, 0
    %p271 = por %p269, %p270
    %p272 = scmp.ne.s32.totalorder %s264, %s266
    %p273 = scmp.eq.s32.totalorder %s25, 1
    %p274 = por %p272, %p273
    %p275 = scmp.ne.s32.totalorder %s266, %s267
    %p276 = scmp.eq.s32.totalorder %s25, 0
    %p277 = por %p275, %p276
    %p278 = scmp.ne.s32.totalorder %s266, %s267
    %p279 = scmp.eq.s32.totalorder %s26, 1
    %p280 = por %p278, %p279
    %p282 = scmp.ne.s32.totalorder %s267, %s281
    %p283 = scmp.eq.s32.totalorder %s26, 0
    %p284 = por %p282, %p283
    %s285 = ssub.s32 %s20, %s27
    %p286 = scmp.eq.s32.totalorder %s285, 0
    %s288 = sadd.s32 %s287, 1
    %s289 = scalar_select %p286, %s287, %s288
    %p292 = pneg %p286
    %p293 = scmp.eq.s32.totalorder %s20, 1
    %p294 = por %p292, %p293
    %p295 = scmp.ne.s32.totalorder %s287, %s290
    %p296 = scmp.eq.s32.totalorder %s20, 0
    %p297 = por %p295, %p296
    %p298 = scmp.ne.s32.totalorder %s287, %s290
    %p299 = scmp.eq.s32.totalorder %s25, 1
    %p300 = por %p298, %p299
    %p301 = scmp.ne.s32.totalorder %s290, %s291
    %p302 = scmp.eq.s32.totalorder %s25, 0
    %p303 = por %p301, %p302
    %p304 = scmp.ne.s32.totalorder %s290, %s291
    %p305 = scmp.eq.s32.totalorder %s26, 1
    %p306 = por %p304, %p305
    %p308 = scmp.ne.s32.totalorder %s291, %s307
    %p309 = scmp.eq.s32.totalorder %s26, 0
    %p310 = por %p308, %p309
    %s312 = sadd.s32 %s311, 1
    %p315 = scmp.eq.s32.totalorder %s20, 1
    %p316 = scmp.ne.s32.totalorder %s311, %s313
    %p317 = scmp.eq.s32.totalorder %s20, 0
    %p318 = por %p316, %p317
    %p319 = scmp.ne.s32.totalorder %s311, %s313
    %p320 = scmp.eq.s32.totalorder %s25, 1
    %p321 = por %p319, %p320
    %p322 = scmp.ne.s32.totalorder %s313, %s314
    %p323 = scmp.eq.s32.totalorder %s25, 0
    %p324 = por %p322, %p323
    %p325 = scmp.ne.s32.totalorder %s313, %s314
    %p326 = scmp.eq.s32.totalorder %s26, 1
    %p327 = por %p325, %p326
    %p329 = scmp.ne.s32.totalorder %s314, %s328
    %p330 = scmp.eq.s32.totalorder %s26, 0
    %p331 = por %p329, %p330
    %s332 = ssub.s32 %s20, %s27
    %p333 = scmp.eq.s32.totalorder %s332, 0
    %s335 = sadd.s32 %s334, 1
    %s336 = scalar_select %p333, %s334, %s335
    %p339 = pneg %p333
    %p340 = scmp.eq.s32.totalorder %s20, 1
    %p341 = por %p339, %p340
    %p342 = scmp.ne.s32.totalorder %s334, %s337
    %p343 = scmp.eq.s32.totalorder %s20, 0
    %p344 = por %p342, %p343
    %p345 = scmp.ne.s32.totalorder %s334, %s337
    %p346 = scmp.eq.s32.totalorder %s25, 1
    %p347 = por %p345, %p346
    %p348 = scmp.ne.s32.totalorder %s337, %s338
    %p349 = scmp.eq.s32.totalorder %s25, 0
    %p350 = por %p348, %p349
    %p351 = scmp.ne.s32.totalorder %s337, %s338
    %p352 = scmp.eq.s32.totalorder %s26, 1
    %p353 = por %p351, %p352
    %p355 = scmp.ne.s32.totalorder %s338, %s354
    %p356 = scmp.eq.s32.totalorder %s26, 0
    %p357 = por %p355, %p356
    %p358 = scmp.le.s32.totalorder 1, %s20
    %p359 = scmp.lt.s32.totalorder %s20, 3
    %p360 = pnand %p358, %p359
    %p361 = pneg %p360
    // Predicated region
    $region9: #{resblock_forward.1} parent=5 // pred_check
      _
    $region10: #{resblock_forward.1} parent=5 // pred_check_branch
      %363 = sbr.rel (%p360) target = $region12
    $region11: #{resblock_forward.1} parent=5 // pred_region
      %s364 = ssub.s32 %s20, 1
      // Predicated region
      $region13: #{resblock_forward.1} parent=11 // pred_check
        %p365 = pneg %p67
      $region14: #{resblock_forward.1} parent=11 // pred_check_branch
        %367 = sbr.rel (%p365) target = $region16
      $region15: #{resblock_forward.1} parent=11 // pred_region
        _
      $region16: #{resblock_forward.1} parent=11 // pred_fallthru
        _
      // Predicated region
      $region17: #{resblock_forward.1} parent=11 // pred_check
        %p368 = pneg %p88
      $region18: #{resblock_forward.1} parent=11 // pred_check_branch
        %370 = sbr.rel (%p368) target = $region20
      $region19: #{resblock_forward.1} parent=11 // pred_region
        _
      $region20: #{resblock_forward.1} parent=11 // pred_fallthru
        _
      // Predicated region
      $region21: #{resblock_forward.1} parent=11 // pred_check
        %p371 = pneg %p109
      $region22: #{resblock_forward.1} parent=11 // pred_check_branch
        %373 = sbr.rel (%p371) target = $region24
      $region23: #{resblock_forward.1} parent=11 // pred_region
        _
      $region24: #{resblock_forward.1} parent=11 // pred_fallthru
        _
      // Predicated region
      $region25: #{resblock_forward.1} parent=11 // pred_check
        %p374 = pneg %p130
      $region26: #{resblock_forward.1} parent=11 // pred_check_branch
        %376 = sbr.rel (%p374) target = $region28
      $region27: #{resblock_forward.1} parent=11 // pred_region
        _
      $region28: #{resblock_forward.1} parent=11 // pred_fallthru
        _
      // Predicated region
      $region29: #{resblock_forward.1} parent=11 // pred_check
        %p377 = pneg %p151
      $region30: #{resblock_forward.1} parent=11 // pred_check_branch
        %379 = sbr.rel (%p377) target = $region32
      $region31: #{resblock_forward.1} parent=11 // pred_region
        _
      $region32: #{resblock_forward.1} parent=11 // pred_fallthru
        _
      // Predicated region
      $region33: #{resblock_forward.1} parent=11 // pred_check
        %p380 = pneg %p172
      $region34: #{resblock_forward.1} parent=11 // pred_check_branch
        %382 = sbr.rel (%p380) target = $region36
      $region35: #{resblock_forward.1} parent=11 // pred_region
        _
      $region36: #{resblock_forward.1} parent=11 // pred_fallthru
        _
      // Predicated region
      $region37: #{resblock_forward.1} parent=11 // pred_check
        %p383 = pneg %p193
      $region38: #{resblock_forward.1} parent=11 // pred_check_branch
        %385 = sbr.rel (%p383) target = $region40
      $region39: #{resblock_forward.1} parent=11 // pred_region
        _
      $region40: #{resblock_forward.1} parent=11 // pred_fallthru
        _
      // Predicated region
      $region41: #{resblock_forward.1} parent=11 // pred_check
        %p386 = pneg %p214
      $region42: #{resblock_forward.1} parent=11 // pred_check_branch
        %388 = sbr.rel (%p386) target = $region44
      $region43: #{resblock_forward.1} parent=11 // pred_region
        _
      $region44: #{resblock_forward.1} parent=11 // pred_fallthru
        _
      // Predicated region
      $region45: #{resblock_forward.1} parent=11 // pred_check
        %p389 = pneg %p235
      $region46: #{resblock_forward.1} parent=11 // pred_check_branch
        %391 = sbr.rel (%p389) target = $region48
      $region47: #{resblock_forward.1} parent=11 // pred_region
        _
      $region48: #{resblock_forward.1} parent=11 // pred_fallthru
        _
      // Predicated region
      $region49: #{resblock_forward.1} parent=11 // pred_check
        %p392 = pneg %p256
      $region50: #{resblock_forward.1} parent=11 // pred_check_branch
        %394 = sbr.rel (%p392) target = $region52
      $region51: #{resblock_forward.1} parent=11 // pred_region
        _
      $region52: #{resblock_forward.1} parent=11 // pred_fallthru
        _
      // Predicated region
      $region53: #{resblock_forward.1} parent=11 // pred_check
        %p395 = pneg %p277
      $region54: #{resblock_forward.1} parent=11 // pred_check_branch
        %397 = sbr.rel (%p395) target = $region56
      $region55: #{resblock_forward.1} parent=11 // pred_region
        _
      $region56: #{resblock_forward.1} parent=11 // pred_fallthru
        _
      // Predicated region
      $region57: #{resblock_forward.1} parent=11 // pred_check
        %p398 = pneg %p324
      $region58: #{resblock_forward.1} parent=11 // pred_check_branch
        %400 = sbr.rel (%p398) target = $region60
      $region59: #{resblock_forward.1} parent=11 // pred_region
        _
      $region60: #{resblock_forward.1} parent=11 // pred_fallthru
        _
    $region12: #{resblock_forward.1} parent=5 // pred_fallthru
      _
    %p401 = scmp.lt.s32.totalorder %s20, 2
    // Predicated region
    $region61: #{resblock_forward.1} parent=5 // pred_check
      %p402 = pneg %p401
    $region62: #{resblock_forward.1} parent=5 // pred_check_branch
      %404 = sbr.rel (%p402) target = $region64
    $region63: #{resblock_forward.1} parent=5 // pred_region
      // Predicated region
      $region65: #{resblock_forward.1} parent=63 // pred_check
        %p405 = pneg %p40
      $region66: #{resblock_forward.1} parent=63 // pred_check_branch
        %407 = sbr.rel (%p405) target = $region68
      $region67: #{resblock_forward.1} parent=63 // pred_region
        %s408 = smul.u32 36, %s20
        %p409 = scmp.lt.s32.totalorder %s408, 71
        %s410 = scalar_select %p409, %s408, 71
        %s411 = smul.addr %s410, 4
        %s412 = scalar_lea.vmem %s0, %s411
        %s413 = smul.u32 36, %s20
      $region68: #{resblock_forward.1} parent=63 // pred_fallthru
        _
      // Predicated region
      $region69: #{resblock_forward.1} parent=63 // pred_check
        %p414 = pneg %p297
      $region70: #{resblock_forward.1} parent=63 // pred_check_branch
        %416 = sbr.rel (%p414) target = $region72
      $region71: #{resblock_forward.1} parent=63 // pred_region
        %p417 = scmp.lt.s32.totalorder %s20, 1
        %s418 = scalar_select %p417, %s20, 1
        %s419 = scalar_lea.vmem %s12, %s418
      $region72: #{resblock_forward.1} parent=63 // pred_fallthru
        _
    $region64: #{resblock_forward.1} parent=5 // pred_fallthru
      _
    %p420 = scmp.le.s32.totalorder 1, %s20
    %p421 = scmp.lt.s32.totalorder %s20, 3
    %p422 = pnand %p420, %p421
    %p423 = pneg %p422
    // Predicated region
    $region73: #{resblock_forward.1} parent=5 // pred_check
      _
    $region74: #{resblock_forward.1} parent=5 // pred_check_branch
      %425 = sbr.rel (%p422) target = $region76
    $region75: #{resblock_forward.1} parent=5 // pred_region
      %s426 = ssub.s32 %s20, 1
      %s427 = smul.u32 36, %s25
      %p428 = scmp.lt.s32.totalorder %s427, 71
      %s429 = scalar_select %p428, %s427, 71
      %s430 = smul.addr %s429, 4
      %s431 = scalar_lea.vmem %s0, %s430
      %p432 = pneg %p46
      %p433 = pneg %p43
      %p434 = pneg %p67
      %p435 = pneg %p64
      %p436 = pneg %p88
      %p437 = pneg %p85
      %p438 = pneg %p109
      %p439 = pneg %p106
      %p440 = pneg %p130
      %p441 = pneg %p127
      %p442 = pneg %p151
      %p443 = pneg %p148
      %p444 = pneg %p172
      %p445 = pneg %p169
      %p446 = pneg %p193
      %p447 = pneg %p190
      %p448 = pneg %p214
      %p449 = pneg %p211
      %p450 = pneg %p235
      %p451 = pneg %p232
      %p452 = pneg %p256
      %p453 = pneg %p253
      %p454 = pneg %p277
      %p455 = pneg %p274
      %p456 = scmp.lt.s32.totalorder %s25, 1
      %s457 = scalar_select %p456, %s25, 1
      %s458 = scalar_lea.vmem %s12, %s457
      %p459 = pneg %p303
      %p460 = pneg %p300
      %p461 = pneg %p324
      %p462 = pneg %p321
      %p463 = pneg %p350
      %p464 = pneg %p347
      %s465 = smul.u32 36, %s25
      %p466 = scmp.lt.s32.totalorder %s465, 71
      %s467 = scalar_select %p466, %s465, 71
      %s468 = smul.addr %s467, 8
      %s469 = scalar_lea.vmem %s14, %s468
      %s470 = smul.u32 36, %s25
      %p471 = scmp.lt.s32.totalorder %s470, 71
      %s472 = scalar_select %p471, %s470, 71
      %s473 = smul.addr %s472, 4
      %s474 = scalar_lea.vmem %s0, %s473
      %s475 = smul.u32 36, %s25
      %p476 = scmp.lt.s32.totalorder %s25, 1
      %s477 = scalar_select %p476, %s25, 1
      %s478 = scalar_lea.vmem %s12, %s477
      %s479 = smul.u32 36, %s25
      %p480 = scmp.lt.s32.totalorder %s479, 71
      %s481 = scalar_select %p480, %s479, 71
      %s482 = smul.addr %s481, 8
      %s483 = scalar_lea.vmem %s14, %s482
      %s484 = smul.u32 36, %s25
      %v486 = vld [vmem:[%s1] sm:$0xff]
      %v487 = vld [vmem:[%s1 + $0x8] sm:$0xff]
      %v488 = vld [vmem:[%s1 + $0x10] sm:$0xff]
      %v489 = vld [vmem:[%s1 + $0x18] sm:$0xff]
      %v490 = vld [vmem:[%s1 + $0x20] sm:$0xff]
      %v491 = vld [vmem:[%s1 + $0x28] sm:$0xff]
      %v492 = vld [vmem:[%s1 + $0x30] sm:$0xff]
      %v493 = vld [vmem:[%s1 + $0x38] sm:$0xff]
      %v494 = vld [vmem:[%s1 + $0x40] sm:$0xff]
      %v495 = vld [vmem:[%s1 + $0x48] sm:$0xff]
      %v496 = vld [vmem:[%s1 + $0x50] sm:$0xff]
      %v497 = vld [vmem:[%s1 + $0x58] sm:$0xff]
      %v498 = vld [vmem:[%s1 + $0x60] sm:$0xff]
      %v499 = vld [vmem:[%s1 + $0x68] sm:$0xff]
      %v500 = vld [vmem:[%s1 + $0x70] sm:$0xff]
      %v501 = vld [vmem:[%s1 + $0x78] sm:$0xff]
      %v502 = vld [vmem:[%s1 + $0x80] sm:$0xff]
      %v503 = vld [vmem:[%s1 + $0x88] sm:$0xff]
      %v504 = vld [vmem:[%s1 + $0x90] sm:$0xff]
      %v505 = vld [vmem:[%s1 + $0x98] sm:$0xff]
      %v506 = vld [vmem:[%s1 + $0xa0] sm:$0xff]
      %v507 = vld [vmem:[%s1 + $0xa8] sm:$0xff]
      %v508 = vld [vmem:[%s1 + $0xb0] sm:$0xff]
      %v509 = vld [vmem:[%s1 + $0xb8] sm:$0xff]
      %v510 = vld [vmem:[%s1 + $0xc0] sm:$0xff]
      %v511 = vld [vmem:[%s1 + $0xc8] sm:$0xff]
      %v512 = vld [vmem:[%s1 + $0xd0] sm:$0xff]
      %v513 = vld [vmem:[%s1 + $0xd8] sm:$0xff]
      %v514 = vld [vmem:[%s1 + $0xe0] sm:$0xff]
      %v515 = vld [vmem:[%s1 + $0xe8] sm:$0xff]
      %v516 = vld [vmem:[%s1 + $0xf0] sm:$0xff]
      %v517 = vld [vmem:[%s1 + $0xf8] sm:$0xff]
      %v518 = vld [vmem:[%s1 + $0x100] sm:$0xff]
      %v519 = vld [vmem:[%s1 + $0x108] sm:$0xff]
      %v520 = vld [vmem:[%s1 + $0x110] sm:$0xff]
      %v521 = vld [vmem:[%s1 + $0x118] sm:$0xff]
      %v522 = vld [vmem:[%s474] sm:$0xf]
      %v523 = vld [vmem:[%s474 + $0x4] sm:$0xf]
      %v524 = vld [vmem:[%s474 + $0x8] sm:$0xf]
      %v525 = vld [vmem:[%s474 + $0xc] sm:$0xf]
      %v526 = vld [vmem:[%s474 + $0x10] sm:$0xf]
      %v527 = vld [vmem:[%s474 + $0x14] sm:$0xf]
      %v528 = vld [vmem:[%s474 + $0x18] sm:$0xf]
      %v529 = vld [vmem:[%s474 + $0x1c] sm:$0xf]
      %v530 = vld [vmem:[%s474 + $0x20] sm:$0xf]
      %v531 = vld [vmem:[%s474 + $0x24] sm:$0xf]
      %v532 = vld [vmem:[%s474 + $0x28] sm:$0xf]
      %v533 = vld [vmem:[%s474 + $0x2c] sm:$0xf]
      %v534 = vld [vmem:[%s474 + $0x30] sm:$0xf]
      %v535 = vld [vmem:[%s474 + $0x34] sm:$0xf]
      %v536 = vld [vmem:[%s474 + $0x38] sm:$0xf]
      %v537 = vld [vmem:[%s474 + $0x3c] sm:$0xf]
      %v538 = vld [vmem:[%s474 + $0x40] sm:$0xf]
      %v539 = vld [vmem:[%s474 + $0x44] sm:$0xf]
      %v540 = vld [vmem:[%s474 + $0x48] sm:$0xf]
      %v541 = vld [vmem:[%s474 + $0x4c] sm:$0xf]
      %v542 = vld [vmem:[%s474 + $0x50] sm:$0xf]
      %v543 = vld [vmem:[%s474 + $0x54] sm:$0xf]
      %v544 = vld [vmem:[%s474 + $0x58] sm:$0xf]
      %v545 = vld [vmem:[%s474 + $0x5c] sm:$0xf]
      %v546 = vld [vmem:[%s474 + $0x60] sm:$0xf]
      %v547 = vld [vmem:[%s474 + $0x64] sm:$0xf]
      %v548 = vld [vmem:[%s474 + $0x68] sm:$0xf]
      %v549 = vld [vmem:[%s474 + $0x6c] sm:$0xf]
      %v550 = vld [vmem:[%s474 + $0x70] sm:$0xf]
      %v551 = vld [vmem:[%s474 + $0x74] sm:$0xf]
      %v552 = vld [vmem:[%s474 + $0x78] sm:$0xf]
      %v553 = vld [vmem:[%s474 + $0x7c] sm:$0xf]
      %v554 = vld [vmem:[%s474 + $0x80] sm:$0xf]
      %v555 = vld [vmem:[%s474 + $0x84] sm:$0xf]
      %v556 = vld [vmem:[%s474 + $0x88] sm:$0xf]
      %v557 = vld [vmem:[%s474 + $0x8c] sm:$0xf]
      %v558 = vld [vmem:[%s2] sm:$0xf]
      %v559 = vld [vmem:[%s2 + $0x4] sm:$0xf]
      %v560 = vld [vmem:[%s2 + $0x8] sm:$0xf]
      %v561 = vld [vmem:[%s2 + $0xc] sm:$0xf]
      %v562 = vld [vmem:[%s2 + $0x10] sm:$0x3]
      %v563 = vld [vmem:[%s3] sm:$0x1]
      %v565 = vlaneseq
      %v566 = vshrl.u32 %v565, 7
      %v567 = vsub.s32 0, %v566
      %v568 = vrot.slane %v563, %v567
      %v606 = vunpack.c.l.b16 %v522
      %v607 = vunpack.c.l.b16 %v523
      %v608 = vunpack.c.l.b16 %v524
      %v609 = vunpack.c.l.b16 %v525
      %v610 = vunpack.c.l.b16 %v526
      %v611 = vunpack.c.l.b16 %v527
      %v612 = vunpack.c.l.b16 %v528
      %v613 = vunpack.c.l.b16 %v529
      %v614 = vunpack.c.l.b16 %v530
      %v615 = vunpack.c.l.b16 %v531
      %v616 = vunpack.c.l.b16 %v532
      %v617 = vunpack.c.l.b16 %v533
      %v618 = vunpack.c.l.b16 %v534
      %v619 = vunpack.c.l.b16 %v535
      %v620 = vunpack.c.l.b16 %v536
      %v621 = vunpack.c.l.b16 %v537
      %v622 = vunpack.c.l.b16 %v538
      %v623 = vunpack.c.l.b16 %v539
      %v624 = vunpack.c.l.b16 %v540
      %v625 = vunpack.c.l.b16 %v541
      %v626 = vunpack.c.l.b16 %v542
      %v627 = vunpack.c.l.b16 %v543
      %v628 = vunpack.c.l.b16 %v544
      %v629 = vunpack.c.l.b16 %v545
      %v630 = vunpack.c.l.b16 %v546
      %v631 = vunpack.c.l.b16 %v547
      %v632 = vunpack.c.l.b16 %v548
      %v633 = vunpack.c.l.b16 %v549
      %v634 = vunpack.c.l.b16 %v550
      %v635 = vunpack.c.l.b16 %v551
      %v636 = vunpack.c.l.b16 %v552
      %v637 = vunpack.c.l.b16 %v553
      %v638 = vunpack.c.l.b16 %v554
      %v639 = vunpack.c.l.b16 %v555
      %v640 = vunpack.c.l.b16 %v556
      %v641 = vunpack.c.l.b16 %v557
      %v642 = vpack.c.b16 %v607, %v606
      %v643 = vpack.c.b16 %v609, %v608
      %v644 = vpack.c.b16 %v611, %v610
      %v645 = vpack.c.b16 %v613, %v612
      %v646 = vpack.c.b16 %v615, %v614
      %v647 = vpack.c.b16 %v617, %v616
      %v648 = vpack.c.b16 %v619, %v618
      %v649 = vpack.c.b16 %v621, %v620
      %v650 = vpack.c.b16 %v623, %v622
      %v651 = vpack.c.b16 %v625, %v624
      %v652 = vpack.c.b16 %v627, %v626
      %v653 = vpack.c.b16 %v629, %v628
      %v654 = vpack.c.b16 %v631, %v630
      %v655 = vpack.c.b16 %v633, %v632
      %v656 = vpack.c.b16 %v635, %v634
      %v657 = vpack.c.b16 %v637, %v636
      %v658 = vpack.c.b16 %v639, %v638
      %v659 = vpack.c.b16 %v641, %v640
      %v665 = vunpack.c.l.b16 %v558
      %v666 = vunpack.c.l.b16 %v559
      %v667 = vunpack.c.l.b16 %v560
      %v668 = vunpack.c.l.b16 %v561
      %v669 = vunpack.c.l.b16 %v562
      %v670 = vpack.c.b16 %v666, %v665
      %v671 = vpack.c.b16 %v668, %v667
      %v672 = vpack.c.b16 %v669, %v669
      %vm675 = vcmask 293888
      %v677 = vsel %vm675, %v642, 0
      %v680 = vsel %vm675, %v643, 0
      %v683 = vsel %vm675, %v644, 0
      %v686 = vsel %vm675, %v645, 0
      %v689 = vsel %vm675, %v646, 0
      %v692 = vsel %vm675, %v647, 0
      %v695 = vsel %vm675, %v648, 0
      %v698 = vsel %vm675, %v649, 0
      %v701 = vsel %vm675, %v650, 0
      %v704 = vsel %vm675, %v651, 0
      %v707 = vsel %vm675, %v652, 0
      %v710 = vsel %vm675, %v653, 0
      %v713 = vsel %vm675, %v654, 0
      %v716 = vsel %vm675, %v655, 0
      %v719 = vsel %vm675, %v656, 0
      %v722 = vsel %vm675, %v657, 0
      %v725 = vsel %vm675, %v658, 0
      %v728 = vsel %vm675, %v659, 0
      %vm730 = vcmask 1041408
      %v732 = vsel %vm730, %v672, 0
      %734 = vmatprep.subr.bf16.mxu0 0
      %735 = vmatpush1.bf16.msra.mxu0 0
      %736 = vmatprep.subr.bf16.mxu0 0
      %737 = vmatpush1.bf16.msra.mxu0 0
      %738 = vmatprep.subr.bf16.mxu0 0
      %739 = vmatpush1.bf16.msra.mxu0 0
      %740 = vmatprep.subr.bf16.mxu0 0
      %741 = vmatpush1.bf16.msra.mxu0 0
      %742 = vmatprep.subr.bf16.mxu0 0
      %743 = vmatpush1.bf16.msra.mxu0 0
      %744 = vmatprep.subr.bf16.mxu0 0
      %745 = vmatpush1.bf16.msra.mxu0 %v732
      %746 = vmatprep.subr.bf16.mxu0 0
      %747 = vmatpush1.bf16.msra.mxu0 %v671
      %748 = vmatprep.subr.bf16.mxu0 0
      %749 = vmatpush1.bf16.msra.mxu0 %v670
      %750 = vmatprep.subr.bf16.mxu0 0
      %751 = vmatpush2.bf16.msra.mxu0 0
      %752 = vmatprep.subr.bf16.mxu0 0
      %753 = vmatpush2.bf16.msra.mxu0 0
      %754 = vmatprep.subr.bf16.mxu0 0
      %755 = vmatpush2.bf16.msra.mxu0 0
      %756 = vmatprep.subr.bf16.mxu0 0
      %757 = vmatpush2.bf16.msra.mxu0 0
      %758 = vmatprep.subr.bf16.mxu0 0
      %759 = vmatpush2.bf16.msra.mxu0 0
      %760 = vmatprep.subr.bf16.mxu0 0
      %761 = vmatpush2.bf16.msra.mxu0 0
      %762 = vmatprep.subr.bf16.mxu0 0
      %763 = vmatpush2.bf16.msra.mxu0 0
      %764 = vmatprep.subr.bf16.mxu0 0
      %765 = vmatpush2.bf16.msra.mxu0 0
      %766 = vmatprep.mubr.bf16.mxu0 0
      %767 = vmatmul.mubr.bf16.gmra.mxu0 %v677
      %v768 = vpop.f32.mrf.mxu0
      %v769 = vadd.f32 %v568, %v768
      %v770 = vpop.f32.mrf.mxu0
      %v771 = vpop.f32.mrf.mxu0
      %v772 = vadd.f32 %v568, %v771
      %v773 = vpop.f32.mrf.mxu0
      %774 = vmatprep.mubr.bf16.mxu0 0
      %775 = vmatmul.mubr.bf16.gmra.mxu0 %v680
      %v776 = vpop.f32.mrf.mxu0
      %v777 = vadd.f32 %v568, %v776
      %v778 = vpop.f32.mrf.mxu0
      %v779 = vpop.f32.mrf.mxu0
      %v780 = vadd.f32 %v568, %v779
      %v781 = vpop.f32.mrf.mxu0
      %782 = vmatprep.mubr.bf16.mxu0 0
      %783 = vmatmul.mubr.bf16.gmra.mxu0 %v683
      %v784 = vpop.f32.mrf.mxu0
      %v785 = vadd.f32 %v568, %v784
      %v786 = vpop.f32.mrf.mxu0
      %v787 = vpop.f32.mrf.mxu0
      %v788 = vadd.f32 %v568, %v787
      %v789 = vpop.f32.mrf.mxu0
      %790 = vmatprep.mubr.bf16.mxu0 0
      %791 = vmatmul.mubr.bf16.gmra.mxu0 %v686
      %v792 = vpop.f32.mrf.mxu0
      %v793 = vadd.f32 %v568, %v792
      %v794 = vpop.f32.mrf.mxu0
      %v795 = vpop.f32.mrf.mxu0
      %v796 = vadd.f32 %v568, %v795
      %v797 = vpop.f32.mrf.mxu0
      %798 = vmatprep.mubr.bf16.mxu0 0
      %799 = vmatmul.mubr.bf16.gmra.mxu0 %v689
      %v800 = vpop.f32.mrf.mxu0
      %v801 = vadd.f32 %v568, %v800
      %v802 = vpop.f32.mrf.mxu0
      %v803 = vpop.f32.mrf.mxu0
      %v804 = vadd.f32 %v568, %v803
      %v805 = vpop.f32.mrf.mxu0
      %806 = vmatprep.mubr.bf16.mxu0 0
      %807 = vmatmul.mubr.bf16.gmra.mxu0 %v692
      %v808 = vpop.f32.mrf.mxu0
      %v809 = vadd.f32 %v568, %v808
      %v810 = vpop.f32.mrf.mxu0
      %v811 = vpop.f32.mrf.mxu0
      %v812 = vadd.f32 %v568, %v811
      %v813 = vpop.f32.mrf.mxu0
      %814 = vmatprep.mubr.bf16.mxu0 0
      %815 = vmatmul.mubr.bf16.gmra.mxu0 %v695
      %v816 = vpop.f32.mrf.mxu0
      %v817 = vadd.f32 %v568, %v816
      %v818 = vpop.f32.mrf.mxu0
      %v819 = vpop.f32.mrf.mxu0
      %v820 = vadd.f32 %v568, %v819
      %v821 = vpop.f32.mrf.mxu0
      %822 = vmatprep.mubr.bf16.mxu0 0
      %823 = vmatmul.mubr.bf16.gmra.mxu0 %v698
      %v824 = vpop.f32.mrf.mxu0
      %v825 = vadd.f32 %v568, %v824
      %v826 = vpop.f32.mrf.mxu0
      %v827 = vpop.f32.mrf.mxu0
      %v828 = vadd.f32 %v568, %v827
      %v829 = vpop.f32.mrf.mxu0
      %830 = vmatprep.mubr.bf16.mxu0 0
      %831 = vmatmul.mubr.bf16.gmra.mxu0 %v701
      %v832 = vpop.f32.mrf.mxu0
      %v833 = vadd.f32 %v568, %v832
      %v834 = vpop.f32.mrf.mxu0
      %v835 = vpop.f32.mrf.mxu0
      %v836 = vadd.f32 %v568, %v835
      %v837 = vpop.f32.mrf.mxu0
      %838 = vmatprep.mubr.bf16.mxu0 0
      %839 = vmatmul.mubr.bf16.gmra.mxu0 %v704
      %v840 = vpop.f32.mrf.mxu0
      %v841 = vadd.f32 %v568, %v840
      %v842 = vpop.f32.mrf.mxu0
      %v843 = vpop.f32.mrf.mxu0
      %v844 = vadd.f32 %v568, %v843
      %v845 = vpop.f32.mrf.mxu0
      %846 = vmatprep.mubr.bf16.mxu0 0
      %847 = vmatmul.mubr.bf16.gmra.mxu0 %v707
      %v848 = vpop.f32.mrf.mxu0
      %v849 = vadd.f32 %v568, %v848
      %v850 = vpop.f32.mrf.mxu0
      %v851 = vpop.f32.mrf.mxu0
      %v852 = vadd.f32 %v568, %v851
      %v853 = vpop.f32.mrf.mxu0
      %854 = vmatprep.mubr.bf16.mxu0 0
      %855 = vmatmul.mubr.bf16.gmra.mxu0 %v710
      %v856 = vpop.f32.mrf.mxu0
      %v857 = vadd.f32 %v568, %v856
      %v858 = vpop.f32.mrf.mxu0
      %v859 = vpop.f32.mrf.mxu0
      %v860 = vadd.f32 %v568, %v859
      %v861 = vpop.f32.mrf.mxu0
      %862 = vmatprep.mubr.bf16.mxu0 0
      %863 = vmatmul.mubr.bf16.gmra.mxu0 %v713
      %v864 = vpop.f32.mrf.mxu0
      %v865 = vadd.f32 %v568, %v864
      %v866 = vpop.f32.mrf.mxu0
      %v867 = vpop.f32.mrf.mxu0
      %v868 = vadd.f32 %v568, %v867
      %v869 = vpop.f32.mrf.mxu0
      %870 = vmatprep.mubr.bf16.mxu0 0
      %871 = vmatmul.mubr.bf16.gmra.mxu0 %v716
      %v872 = vpop.f32.mrf.mxu0
      %v873 = vadd.f32 %v568, %v872
      %v874 = vpop.f32.mrf.mxu0
      %v875 = vpop.f32.mrf.mxu0
      %v876 = vadd.f32 %v568, %v875
      %v877 = vpop.f32.mrf.mxu0
      %878 = vmatprep.mubr.bf16.mxu0 0
      %879 = vmatmul.mubr.bf16.gmra.mxu0 %v719
      %v880 = vpop.f32.mrf.mxu0
      %v881 = vadd.f32 %v568, %v880
      %v882 = vpop.f32.mrf.mxu0
      %v883 = vpop.f32.mrf.mxu0
      %v884 = vadd.f32 %v568, %v883
      %v885 = vpop.f32.mrf.mxu0
      %886 = vmatprep.mubr.bf16.mxu0 0
      %887 = vmatmul.mubr.bf16.gmra.mxu0 %v722
      %v888 = vpop.f32.mrf.mxu0
      %v889 = vadd.f32 %v568, %v888
      %v890 = vpop.f32.mrf.mxu0
      %v891 = vpop.f32.mrf.mxu0
      %v892 = vadd.f32 %v568, %v891
      %v893 = vpop.f32.mrf.mxu0
      %894 = vmatprep.mubr.bf16.mxu0 0
      %895 = vmatmul.mubr.bf16.gmra.mxu0 %v725
      %v896 = vpop.f32.mrf.mxu0
      %v897 = vadd.f32 %v568, %v896
      %v898 = vpop.f32.mrf.mxu0
      %v899 = vpop.f32.mrf.mxu0
      %v900 = vadd.f32 %v568, %v899
      %v901 = vpop.f32.mrf.mxu0
      %902 = vmatprep.mubr.bf16.mxu0 0
      %903 = vmatmul.mubr.bf16.gmra.mxu0 %v728
      %v904 = vpop.f32.mrf.mxu0
      %v905 = vadd.f32 %v568, %v904
      %v906 = vpop.f32.mrf.mxu0
      %v907 = vpop.f32.mrf.mxu0
      %v908 = vadd.f32 %v568, %v907
      %v909 = vpop.f32.mrf.mxu0
      %910 = vdwg.mxu0
      %912 = vset.pattern.permute.xlu0 0
      %913 = vperm.xlu0 %912, %v486
      %v914 = vpop.permute.xlu0 %913
      %917 = vset.pattern.permute.xlu0 0
      %918 = vperm.xlu0 %917, %v487
      %v919 = vpop.permute.xlu0 %918
      %922 = vset.pattern.permute.xlu0 0
      %923 = vperm.xlu0 %922, %v488
      %v924 = vpop.permute.xlu0 %923
      %927 = vset.pattern.permute.xlu0 0
      %928 = vperm.xlu0 %927, %v489
      %v929 = vpop.permute.xlu0 %928
      %932 = vset.pattern.permute.xlu0 0
      %933 = vperm.xlu0 %932, %v490
      %v934 = vpop.permute.xlu0 %933
      %937 = vset.pattern.permute.xlu0 0
      %938 = vperm.xlu0 %937, %v491
      %v939 = vpop.permute.xlu0 %938
      %942 = vset.pattern.permute.xlu0 0
      %943 = vperm.xlu0 %942, %v492
      %v944 = vpop.permute.xlu0 %943
      %947 = vset.pattern.permute.xlu0 0
      %948 = vperm.xlu0 %947, %v493
      %v949 = vpop.permute.xlu0 %948
      %952 = vset.pattern.permute.xlu0 0
      %953 = vperm.xlu0 %952, %v494
      %v954 = vpop.permute.xlu0 %953
      %957 = vset.pattern.permute.xlu0 0
      %958 = vperm.xlu0 %957, %v495
      %v959 = vpop.permute.xlu0 %958
      %962 = vset.pattern.permute.xlu0 0
      %963 = vperm.xlu0 %962, %v496
      %v964 = vpop.permute.xlu0 %963
      %967 = vset.pattern.permute.xlu0 0
      %968 = vperm.xlu0 %967, %v497
      %v969 = vpop.permute.xlu0 %968
      %972 = vset.pattern.permute.xlu0 0
      %973 = vperm.xlu0 %972, %v498
      %v974 = vpop.permute.xlu0 %973
      %977 = vset.pattern.permute.xlu0 0
      %978 = vperm.xlu0 %977, %v499
      %v979 = vpop.permute.xlu0 %978
      %982 = vset.pattern.permute.xlu0 0
      %983 = vperm.xlu0 %982, %v500
      %v984 = vpop.permute.xlu0 %983
      %987 = vset.pattern.permute.xlu0 0
      %988 = vperm.xlu0 %987, %v501
      %v989 = vpop.permute.xlu0 %988
      %992 = vset.pattern.permute.xlu0 0
      %993 = vperm.xlu0 %992, %v502
      %v994 = vpop.permute.xlu0 %993
      %997 = vset.pattern.permute.xlu0 0
      %998 = vperm.xlu0 %997, %v503
      %v999 = vpop.permute.xlu0 %998
      %1002 = vset.pattern.permute.xlu0 0
      %1003 = vperm.xlu0 %1002, %v504
      %v1004 = vpop.permute.xlu0 %1003
      %1007 = vset.pattern.permute.xlu0 0
      %1008 = vperm.xlu0 %1007, %v505
      %v1009 = vpop.permute.xlu0 %1008
      %1012 = vset.pattern.permute.xlu0 0
      %1013 = vperm.xlu0 %1012, %v506
      %v1014 = vpop.permute.xlu0 %1013
      %1017 = vset.pattern.permute.xlu0 0
      %1018 = vperm.xlu0 %1017, %v507
      %v1019 = vpop.permute.xlu0 %1018
      %1022 = vset.pattern.permute.xlu0 0
      %1023 = vperm.xlu0 %1022, %v508
      %v1024 = vpop.permute.xlu0 %1023
      %1027 = vset.pattern.permute.xlu0 0
      %1028 = vperm.xlu0 %1027, %v509
      %v1029 = vpop.permute.xlu0 %1028
      %1032 = vset.pattern.permute.xlu0 0
      %1033 = vperm.xlu0 %1032, %v510
      %v1034 = vpop.permute.xlu0 %1033
      %1037 = vset.pattern.permute.xlu0 0
      %1038 = vperm.xlu0 %1037, %v511
      %v1039 = vpop.permute.xlu0 %1038
      %1042 = vset.pattern.permute.xlu0 0
      %1043 = vperm.xlu0 %1042, %v512
      %v1044 = vpop.permute.xlu0 %1043
      %1047 = vset.pattern.permute.xlu0 0
      %1048 = vperm.xlu0 %1047, %v513
      %v1049 = vpop.permute.xlu0 %1048
      %1052 = vset.pattern.permute.xlu0 0
      %1053 = vperm.xlu0 %1052, %v514
      %v1054 = vpop.permute.xlu0 %1053
      %1057 = vset.pattern.permute.xlu0 0
      %1058 = vperm.xlu0 %1057, %v515
      %v1059 = vpop.permute.xlu0 %1058
      %1062 = vset.pattern.permute.xlu0 0
      %1063 = vperm.xlu0 %1062, %v516
      %v1064 = vpop.permute.xlu0 %1063
      %1067 = vset.pattern.permute.xlu0 0
      %1068 = vperm.xlu0 %1067, %v517
      %v1069 = vpop.permute.xlu0 %1068
      %1072 = vset.pattern.permute.xlu0 0
      %1073 = vperm.xlu0 %1072, %v518
      %v1074 = vpop.permute.xlu0 %1073
      %1077 = vset.pattern.permute.xlu0 0
      %1078 = vperm.xlu0 %1077, %v519
      %v1079 = vpop.permute.xlu0 %1078
      %1082 = vset.pattern.permute.xlu0 0
      %1083 = vperm.xlu0 %1082, %v520
      %v1084 = vpop.permute.xlu0 %1083
      %1087 = vset.pattern.permute.xlu0 0
      %1088 = vperm.xlu0 %1087, %v521
      %v1089 = vpop.permute.xlu0 %1088
      %v1091 = vmul.f32 %v769, %v914
      %v1092 = vmul.f32 %v772, %v919
      %v1093 = vmul.f32 %v777, %v924
      %v1094 = vmul.f32 %v780, %v929
      %v1095 = vmul.f32 %v785, %v934
      %v1096 = vmul.f32 %v788, %v939
      %v1097 = vmul.f32 %v793, %v944
      %v1098 = vmul.f32 %v796, %v949
      %v1099 = vmul.f32 %v801, %v954
      %v1100 = vmul.f32 %v804, %v959
      %v1101 = vmul.f32 %v809, %v964
      %v1102 = vmul.f32 %v812, %v969
      %v1103 = vmul.f32 %v817, %v974
      %v1104 = vmul.f32 %v820, %v979
      %v1105 = vmul.f32 %v825, %v984
      %v1106 = vmul.f32 %v828, %v989
      %v1107 = vmul.f32 %v833, %v994
      %v1108 = vmul.f32 %v836, %v999
      %v1109 = vmul.f32 %v841, %v1004
      %v1110 = vmul.f32 %v844, %v1009
      %v1111 = vmul.f32 %v849, %v1014
      %v1112 = vmul.f32 %v852, %v1019
      %v1113 = vmul.f32 %v857, %v1024
      %v1114 = vmul.f32 %v860, %v1029
      %v1115 = vmul.f32 %v865, %v1034
      %v1116 = vmul.f32 %v868, %v1039
      %v1117 = vmul.f32 %v873, %v1044
      %v1118 = vmul.f32 %v876, %v1049
      %v1119 = vmul.f32 %v881, %v1054
      %v1120 = vmul.f32 %v884, %v1059
      %v1121 = vmul.f32 %v889, %v1064
      %v1122 = vmul.f32 %v892, %v1069
      %v1123 = vmul.f32 %v897, %v1074
      %v1124 = vmul.f32 %v900, %v1079
      %v1125 = vmul.f32 %v905, %v1084
      %v1126 = vmul.f32 %v908, %v1089
      %v1127 = vld [vmem:[%s4] sm:$0x1]
      %v1128 = vld [vmem:[%s5] sm:$0x1]
      %v1129 = vld [vmem:[%s13] sm:$0xff]
      %v1130 = vld [vmem:[%s13 + $0x8] sm:$0xff]
      %v1131 = vld [vmem:[%s13 + $0x10] sm:$0xff]
      %v1132 = vld [vmem:[%s13 + $0x18] sm:$0xff]
      %vm1133 = vcmask 261120
      %v1134 = vsel %vm1133, %v1091, 0.0
      %v1135 = vsel %vm1133, %v1092, 0.0
      %v1136 = vadd.f32 %v1134, %v1135
      %v1137 = vsel %vm1133, %v1093, 0.0
      %v1138 = vadd.f32 %v1136, %v1137
      %v1139 = vsel %vm1133, %v1094, 0.0
      %v1140 = vadd.f32 %v1138, %v1139
      %v1141 = vsel %vm1133, %v1095, 0.0
      %v1142 = vadd.f32 %v1140, %v1141
      %v1143 = vsel %vm1133, %v1096, 0.0
      %v1144 = vadd.f32 %v1142, %v1143
      %v1145 = vsel %vm1133, %v1097, 0.0
      %v1146 = vadd.f32 %v1144, %v1145
      %v1147 = vsel %vm1133, %v1098, 0.0
      %v1148 = vadd.f32 %v1146, %v1147
      %v1149 = vsel %vm1133, %v1099, 0.0
      %v1150 = vadd.f32 %v1148, %v1149
      %v1151 = vsel %vm1133, %v1100, 0.0
      %v1152 = vadd.f32 %v1150, %v1151
      %v1153 = vsel %vm1133, %v1101, 0.0
      %v1154 = vadd.f32 %v1152, %v1153
      %v1155 = vsel %vm1133, %v1102, 0.0
      %v1156 = vadd.f32 %v1154, %v1155
      %v1157 = vsel %vm1133, %v1103, 0.0
      %v1158 = vadd.f32 %v1156, %v1157
      %v1159 = vsel %vm1133, %v1104, 0.0
      %v1160 = vadd.f32 %v1158, %v1159
      %v1161 = vsel %vm1133, %v1105, 0.0
      %v1162 = vadd.f32 %v1160, %v1161
      %v1163 = vsel %vm1133, %v1106, 0.0
      %v1164 = vadd.f32 %v1162, %v1163
      %v1165 = vsel %vm1133, %v1107, 0.0
      %v1166 = vadd.f32 %v1164, %v1165
      %v1167 = vsel %vm1133, %v1108, 0.0
      %v1168 = vadd.f32 %v1166, %v1167
      %v1169 = vsel %vm1133, %v1109, 0.0
      %v1170 = vadd.f32 %v1168, %v1169
      %v1171 = vsel %vm1133, %v1110, 0.0
      %v1172 = vadd.f32 %v1170, %v1171
      %v1173 = vsel %vm1133, %v1111, 0.0
      %v1174 = vadd.f32 %v1172, %v1173
      %v1175 = vsel %vm1133, %v1112, 0.0
      %v1176 = vadd.f32 %v1174, %v1175
      %v1177 = vsel %vm1133, %v1113, 0.0
      %v1178 = vadd.f32 %v1176, %v1177
      %v1179 = vsel %vm1133, %v1114, 0.0
      %v1180 = vadd.f32 %v1178, %v1179
      %v1181 = vsel %vm1133, %v1115, 0.0
      %v1182 = vadd.f32 %v1180, %v1181
      %v1183 = vsel %vm1133, %v1116, 0.0
      %v1184 = vadd.f32 %v1182, %v1183
      %v1185 = vsel %vm1133, %v1117, 0.0
      %v1186 = vadd.f32 %v1184, %v1185
      %v1187 = vsel %vm1133, %v1118, 0.0
      %v1188 = vadd.f32 %v1186, %v1187
      %v1189 = vsel %vm1133, %v1119, 0.0
      %v1190 = vadd.f32 %v1188, %v1189
      %v1191 = vsel %vm1133, %v1120, 0.0
      %v1192 = vadd.f32 %v1190, %v1191
      %v1193 = vsel %vm1133, %v1121, 0.0
      %v1194 = vadd.f32 %v1192, %v1193
      %v1195 = vsel %vm1133, %v1122, 0.0
      %v1196 = vadd.f32 %v1194, %v1195
      %v1197 = vsel %vm1133, %v1123, 0.0
      %v1198 = vadd.f32 %v1196, %v1197
      %v1199 = vsel %vm1133, %v1124, 0.0
      %v1200 = vadd.f32 %v1198, %v1199
      %v1201 = vsel %vm1133, %v1125, 0.0
      %v1202 = vadd.f32 %v1200, %v1201
      %v1203 = vsel %vm1133, %v1126, 0.0
      %v1204 = vadd.f32 %v1202, %v1203
      %v1205 = vrot.slane %v1204, 4
      %v1206 = vadd.f32 %v1204, %v1205
      %v1207 = vrot.slane %v1206, 2
      %v1208 = vadd.f32 %v1206, %v1207
      %v1209 = vrot.slane %v1208, 1
      %v1210 = vadd.f32 %v1208, %v1209
      %v1211 = vmul.f32 %v1091, %v1091
      %v1212 = vmul.f32 %v1092, %v1092
      %v1213 = vmul.f32 %v1093, %v1093
      %v1214 = vmul.f32 %v1094, %v1094
      %v1215 = vmul.f32 %v1095, %v1095
      %v1216 = vmul.f32 %v1096, %v1096
      %v1217 = vmul.f32 %v1097, %v1097
      %v1218 = vmul.f32 %v1098, %v1098
      %v1219 = vmul.f32 %v1099, %v1099
      %v1220 = vmul.f32 %v1100, %v1100
      %v1221 = vmul.f32 %v1101, %v1101
      %v1222 = vmul.f32 %v1102, %v1102
      %v1223 = vmul.f32 %v1103, %v1103
      %v1224 = vmul.f32 %v1104, %v1104
      %v1225 = vmul.f32 %v1105, %v1105
      %v1226 = vmul.f32 %v1106, %v1106
      %v1227 = vmul.f32 %v1107, %v1107
      %v1228 = vmul.f32 %v1108, %v1108
      %v1229 = vmul.f32 %v1109, %v1109
      %v1230 = vmul.f32 %v1110, %v1110
      %v1231 = vmul.f32 %v1111, %v1111
      %v1232 = vmul.f32 %v1112, %v1112
      %v1233 = vmul.f32 %v1113, %v1113
      %v1234 = vmul.f32 %v1114, %v1114
      %v1235 = vmul.f32 %v1115, %v1115
      %v1236 = vmul.f32 %v1116, %v1116
      %v1237 = vmul.f32 %v1117, %v1117
      %v1238 = vmul.f32 %v1118, %v1118
      %v1239 = vmul.f32 %v1119, %v1119
      %v1240 = vmul.f32 %v1120, %v1120
      %v1241 = vmul.f32 %v1121, %v1121
      %v1242 = vmul.f32 %v1122, %v1122
      %v1243 = vmul.f32 %v1123, %v1123
      %v1244 = vmul.f32 %v1124, %v1124
      %v1245 = vmul.f32 %v1125, %v1125
      %v1246 = vmul.f32 %v1126, %v1126
      %v1247 = vsel %vm1133, %v1211, 0.0
      %v1248 = vsel %vm1133, %v1212, 0.0
      %v1249 = vadd.f32 %v1247, %v1248
      %v1250 = vsel %vm1133, %v1213, 0.0
      %v1251 = vadd.f32 %v1249, %v1250
      %v1252 = vsel %vm1133, %v1214, 0.0
      %v1253 = vadd.f32 %v1251, %v1252
      %v1254 = vsel %vm1133, %v1215, 0.0
      %v1255 = vadd.f32 %v1253, %v1254
      %v1256 = vsel %vm1133, %v1216, 0.0
      %v1257 = vadd.f32 %v1255, %v1256
      %v1258 = vsel %vm1133, %v1217, 0.0
      %v1259 = vadd.f32 %v1257, %v1258
      %v1260 = vsel %vm1133, %v1218, 0.0
      %v1261 = vadd.f32 %v1259, %v1260
      %v1262 = vsel %vm1133, %v1219, 0.0
      %v1263 = vadd.f32 %v1261, %v1262
      %v1264 = vsel %vm1133, %v1220, 0.0
      %v1265 = vadd.f32 %v1263, %v1264
      %v1266 = vsel %vm1133, %v1221, 0.0
      %v1267 = vadd.f32 %v1265, %v1266
      %v1268 = vsel %vm1133, %v1222, 0.0
      %v1269 = vadd.f32 %v1267, %v1268
      %v1270 = vsel %vm1133, %v1223, 0.0
      %v1271 = vadd.f32 %v1269, %v1270
      %v1272 = vsel %vm1133, %v1224, 0.0
      %v1273 = vadd.f32 %v1271, %v1272
      %v1274 = vsel %vm1133, %v1225, 0.0
      %v1275 = vadd.f32 %v1273, %v1274
      %v1276 = vsel %vm1133, %v1226, 0.0
      %v1277 = vadd.f32 %v1275, %v1276
      %v1278 = vsel %vm1133, %v1227, 0.0
      %v1279 = vadd.f32 %v1277, %v1278
      %v1280 = vsel %vm1133, %v1228, 0.0
      %v1281 = vadd.f32 %v1279, %v1280
      %v1282 = vsel %vm1133, %v1229, 0.0
      %v1283 = vadd.f32 %v1281, %v1282
      %v1284 = vsel %vm1133, %v1230, 0.0
      %v1285 = vadd.f32 %v1283, %v1284
      %v1286 = vsel %vm1133, %v1231, 0.0
      %v1287 = vadd.f32 %v1285, %v1286
      %v1288 = vsel %vm1133, %v1232, 0.0
      %v1289 = vadd.f32 %v1287, %v1288
      %v1290 = vsel %vm1133, %v1233, 0.0
      %v1291 = vadd.f32 %v1289, %v1290
      %v1292 = vsel %vm1133, %v1234, 0.0
      %v1293 = vadd.f32 %v1291, %v1292
      %v1294 = vsel %vm1133, %v1235, 0.0
      %v1295 = vadd.f32 %v1293, %v1294
      %v1296 = vsel %vm1133, %v1236, 0.0
      %v1297 = vadd.f32 %v1295, %v1296
      %v1298 = vsel %vm1133, %v1237, 0.0
      %v1299 = vadd.f32 %v1297, %v1298
      %v1300 = vsel %vm1133, %v1238, 0.0
      %v1301 = vadd.f32 %v1299, %v1300
      %v1302 = vsel %vm1133, %v1239, 0.0
      %v1303 = vadd.f32 %v1301, %v1302
      %v1304 = vsel %vm1133, %v1240, 0.0
      %v1305 = vadd.f32 %v1303, %v1304
      %v1306 = vsel %vm1133, %v1241, 0.0
      %v1307 = vadd.f32 %v1305, %v1306
      %v1308 = vsel %vm1133, %v1242, 0.0
      %v1309 = vadd.f32 %v1307, %v1308
      %v1310 = vsel %vm1133, %v1243, 0.0
      %v1311 = vadd.f32 %v1309, %v1310
      %v1312 = vsel %vm1133, %v1244, 0.0
      %v1313 = vadd.f32 %v1311, %v1312
      %v1314 = vsel %vm1133, %v1245, 0.0
      %v1315 = vadd.f32 %v1313, %v1314
      %v1316 = vsel %vm1133, %v1246, 0.0
      %v1317 = vadd.f32 %v1315, %v1316
      %v1318 = vrot.slane %v1317, 4
      %v1319 = vadd.f32 %v1317, %v1318
      %v1320 = vrot.slane %v1319, 2
      %v1321 = vadd.f32 %v1319, %v1320
      %v1322 = vrot.slane %v1321, 1
      %v1323 = vadd.f32 %v1321, %v1322
      %vm1324 = vcmask 1040384
      %v1325 = vsel %vm1324, %v1210, %v1323
      %v1327 = vsel %vm1133, %v1325, 0
      %1329 = vmatprep.subr.mxu0 0.0
      %1330 = vmatpush1.msra.mxu0 0.0
      %1331 = vmatprep.subr.mxu0 0.0
      %1332 = vmatpush1.msra.mxu0 0.0
      %1333 = vmatprep.subr.mxu0 0.0
      %1334 = vmatpush1.msra.mxu0 0.0
      %1335 = vmatprep.subr.mxu0 0.0
      %1336 = vmatpush1.msra.mxu0 0.0
      %1337 = vmatprep.subr.mxu0 0.0
      %1338 = vmatpush1.msra.mxu0 0.0
      %1339 = vmatprep.subr.mxu0 0.0
      %1340 = vmatpush1.msra.mxu0 0.0
      %1341 = vmatprep.subr.mxu0 0.0
      %1342 = vmatpush1.msra.mxu0 0.0
      %1343 = vmatprep.subr.mxu0 0.0
      %1344 = vmatpush1.msra.mxu0 0.0
      %1345 = vmatprep.subr.mxu0 0.0
      %1346 = vmatpush1.msra.mxu0 0.0
      %1347 = vmatprep.subr.mxu0 0.0
      %1348 = vmatpush1.msra.mxu0 0.0
      %1349 = vmatprep.subr.mxu0 0.0
      %1350 = vmatpush1.msra.mxu0 0.0
      %1351 = vmatprep.subr.mxu0 0.0
      %1352 = vmatpush1.msra.mxu0 0.0
      %1353 = vmatprep.subr.mxu0 0.0
      %1354 = vmatpush1.msra.mxu0 %v1132
      %1355 = vmatprep.subr.mxu0 0.0
      %1356 = vmatpush1.msra.mxu0 %v1131
      %1357 = vmatprep.subr.mxu0 0.0
      %1358 = vmatpush1.msra.mxu0 %v1130
      %1359 = vmatprep.subr.mxu0 0.0
      %1360 = vmatpush1.msra.mxu0 %v1129
      %1361 = vmatprep.subr.mxu0 0.0
      %1362 = vmatpush2.msra.mxu0 0.0
      %1363 = vmatprep.subr.mxu0 0.0
      %1364 = vmatpush2.msra.mxu0 0.0
      %1365 = vmatprep.subr.mxu0 0.0
      %1366 = vmatpush2.msra.mxu0 0.0
      %1367 = vmatprep.subr.mxu0 0.0
      %1368 = vmatpush2.msra.mxu0 0.0
      %1369 = vmatprep.subr.mxu0 0.0
      %1370 = vmatpush2.msra.mxu0 0.0
      %1371 = vmatprep.subr.mxu0 0.0
      %1372 = vmatpush2.msra.mxu0 0.0
      %1373 = vmatprep.subr.mxu0 0.0
      %1374 = vmatpush2.msra.mxu0 0.0
      %1375 = vmatprep.subr.mxu0 0.0
      %1376 = vmatpush2.msra.mxu0 0.0
      %1377 = vmatprep.subr.mxu0 0.0
      %1378 = vmatpush2.msra.mxu0 0.0
      %1379 = vmatprep.subr.mxu0 0.0
      %1380 = vmatpush2.msra.mxu0 0.0
      %1381 = vmatprep.subr.mxu0 0.0
      %1382 = vmatpush2.msra.mxu0 0.0
      %1383 = vmatprep.subr.mxu0 0.0
      %1384 = vmatpush2.msra.mxu0 0.0
      %1385 = vmatprep.subr.mxu0 0.0
      %1386 = vmatpush2.msra.mxu0 0.0
      %1387 = vmatprep.subr.mxu0 0.0
      %1388 = vmatpush2.msra.mxu0 0.0
      %1389 = vmatprep.subr.mxu0 0.0
      %1390 = vmatpush2.msra.mxu0 0.0
      %1391 = vmatprep.subr.mxu0 0.0
      %1392 = vmatpush2.msra.mxu0 0.0
      %1393 = vmatprep.mubr.f32.mxu0 0.0
      %1394 = vmatmul.mubr.f32.gmra.mxu0 %v1327
      %v1395 = vpop.f32.mrf.mxu0
      %v1396 = vadd.f32 0.0, %v1395
      %v1397 = vpop.f32.mrf.mxu0
      %1398 = vdwg.mxu0
      %v1399 = vmul.f32 %v1396, %v1396
      %v1401 = vrot.slane %v1399, 7
      %v1403 = vsub.f32 %v1396, %v1401
      %v1404 = vmax.f32 %v1403, 0.0
      %v1405 = vlaneseq
      %v1406 = vshrl.u32 %v1405, 7
      %v1407 = vsub.s32 0, %v1406
      %v1408 = vrot.slane %v1396, %v1407
      %v1409 = vsub.f32 %v1091, %v1408
      %v1410 = vsub.f32 %v1092, %v1408
      %v1411 = vsub.f32 %v1093, %v1408
      %v1412 = vsub.f32 %v1094, %v1408
      %v1413 = vsub.f32 %v1095, %v1408
      %v1414 = vsub.f32 %v1096, %v1408
      %v1415 = vsub.f32 %v1097, %v1408
      %v1416 = vsub.f32 %v1098, %v1408
      %v1417 = vsub.f32 %v1099, %v1408
      %v1418 = vsub.f32 %v1100, %v1408
      %v1419 = vsub.f32 %v1101, %v1408
      %v1420 = vsub.f32 %v1102, %v1408
      %v1421 = vsub.f32 %v1103, %v1408
      %v1422 = vsub.f32 %v1104, %v1408
      %v1423 = vsub.f32 %v1105, %v1408
      %v1424 = vsub.f32 %v1106, %v1408
      %v1425 = vsub.f32 %v1107, %v1408
      %v1426 = vsub.f32 %v1108, %v1408
      %v1427 = vsub.f32 %v1109, %v1408
      %v1428 = vsub.f32 %v1110, %v1408
      %v1429 = vsub.f32 %v1111, %v1408
      %v1430 = vsub.f32 %v1112, %v1408
      %v1431 = vsub.f32 %v1113, %v1408
      %v1432 = vsub.f32 %v1114, %v1408
      %v1433 = vsub.f32 %v1115, %v1408
      %v1434 = vsub.f32 %v1116, %v1408
      %v1435 = vsub.f32 %v1117, %v1408
      %v1436 = vsub.f32 %v1118, %v1408
      %v1437 = vsub.f32 %v1119, %v1408
      %v1438 = vsub.f32 %v1120, %v1408
      %v1439 = vsub.f32 %v1121, %v1408
      %v1440 = vsub.f32 %v1122, %v1408
      %v1441 = vsub.f32 %v1123, %v1408
      %v1442 = vsub.f32 %v1124, %v1408
      %v1443 = vsub.f32 %v1125, %v1408
      %v1444 = vsub.f32 %v1126, %v1408
      %v1445 = vadd.f32 %v1404, 1e-05
      %v1446 = vrsqrt.pop %v1445
      %v1447 = vlaneseq
      %v1448 = vshrl.u32 %v1447, 7
      %v1449 = vsub.s32 1, %v1448
      %v1450 = vrot.slane %v1446, %v1449
      %v1451 = vmul.f32 %v1409, %v1450
      %v1452 = vmul.f32 %v1410, %v1450
      %v1453 = vmul.f32 %v1411, %v1450
      %v1454 = vmul.f32 %v1412, %v1450
      %v1455 = vmul.f32 %v1413, %v1450
      %v1456 = vmul.f32 %v1414, %v1450
      %v1457 = vmul.f32 %v1415, %v1450
      %v1458 = vmul.f32 %v1416, %v1450
      %v1459 = vmul.f32 %v1417, %v1450
      %v1460 = vmul.f32 %v1418, %v1450
      %v1461 = vmul.f32 %v1419, %v1450
      %v1462 = vmul.f32 %v1420, %v1450
      %v1463 = vmul.f32 %v1421, %v1450
      %v1464 = vmul.f32 %v1422, %v1450
      %v1465 = vmul.f32 %v1423, %v1450
      %v1466 = vmul.f32 %v1424, %v1450
      %v1467 = vmul.f32 %v1425, %v1450
      %v1468 = vmul.f32 %v1426, %v1450
      %v1469 = vmul.f32 %v1427, %v1450
      %v1470 = vmul.f32 %v1428, %v1450
      %v1471 = vmul.f32 %v1429, %v1450
      %v1472 = vmul.f32 %v1430, %v1450
      %v1473 = vmul.f32 %v1431, %v1450
      %v1474 = vmul.f32 %v1432, %v1450
      %v1475 = vmul.f32 %v1433, %v1450
      %v1476 = vmul.f32 %v1434, %v1450
      %v1477 = vmul.f32 %v1435, %v1450
      %v1478 = vmul.f32 %v1436, %v1450
      %v1479 = vmul.f32 %v1437, %v1450
      %v1480 = vmul.f32 %v1438, %v1450
      %v1481 = vmul.f32 %v1439, %v1450
      %v1482 = vmul.f32 %v1440, %v1450
      %v1483 = vmul.f32 %v1441, %v1450
      %v1484 = vmul.f32 %v1442, %v1450
      %v1485 = vmul.f32 %v1443, %v1450
      %v1486 = vmul.f32 %v1444, %v1450
      %v1488 = vlaneseq
      %v1489 = vshrl.u32 %v1488, 7
      %v1490 = vsub.s32 0, %v1489
      %v1491 = vrot.slane %v1127, %v1490
      %v1493 = vmul.f32 %v1451, %v1491
      %v1494 = vmul.f32 %v1452, %v1491
      %v1495 = vmul.f32 %v1453, %v1491
      %v1496 = vmul.f32 %v1454, %v1491
      %v1497 = vmul.f32 %v1455, %v1491
      %v1498 = vmul.f32 %v1456, %v1491
      %v1499 = vmul.f32 %v1457, %v1491
      %v1500 = vmul.f32 %v1458, %v1491
      %v1501 = vmul.f32 %v1459, %v1491
      %v1502 = vmul.f32 %v1460, %v1491
      %v1503 = vmul.f32 %v1461, %v1491
      %v1504 = vmul.f32 %v1462, %v1491
      %v1505 = vmul.f32 %v1463, %v1491
      %v1506 = vmul.f32 %v1464, %v1491
      %v1507 = vmul.f32 %v1465, %v1491
      %v1508 = vmul.f32 %v1466, %v1491
      %v1509 = vmul.f32 %v1467, %v1491
      %v1510 = vmul.f32 %v1468, %v1491
      %v1511 = vmul.f32 %v1469, %v1491
      %v1512 = vmul.f32 %v1470, %v1491
      %v1513 = vmul.f32 %v1471, %v1491
      %v1514 = vmul.f32 %v1472, %v1491
      %v1515 = vmul.f32 %v1473, %v1491
      %v1516 = vmul.f32 %v1474, %v1491
      %v1517 = vmul.f32 %v1475, %v1491
      %v1518 = vmul.f32 %v1476, %v1491
      %v1519 = vmul.f32 %v1477, %v1491
      %v1520 = vmul.f32 %v1478, %v1491
      %v1521 = vmul.f32 %v1479, %v1491
      %v1522 = vmul.f32 %v1480, %v1491
      %v1523 = vmul.f32 %v1481, %v1491
      %v1524 = vmul.f32 %v1482, %v1491
      %v1525 = vmul.f32 %v1483, %v1491
      %v1526 = vmul.f32 %v1484, %v1491
      %v1527 = vmul.f32 %v1485, %v1491
      %v1528 = vmul.f32 %v1486, %v1491
      %v1530 = vlaneseq
      %v1531 = vshrl.u32 %v1530, 7
      %v1532 = vsub.s32 0, %v1531
      %v1533 = vrot.slane %v1128, %v1532
      %v1535 = vadd.f32 %v1493, %v1533
      %v1536 = vadd.f32 %v1494, %v1533
      %v1537 = vadd.f32 %v1495, %v1533
      %v1538 = vadd.f32 %v1496, %v1533
      %v1539 = vadd.f32 %v1497, %v1533
      %v1540 = vadd.f32 %v1498, %v1533
      %v1541 = vadd.f32 %v1499, %v1533
      %v1542 = vadd.f32 %v1500, %v1533
      %v1543 = vadd.f32 %v1501, %v1533
      %v1544 = vadd.f32 %v1502, %v1533
      %v1545 = vadd.f32 %v1503, %v1533
      %v1546 = vadd.f32 %v1504, %v1533
      %v1547 = vadd.f32 %v1505, %v1533
      %v1548 = vadd.f32 %v1506, %v1533
      %v1549 = vadd.f32 %v1507, %v1533
      %v1550 = vadd.f32 %v1508, %v1533
      %v1551 = vadd.f32 %v1509, %v1533
      %v1552 = vadd.f32 %v1510, %v1533
      %v1553 = vadd.f32 %v1511, %v1533
      %v1554 = vadd.f32 %v1512, %v1533
      %v1555 = vadd.f32 %v1513, %v1533
      %v1556 = vadd.f32 %v1514, %v1533
      %v1557 = vadd.f32 %v1515, %v1533
      %v1558 = vadd.f32 %v1516, %v1533
      %v1559 = vadd.f32 %v1517, %v1533
      %v1560 = vadd.f32 %v1518, %v1533
      %v1561 = vadd.f32 %v1519, %v1533
      %v1562 = vadd.f32 %v1520, %v1533
      %v1563 = vadd.f32 %v1521, %v1533
      %v1564 = vadd.f32 %v1522, %v1533
      %v1565 = vadd.f32 %v1523, %v1533
      %v1566 = vadd.f32 %v1524, %v1533
      %v1567 = vadd.f32 %v1525, %v1533
      %v1568 = vadd.f32 %v1526, %v1533
      %v1569 = vadd.f32 %v1527, %v1533
      %v1570 = vadd.f32 %v1528, %v1533
      %v1571 = vsub.f32 0.0, %v1535
      %v1572 = vsub.f32 0.0, %v1536
      %v1573 = vsub.f32 0.0, %v1537
      %v1574 = vsub.f32 0.0, %v1538
      %v1575 = vsub.f32 0.0, %v1539
      %v1576 = vsub.f32 0.0, %v1540
      %v1577 = vsub.f32 0.0, %v1541
      %v1578 = vsub.f32 0.0, %v1542
      %v1579 = vsub.f32 0.0, %v1543
      %v1580 = vsub.f32 0.0, %v1544
      %v1581 = vsub.f32 0.0, %v1545
      %v1582 = vsub.f32 0.0, %v1546
      %v1583 = vsub.f32 0.0, %v1547
      %v1584 = vsub.f32 0.0, %v1548
      %v1585 = vsub.f32 0.0, %v1549
      %v1586 = vsub.f32 0.0, %v1550
      %v1587 = vsub.f32 0.0, %v1551
      %v1588 = vsub.f32 0.0, %v1552
      %v1589 = vsub.f32 0.0, %v1553
      %v1590 = vsub.f32 0.0, %v1554
      %v1591 = vsub.f32 0.0, %v1555
      %v1592 = vsub.f32 0.0, %v1556
      %v1593 = vsub.f32 0.0, %v1557
      %v1594 = vsub.f32 0.0, %v1558
      %v1595 = vsub.f32 0.0, %v1559
      %v1596 = vsub.f32 0.0, %v1560
      %v1597 = vsub.f32 0.0, %v1561
      %v1598 = vsub.f32 0.0, %v1562
      %v1599 = vsub.f32 0.0, %v1563
      %v1600 = vsub.f32 0.0, %v1564
      %v1601 = vsub.f32 0.0, %v1565
      %v1602 = vsub.f32 0.0, %v1566
      %v1603 = vsub.f32 0.0, %v1567
      %v1604 = vsub.f32 0.0, %v1568
      %v1605 = vsub.f32 0.0, %v1569
      %v1606 = vsub.f32 0.0, %v1570
      %v1607 = vmul.f32 %v1571, 1.442695
      %v1608 = vpow.pop %v1607
      %v1609 = vmul.f32 %v1572, 1.442695
      %v1610 = vpow.pop %v1609
      %v1611 = vmul.f32 %v1573, 1.442695
      %v1612 = vpow.pop %v1611
      %v1613 = vmul.f32 %v1574, 1.442695
      %v1614 = vpow.pop %v1613
      %v1615 = vmul.f32 %v1575, 1.442695
      %v1616 = vpow.pop %v1615
      %v1617 = vmul.f32 %v1576, 1.442695
      %v1618 = vpow.pop %v1617
      %v1619 = vmul.f32 %v1577, 1.442695
      %v1620 = vpow.pop %v1619
      %v1621 = vmul.f32 %v1578, 1.442695
      %v1622 = vpow.pop %v1621
      %v1623 = vmul.f32 %v1579, 1.442695
      %v1624 = vpow.pop %v1623
      %v1625 = vmul.f32 %v1580, 1.442695
      %v1626 = vpow.pop %v1625
      %v1627 = vmul.f32 %v1581, 1.442695
      %v1628 = vpow.pop %v1627
      %v1629 = vmul.f32 %v1582, 1.442695
      %v1630 = vpow.pop %v1629
      %v1631 = vmul.f32 %v1583, 1.442695
      %v1632 = vpow.pop %v1631
      %v1633 = vmul.f32 %v1584, 1.442695
      %v1634 = vpow.pop %v1633
      %v1635 = vmul.f32 %v1585, 1.442695
      %v1636 = vpow.pop %v1635
      %v1637 = vmul.f32 %v1586, 1.442695
      %v1638 = vpow.pop %v1637
      %v1639 = vmul.f32 %v1587, 1.442695
      %v1640 = vpow.pop %v1639
      %v1641 = vmul.f32 %v1588, 1.442695
      %v1642 = vpow.pop %v1641
      %v1643 = vmul.f32 %v1589, 1.442695
      %v1644 = vpow.pop %v1643
      %v1645 = vmul.f32 %v1590, 1.442695
      %v1646 = vpow.pop %v1645
      %v1647 = vmul.f32 %v1591, 1.442695
      %v1648 = vpow.pop %v1647
      %v1649 = vmul.f32 %v1592, 1.442695
      %v1650 = vpow.pop %v1649
      %v1651 = vmul.f32 %v1593, 1.442695
      %v1652 = vpow.pop %v1651
      %v1653 = vmul.f32 %v1594, 1.442695
      %v1654 = vpow.pop %v1653
      %v1655 = vmul.f32 %v1595, 1.442695
      %v1656 = vpow.pop %v1655
      %v1657 = vmul.f32 %v1596, 1.442695
      %v1658 = vpow.pop %v1657
      %v1659 = vmul.f32 %v1597, 1.442695
      %v1660 = vpow.pop %v1659
      %v1661 = vmul.f32 %v1598, 1.442695
      %v1662 = vpow.pop %v1661
      %v1663 = vmul.f32 %v1599, 1.442695
      %v1664 = vpow.pop %v1663
      %v1665 = vmul.f32 %v1600, 1.442695
      %v1666 = vpow.pop %v1665
      %v1667 = vmul.f32 %v1601, 1.442695
      %v1668 = vpow.pop %v1667
      %v1669 = vmul.f32 %v1602, 1.442695
      %v1670 = vpow.pop %v1669
      %v1671 = vmul.f32 %v1603, 1.442695
      %v1672 = vpow.pop %v1671
      %v1673 = vmul.f32 %v1604, 1.442695
      %v1674 = vpow.pop %v1673
      %v1675 = vmul.f32 %v1605, 1.442695
      %v1676 = vpow.pop %v1675
      %v1677 = vmul.f32 %v1606, 1.442695
      %v1678 = vpow.pop %v1677
      %v1679 = vadd.f32 %v1608, 1.0
      %v1680 = vadd.f32 %v1610, 1.0
      %v1681 = vadd.f32 %v1612, 1.0
      %v1682 = vadd.f32 %v1614, 1.0
      %v1683 = vadd.f32 %v1616, 1.0
      %v1684 = vadd.f32 %v1618, 1.0
      %v1685 = vadd.f32 %v1620, 1.0
      %v1686 = vadd.f32 %v1622, 1.0
      %v1687 = vadd.f32 %v1624, 1.0
      %v1688 = vadd.f32 %v1626, 1.0
      %v1689 = vadd.f32 %v1628, 1.0
      %v1690 = vadd.f32 %v1630, 1.0
      %v1691 = vadd.f32 %v1632, 1.0
      %v1692 = vadd.f32 %v1634, 1.0
      %v1693 = vadd.f32 %v1636, 1.0
      %v1694 = vadd.f32 %v1638, 1.0
      %v1695 = vadd.f32 %v1640, 1.0
      %v1696 = vadd.f32 %v1642, 1.0
      %v1697 = vadd.f32 %v1644, 1.0
      %v1698 = vadd.f32 %v1646, 1.0
      %v1699 = vadd.f32 %v1648, 1.0
      %v1700 = vadd.f32 %v1650, 1.0
      %v1701 = vadd.f32 %v1652, 1.0
      %v1702 = vadd.f32 %v1654, 1.0
      %v1703 = vadd.f32 %v1656, 1.0
      %v1704 = vadd.f32 %v1658, 1.0
      %v1705 = vadd.f32 %v1660, 1.0
      %v1706 = vadd.f32 %v1662, 1.0
      %v1707 = vadd.f32 %v1664, 1.0
      %v1708 = vadd.f32 %v1666, 1.0
      %v1709 = vadd.f32 %v1668, 1.0
      %v1710 = vadd.f32 %v1670, 1.0
      %v1711 = vadd.f32 %v1672, 1.0
      %v1712 = vadd.f32 %v1674, 1.0
      %v1713 = vadd.f32 %v1676, 1.0
      %v1714 = vadd.f32 %v1678, 1.0
      %v1715 = vrcp.pop %v1679
      %v1716 = vrcp.pop %v1680
      %v1717 = vrcp.pop %v1681
      %v1718 = vrcp.pop %v1682
      %v1719 = vrcp.pop %v1683
      %v1720 = vrcp.pop %v1684
      %v1721 = vrcp.pop %v1685
      %v1722 = vrcp.pop %v1686
      %v1723 = vrcp.pop %v1687
      %v1724 = vrcp.pop %v1688
      %v1725 = vrcp.pop %v1689
      %v1726 = vrcp.pop %v1690
      %v1727 = vrcp.pop %v1691
      %v1728 = vrcp.pop %v1692
      %v1729 = vrcp.pop %v1693
      %v1730 = vrcp.pop %v1694
      %v1731 = vrcp.pop %v1695
      %v1732 = vrcp.pop %v1696
      %v1733 = vrcp.pop %v1697
      %v1734 = vrcp.pop %v1698
      %v1735 = vrcp.pop %v1699
      %v1736 = vrcp.pop %v1700
      %v1737 = vrcp.pop %v1701
      %v1738 = vrcp.pop %v1702
      %v1739 = vrcp.pop %v1703
      %v1740 = vrcp.pop %v1704
      %v1741 = vrcp.pop %v1705
      %v1742 = vrcp.pop %v1706
      %v1743 = vrcp.pop %v1707
      %v1744 = vrcp.pop %v1708
      %v1745 = vrcp.pop %v1709
      %v1746 = vrcp.pop %v1710
      %v1747 = vrcp.pop %v1711
      %v1748 = vrcp.pop %v1712
      %v1749 = vrcp.pop %v1713
      %v1750 = vrcp.pop %v1714
      %v1751 = vmul.f32 %v1535, %v1715
      %v1752 = vmul.f32 %v1536, %v1716
      %v1753 = vmul.f32 %v1537, %v1717
      %v1754 = vmul.f32 %v1538, %v1718
      %v1755 = vmul.f32 %v1539, %v1719
      %v1756 = vmul.f32 %v1540, %v1720
      %v1757 = vmul.f32 %v1541, %v1721
      %v1758 = vmul.f32 %v1542, %v1722
      %v1759 = vmul.f32 %v1543, %v1723
      %v1760 = vmul.f32 %v1544, %v1724
      %v1761 = vmul.f32 %v1545, %v1725
      %v1762 = vmul.f32 %v1546, %v1726
      %v1763 = vmul.f32 %v1547, %v1727
      %v1764 = vmul.f32 %v1548, %v1728
      %v1765 = vmul.f32 %v1549, %v1729
      %v1766 = vmul.f32 %v1550, %v1730
      %v1767 = vmul.f32 %v1551, %v1731
      %v1768 = vmul.f32 %v1552, %v1732
      %v1769 = vmul.f32 %v1553, %v1733
      %v1770 = vmul.f32 %v1554, %v1734
      %v1771 = vmul.f32 %v1555, %v1735
      %v1772 = vmul.f32 %v1556, %v1736
      %v1773 = vmul.f32 %v1557, %v1737
      %v1774 = vmul.f32 %v1558, %v1738
      %v1775 = vmul.f32 %v1559, %v1739
      %v1776 = vmul.f32 %v1560, %v1740
      %v1777 = vmul.f32 %v1561, %v1741
      %v1778 = vmul.f32 %v1562, %v1742
      %v1779 = vmul.f32 %v1563, %v1743
      %v1780 = vmul.f32 %v1564, %v1744
      %v1781 = vmul.f32 %v1565, %v1745
      %v1782 = vmul.f32 %v1566, %v1746
      %v1783 = vmul.f32 %v1567, %v1747
      %v1784 = vmul.f32 %v1568, %v1748
      %v1785 = vmul.f32 %v1569, %v1749
      %v1786 = vmul.f32 %v1570, %v1750
      %v1787 = vld [vmem:[%s478] sm:$0x1]
      %v1789 = vlaneseq
      %v1790 = vshrl.u32 %v1789, 7
      %v1791 = vsub.s32 0, %v1790
      %v1792 = vrot.slane %v1787, %v1791
      %v1794 = vadd.f32 %v1751, %v1792
      %v1795 = vadd.f32 %v1752, %v1792
      %v1796 = vadd.f32 %v1753, %v1792
      %v1797 = vadd.f32 %v1754, %v1792
      %v1798 = vadd.f32 %v1755, %v1792
      %v1799 = vadd.f32 %v1756, %v1792
      %v1800 = vadd.f32 %v1757, %v1792
      %v1801 = vadd.f32 %v1758, %v1792
      %v1802 = vadd.f32 %v1759, %v1792
      %v1803 = vadd.f32 %v1760, %v1792
      %v1804 = vadd.f32 %v1761, %v1792
      %v1805 = vadd.f32 %v1762, %v1792
      %v1806 = vadd.f32 %v1763, %v1792
      %v1807 = vadd.f32 %v1764, %v1792
      %v1808 = vadd.f32 %v1765, %v1792
      %v1809 = vadd.f32 %v1766, %v1792
      %v1810 = vadd.f32 %v1767, %v1792
      %v1811 = vadd.f32 %v1768, %v1792
      %v1812 = vadd.f32 %v1769, %v1792
      %v1813 = vadd.f32 %v1770, %v1792
      %v1814 = vadd.f32 %v1771, %v1792
      %v1815 = vadd.f32 %v1772, %v1792
      %v1816 = vadd.f32 %v1773, %v1792
      %v1817 = vadd.f32 %v1774, %v1792
      %v1818 = vadd.f32 %v1775, %v1792
      %v1819 = vadd.f32 %v1776, %v1792
      %v1820 = vadd.f32 %v1777, %v1792
      %v1821 = vadd.f32 %v1778, %v1792
      %v1822 = vadd.f32 %v1779, %v1792
      %v1823 = vadd.f32 %v1780, %v1792
      %v1824 = vadd.f32 %v1781, %v1792
      %v1825 = vadd.f32 %v1782, %v1792
      %v1826 = vadd.f32 %v1783, %v1792
      %v1827 = vadd.f32 %v1784, %v1792
      %v1828 = vadd.f32 %v1785, %v1792
      %v1829 = vadd.f32 %v1786, %v1792
      %v1830 = vmul.f32 %v1794, %v914
      %v1831 = vmul.f32 %v1795, %v919
      %v1832 = vmul.f32 %v1796, %v924
      %v1833 = vmul.f32 %v1797, %v929
      %v1834 = vmul.f32 %v1798, %v934
      %v1835 = vmul.f32 %v1799, %v939
      %v1836 = vmul.f32 %v1800, %v944
      %v1837 = vmul.f32 %v1801, %v949
      %v1838 = vmul.f32 %v1802, %v954
      %v1839 = vmul.f32 %v1803, %v959
      %v1840 = vmul.f32 %v1804, %v964
      %v1841 = vmul.f32 %v1805, %v969
      %v1842 = vmul.f32 %v1806, %v974
      %v1843 = vmul.f32 %v1807, %v979
      %v1844 = vmul.f32 %v1808, %v984
      %v1845 = vmul.f32 %v1809, %v989
      %v1846 = vmul.f32 %v1810, %v994
      %v1847 = vmul.f32 %v1811, %v999
      %v1848 = vmul.f32 %v1812, %v1004
      %v1849 = vmul.f32 %v1813, %v1009
      %v1850 = vmul.f32 %v1814, %v1014
      %v1851 = vmul.f32 %v1815, %v1019
      %v1852 = vmul.f32 %v1816, %v1024
      %v1853 = vmul.f32 %v1817, %v1029
      %v1854 = vmul.f32 %v1818, %v1034
      %v1855 = vmul.f32 %v1819, %v1039
      %v1856 = vmul.f32 %v1820, %v1044
      %v1857 = vmul.f32 %v1821, %v1049
      %v1858 = vmul.f32 %v1822, %v1054
      %v1859 = vmul.f32 %v1823, %v1059
      %v1860 = vmul.f32 %v1824, %v1064
      %v1861 = vmul.f32 %v1825, %v1069
      %v1862 = vmul.f32 %v1826, %v1074
      %v1863 = vmul.f32 %v1827, %v1079
      %v1864 = vmul.f32 %v1828, %v1084
      %v1865 = vmul.f32 %v1829, %v1089
      %1866 = vst.msk [vmem:[#allocation2] sm:$0xff] %vm1133, %v1830
      %1867 = vst.msk [vmem:[#allocation2 + $0x18] sm:$0xff] %vm1133, %v1831
      %1868 = vst.msk [vmem:[#allocation2 + $0x30] sm:$0xff] %vm1133, %v1832
      %1869 = vst.msk [vmem:[#allocation2 + $0x48] sm:$0xff] %vm1133, %v1833
      %1870 = vst.msk [vmem:[#allocation2 + $0x60] sm:$0xff] %vm1133, %v1834
      %1871 = vst.msk [vmem:[#allocation2 + $0x78] sm:$0xff] %vm1133, %v1835
      %1872 = vst.msk [vmem:[#allocation2 + $0x90] sm:$0xff] %vm1133, %v1836
      %1873 = vst.msk [vmem:[#allocation2 + $0xa8] sm:$0xff] %vm1133, %v1837
      %1874 = vst.msk [vmem:[#allocation2 + $0xc0] sm:$0xff] %vm1133, %v1838
      %1875 = vst.msk [vmem:[#allocation2 + $0xd8] sm:$0xff] %vm1133, %v1839
      %1876 = vst.msk [vmem:[#allocation2 + $0xf0] sm:$0xff] %vm1133, %v1840
      %1877 = vst.msk [vmem:[#allocation2 + $0x108] sm:$0xff] %vm1133, %v1841
      %1878 = vst.msk [vmem:[#allocation2 + $0x120] sm:$0xff] %vm1133, %v1842
      %1879 = vst.msk [vmem:[#allocation2 + $0x138] sm:$0xff] %vm1133, %v1843
      %1880 = vst.msk [vmem:[#allocation2 + $0x150] sm:$0xff] %vm1133, %v1844
      %1881 = vst.msk [vmem:[#allocation2 + $0x168] sm:$0xff] %vm1133, %v1845
      %1882 = vst.msk [vmem:[#allocation2 + $0x180] sm:$0xff] %vm1133, %v1846
      %1883 = vst.msk [vmem:[#allocation2 + $0x198] sm:$0xff] %vm1133, %v1847
      %1884 = vst.msk [vmem:[#allocation2 + $0x1b0] sm:$0xff] %vm1133, %v1848
      %1885 = vst.msk [vmem:[#allocation2 + $0x1c8] sm:$0xff] %vm1133, %v1849
      %1886 = vst.msk [vmem:[#allocation2 + $0x1e0] sm:$0xff] %vm1133, %v1850
      %1887 = vst.msk [vmem:[#allocation2 + $0x1f8] sm:$0xff] %vm1133, %v1851
      %1888 = vst.msk [vmem:[#allocation2 + $0x210] sm:$0xff] %vm1133, %v1852
      %1889 = vst.msk [vmem:[#allocation2 + $0x228] sm:$0xff] %vm1133, %v1853
      %1890 = vst.msk [vmem:[#allocation2 + $0x240] sm:$0xff] %vm1133, %v1854
      %1891 = vst.msk [vmem:[#allocation2 + $0x258] sm:$0xff] %vm1133, %v1855
      %1892 = vst.msk [vmem:[#allocation2 + $0x270] sm:$0xff] %vm1133, %v1856
      %1893 = vst.msk [vmem:[#allocation2 + $0x288] sm:$0xff] %vm1133, %v1857
      %1894 = vst.msk [vmem:[#allocation2 + $0x2a0] sm:$0xff] %vm1133, %v1858
      %1895 = vst.msk [vmem:[#allocation2 + $0x2b8] sm:$0xff] %vm1133, %v1859
      %1896 = vst.msk [vmem:[#allocation2 + $0x2d0] sm:$0xff] %vm1133, %v1860
      %1897 = vst.msk [vmem:[#allocation2 + $0x2e8] sm:$0xff] %vm1133, %v1861
      %1898 = vst.msk [vmem:[#allocation2 + $0x300] sm:$0xff] %vm1133, %v1862
      %1899 = vst.msk [vmem:[#allocation2 + $0x318] sm:$0xff] %vm1133, %v1863
      %1900 = vst.msk [vmem:[#allocation2 + $0x330] sm:$0xff] %vm1133, %v1864
      %1901 = vst.msk [vmem:[#allocation2 + $0x348] sm:$0xff] %vm1133, %v1865
      %vm1936 = vcmask 1042432
      %v1937 = vrot.slane %v1830, 5
      %v1938 = vrot.slane %v1831, 5
      %v1939 = vsel %vm1936, %v1937, %v1938
      %v1940 = vrot.slane %v1832, 5
      %v1941 = vsel %vm1936, %v1938, %v1940
      %v1942 = vrot.slane %v1833, 5
      %v1943 = vsel %vm1936, %v1940, %v1942
      %v1944 = vrot.slane %v1834, 5
      %v1945 = vsel %vm1936, %v1942, %v1944
      %v1946 = vrot.slane %v1835, 5
      %v1947 = vsel %vm1936, %v1944, %v1946
      %v1948 = vrot.slane %v1836, 5
      %v1949 = vsel %vm1936, %v1946, %v1948
      %v1950 = vrot.slane %v1837, 5
      %v1951 = vsel %vm1936, %v1948, %v1950
      %v1952 = vrot.slane %v1838, 5
      %v1953 = vsel %vm1936, %v1950, %v1952
      %v1954 = vrot.slane %v1839, 5
      %v1955 = vsel %vm1936, %v1952, %v1954
      %v1956 = vrot.slane %v1840, 5
      %v1957 = vsel %vm1936, %v1954, %v1956
      %v1958 = vrot.slane %v1841, 5
      %v1959 = vsel %vm1936, %v1956, %v1958
      %v1960 = vrot.slane %v1842, 5
      %v1961 = vsel %vm1936, %v1958, %v1960
      %v1962 = vrot.slane %v1843, 5
      %v1963 = vsel %vm1936, %v1960, %v1962
      %v1964 = vrot.slane %v1844, 5
      %v1965 = vsel %vm1936, %v1962, %v1964
      %v1966 = vrot.slane %v1845, 5
      %v1967 = vsel %vm1936, %v1964, %v1966
      %v1968 = vrot.slane %v1846, 5
      %v1969 = vsel %vm1936, %v1966, %v1968
      %v1970 = vrot.slane %v1847, 5
      %v1971 = vsel %vm1936, %v1968, %v1970
      %v1972 = vrot.slane %v1848, 5
      %v1973 = vsel %vm1936, %v1970, %v1972
      %v1974 = vrot.slane %v1849, 5
      %v1975 = vsel %vm1936, %v1972, %v1974
      %v1976 = vrot.slane %v1850, 5
      %v1977 = vsel %vm1936, %v1974, %v1976
      %v1978 = vrot.slane %v1851, 5
      %v1979 = vsel %vm1936, %v1976, %v1978
      %v1980 = vrot.slane %v1852, 5
      %v1981 = vsel %vm1936, %v1978, %v1980
      %v1982 = vrot.slane %v1853, 5
      %v1983 = vsel %vm1936, %v1980, %v1982
      %v1984 = vrot.slane %v1854, 5
      %v1985 = vsel %vm1936, %v1982, %v1984
      %v1986 = vrot.slane %v1855, 5
      %v1987 = vsel %vm1936, %v1984, %v1986
      %v1988 = vrot.slane %v1856, 5
      %v1989 = vsel %vm1936, %v1986, %v1988
      %v1990 = vrot.slane %v1857, 5
      %v1991 = vsel %vm1936, %v1988, %v1990
      %v1992 = vrot.slane %v1858, 5
      %v1993 = vsel %vm1936, %v1990, %v1992
      %v1994 = vrot.slane %v1859, 5
      %v1995 = vsel %vm1936, %v1992, %v1994
      %v1996 = vrot.slane %v1860, 5
      %v1997 = vsel %vm1936, %v1994, %v1996
      %v1998 = vrot.slane %v1861, 5
      %v1999 = vsel %vm1936, %v1996, %v1998
      %v2000 = vrot.slane %v1862, 5
      %v2001 = vsel %vm1936, %v1998, %v2000
      %v2002 = vrot.slane %v1863, 5
      %v2003 = vsel %vm1936, %v2000, %v2002
      %2004 = vrot.lane.b32.xlu0 %v1937, 32
      %v2005 = vpop.permute.xlu0 %2004
      %2006 = vrot.lane.b32.xlu0 %v1939, 32
      %v2007 = vpop.permute.xlu0 %2006
      %2008 = vrot.lane.b32.xlu0 %v1941, 32
      %v2009 = vpop.permute.xlu0 %2008
      %2010 = vrot.lane.b32.xlu0 %v1943, 32
      %v2011 = vpop.permute.xlu0 %2010
      %2012 = vrot.lane.b32.xlu0 %v1945, 32
      %v2013 = vpop.permute.xlu0 %2012
      %2014 = vrot.lane.b32.xlu0 %v1947, 32
      %v2015 = vpop.permute.xlu0 %2014
      %2016 = vrot.lane.b32.xlu0 %v1949, 32
      %v2017 = vpop.permute.xlu0 %2016
      %2018 = vrot.lane.b32.xlu0 %v1951, 32
      %v2019 = vpop.permute.xlu0 %2018
      %2020 = vrot.lane.b32.xlu0 %v1953, 32
      %v2021 = vpop.permute.xlu0 %2020
      %2022 = vrot.lane.b32.xlu0 %v1955, 32
      %v2023 = vpop.permute.xlu0 %2022
      %2024 = vrot.lane.b32.xlu0 %v1957, 32
      %v2025 = vpop.permute.xlu0 %2024
      %2026 = vrot.lane.b32.xlu0 %v1959, 32
      %v2027 = vpop.permute.xlu0 %2026
      %2028 = vrot.lane.b32.xlu0 %v1961, 32
      %v2029 = vpop.permute.xlu0 %2028
      %2030 = vrot.lane.b32.xlu0 %v1963, 32
      %v2031 = vpop.permute.xlu0 %2030
      %2032 = vrot.lane.b32.xlu0 %v1965, 32
      %v2033 = vpop.permute.xlu0 %2032
      %2034 = vrot.lane.b32.xlu0 %v1967, 32
      %v2035 = vpop.permute.xlu0 %2034
      %2036 = vrot.lane.b32.xlu0 %v1969, 32
      %v2037 = vpop.permute.xlu0 %2036
      %2038 = vrot.lane.b32.xlu0 %v1971, 32
      %v2039 = vpop.permute.xlu0 %2038
      %2040 = vrot.lane.b32.xlu0 %v1973, 32
      %v2041 = vpop.permute.xlu0 %2040
      %2042 = vrot.lane.b32.xlu0 %v1975, 32
      %v2043 = vpop.permute.xlu0 %2042
      %2044 = vrot.lane.b32.xlu0 %v1977, 32
      %v2045 = vpop.permute.xlu0 %2044
      %2046 = vrot.lane.b32.xlu0 %v1979, 32
      %v2047 = vpop.permute.xlu0 %2046
      %2048 = vrot.lane.b32.xlu0 %v1981, 32
      %v2049 = vpop.permute.xlu0 %2048
      %2050 = vrot.lane.b32.xlu0 %v1983, 32
      %v2051 = vpop.permute.xlu0 %2050
      %2052 = vrot.lane.b32.xlu0 %v1985, 32
      %v2053 = vpop.permute.xlu0 %2052
      %2054 = vrot.lane.b32.xlu0 %v1987, 32
      %v2055 = vpop.permute.xlu0 %2054
      %2056 = vrot.lane.b32.xlu0 %v1989, 32
      %v2057 = vpop.permute.xlu0 %2056
      %2058 = vrot.lane.b32.xlu0 %v1991, 32
      %v2059 = vpop.permute.xlu0 %2058
      %2060 = vrot.lane.b32.xlu0 %v1993, 32
      %v2061 = vpop.permute.xlu0 %2060
      %2062 = vrot.lane.b32.xlu0 %v1995, 32
      %v2063 = vpop.permute.xlu0 %2062
      %2064 = vrot.lane.b32.xlu0 %v1997, 32
      %v2065 = vpop.permute.xlu0 %2064
      %2066 = vrot.lane.b32.xlu0 %v1999, 32
      %v2067 = vpop.permute.xlu0 %2066
      %2068 = vrot.lane.b32.xlu0 %v2001, 32
      %v2069 = vpop.permute.xlu0 %2068
      %2070 = vrot.lane.b32.xlu0 %v2003, 32
      %v2071 = vpop.permute.xlu0 %2070
      %vm2106 = vcmask 523523
      %2107 = vst.msk [vmem:[#allocation2 + $0x30] sm:$0xf8] %vm2106, %v2005
      %vm2108 = vcmask 523520
      %2109 = vst.msk [vmem:[#allocation2 + $0x48] sm:$0xff] %vm2108, %v2007
      %2110 = vst.msk [vmem:[#allocation2 + $0x60] sm:$0xff] %vm2108, %v2009
      %2111 = vst.msk [vmem:[#allocation2 + $0x78] sm:$0xff] %vm2108, %v2011
      %2112 = vst.msk [vmem:[#allocation2 + $0x90] sm:$0xff] %vm2108, %v2013
      %2113 = vst.msk [vmem:[#allocation2 + $0xa8] sm:$0xff] %vm2108, %v2015
      %2114 = vst.msk [vmem:[#allocation2 + $0xc0] sm:$0xff] %vm2108, %v2017
      %2115 = vst.msk [vmem:[#allocation2 + $0xd8] sm:$0xff] %vm2108, %v2019
      %2116 = vst.msk [vmem:[#allocation2 + $0xf0] sm:$0xff] %vm2108, %v2021
      %2117 = vst.msk [vmem:[#allocation2 + $0x108] sm:$0xff] %vm2108, %v2023
      %2118 = vst.msk [vmem:[#allocation2 + $0x120] sm:$0xff] %vm2108, %v2025
      %2119 = vst.msk [vmem:[#allocation2 + $0x138] sm:$0xff] %vm2108, %v2027
      %2120 = vst.msk [vmem:[#allocation2 + $0x150] sm:$0xff] %vm2108, %v2029
      %2121 = vst.msk [vmem:[#allocation2 + $0x168] sm:$0xff] %vm2108, %v2031
      %2122 = vst.msk [vmem:[#allocation2 + $0x180] sm:$0xff] %vm2108, %v2033
      %2123 = vst.msk [vmem:[#allocation2 + $0x198] sm:$0xff] %vm2108, %v2035
      %2124 = vst.msk [vmem:[#allocation2 + $0x1b0] sm:$0xff] %vm2108, %v2037
      %2125 = vst.msk [vmem:[#allocation2 + $0x1c8] sm:$0xff] %vm2108, %v2039
      %2126 = vst.msk [vmem:[#allocation2 + $0x1e0] sm:$0xff] %vm2108, %v2041
      %2127 = vst.msk [vmem:[#allocation2 + $0x1f8] sm:$0xff] %vm2108, %v2043
      %2128 = vst.msk [vmem:[#allocation2 + $0x210] sm:$0xff] %vm2108, %v2045
      %2129 = vst.msk [vmem:[#allocation2 + $0x228] sm:$0xff] %vm2108, %v2047
      %2130 = vst.msk [vmem:[#allocation2 + $0x240] sm:$0xff] %vm2108, %v2049
      %2131 = vst.msk [vmem:[#allocation2 + $0x258] sm:$0xff] %vm2108, %v2051
      %2132 = vst.msk [vmem:[#allocation2 + $0x270] sm:$0xff] %vm2108, %v2053
      %2133 = vst.msk [vmem:[#allocation2 + $0x288] sm:$0xff] %vm2108, %v2055
      %2134 = vst.msk [vmem:[#allocation2 + $0x2a0] sm:$0xff] %vm2108, %v2057
      %2135 = vst.msk [vmem:[#allocation2 + $0x2b8] sm:$0xff] %vm2108, %v2059
      %2136 = vst.msk [vmem:[#allocation2 + $0x2d0] sm:$0xff] %vm2108, %v2061
      %2137 = vst.msk [vmem:[#allocation2 + $0x2e8] sm:$0xff] %vm2108, %v2063
      %2138 = vst.msk [vmem:[#allocation2 + $0x300] sm:$0xff] %vm2108, %v2065
      %2139 = vst.msk [vmem:[#allocation2 + $0x318] sm:$0xff] %vm2108, %v2067
      %2140 = vst.msk [vmem:[#allocation2 + $0x330] sm:$0xff] %vm2108, %v2069
      %2141 = vst.msk [vmem:[#allocation2 + $0x348] sm:$0xff] %vm2108, %v2071
      %2142 = vst.msk [vmem:[#allocation2] sm:$0xff] %vm2108, 0.0
      %2143 = vst.msk [vmem:[#allocation2 + $0x18] sm:$0xff] %vm2108, 0.0
      %vm2144 = vcmask 518400
      %2145 = vst.msk [vmem:[#allocation2 + $0x30] sm:$0x7] %vm2144, 0.0
      %v2146 = vrot.slane %v1830, 6
      %v2147 = vrot.slane %v1831, 6
      %v2148 = vsel %vm730, %v2146, %v2147
      %v2149 = vrot.slane %v1832, 6
      %v2150 = vsel %vm730, %v2147, %v2149
      %v2151 = vrot.slane %v1833, 6
      %v2152 = vsel %vm730, %v2149, %v2151
      %v2153 = vrot.slane %v1834, 6
      %v2154 = vsel %vm730, %v2151, %v2153
      %v2155 = vrot.slane %v1835, 6
      %v2156 = vsel %vm730, %v2153, %v2155
      %v2157 = vrot.slane %v1836, 6
      %v2158 = vsel %vm730, %v2155, %v2157
      %v2159 = vrot.slane %v1837, 6
      %v2160 = vsel %vm730, %v2157, %v2159
      %v2161 = vrot.slane %v1838, 6
      %v2162 = vsel %vm730, %v2159, %v2161
      %v2163 = vrot.slane %v1839, 6
      %v2164 = vsel %vm730, %v2161, %v2163
      %v2165 = vrot.slane %v1840, 6
      %v2166 = vsel %vm730, %v2163, %v2165
      %v2167 = vrot.slane %v1841, 6
      %v2168 = vsel %vm730, %v2165, %v2167
      %v2169 = vrot.slane %v1842, 6
      %v2170 = vsel %vm730, %v2167, %v2169
      %v2171 = vrot.slane %v1843, 6
      %v2172 = vsel %vm730, %v2169, %v2171
      %v2173 = vrot.slane %v1844, 6
      %v2174 = vsel %vm730, %v2171, %v2173
      %v2175 = vrot.slane %v1845, 6
      %v2176 = vsel %vm730, %v2173, %v2175
      %v2177 = vrot.slane %v1846, 6
      %v2178 = vsel %vm730, %v2175, %v2177
      %v2179 = vrot.slane %v1847, 6
      %v2180 = vsel %vm730, %v2177, %v2179
      %v2181 = vrot.slane %v1848, 6
      %v2182 = vsel %vm730, %v2179, %v2181
      %v2183 = vrot.slane %v1849, 6
      %v2184 = vsel %vm730, %v2181, %v2183
      %v2185 = vrot.slane %v1850, 6
      %v2186 = vsel %vm730, %v2183, %v2185
      %v2187 = vrot.slane %v1851, 6
      %v2188 = vsel %vm730, %v2185, %v2187
      %v2189 = vrot.slane %v1852, 6
      %v2190 = vsel %vm730, %v2187, %v2189
      %v2191 = vrot.slane %v1853, 6
      %v2192 = vsel %vm730, %v2189, %v2191
      %v2193 = vrot.slane %v1854, 6
      %v2194 = vsel %vm730, %v2191, %v2193
      %v2195 = vrot.slane %v1855, 6
      %v2196 = vsel %vm730, %v2193, %v2195
      %v2197 = vrot.slane %v1856, 6
      %v2198 = vsel %vm730, %v2195, %v2197
      %v2199 = vrot.slane %v1857, 6
      %v2200 = vsel %vm730, %v2197, %v2199
      %v2201 = vrot.slane %v1858, 6
      %v2202 = vsel %vm730, %v2199, %v2201
      %v2203 = vrot.slane %v1859, 6
      %v2204 = vsel %vm730, %v2201, %v2203
      %v2205 = vrot.slane %v1860, 6
      %v2206 = vsel %vm730, %v2203, %v2205
      %v2207 = vrot.slane %v1861, 6
      %v2208 = vsel %vm730, %v2205, %v2207
      %v2209 = vrot.slane %v1862, 6
      %v2210 = vsel %vm730, %v2207, %v2209
      %v2211 = vrot.slane %v1863, 6
      %v2212 = vsel %vm730, %v2209, %v2211
      %2213 = vrot.lane.b32.xlu0 %v2146, 64
      %v2214 = vpop.permute.xlu0 %2213
      %2215 = vrot.lane.b32.xlu0 %v2148, 64
      %v2216 = vpop.permute.xlu0 %2215
      %2217 = vrot.lane.b32.xlu0 %v2150, 64
      %v2218 = vpop.permute.xlu0 %2217
      %2219 = vrot.lane.b32.xlu0 %v2152, 64
      %v2220 = vpop.permute.xlu0 %2219
      %2221 = vrot.lane.b32.xlu0 %v2154, 64
      %v2222 = vpop.permute.xlu0 %2221
      %2223 = vrot.lane.b32.xlu0 %v2156, 64
      %v2224 = vpop.permute.xlu0 %2223
      %2225 = vrot.lane.b32.xlu0 %v2158, 64
      %v2226 = vpop.permute.xlu0 %2225
      %2227 = vrot.lane.b32.xlu0 %v2160, 64
      %v2228 = vpop.permute.xlu0 %2227
      %2229 = vrot.lane.b32.xlu0 %v2162, 64
      %v2230 = vpop.permute.xlu0 %2229
      %2231 = vrot.lane.b32.xlu0 %v2164, 64
      %v2232 = vpop.permute.xlu0 %2231
      %2233 = vrot.lane.b32.xlu0 %v2166, 64
      %v2234 = vpop.permute.xlu0 %2233
      %2235 = vrot.lane.b32.xlu0 %v2168, 64
      %v2236 = vpop.permute.xlu0 %2235
      %2237 = vrot.lane.b32.xlu0 %v2170, 64
      %v2238 = vpop.permute.xlu0 %2237
      %2239 = vrot.lane.b32.xlu0 %v2172, 64
      %v2240 = vpop.permute.xlu0 %2239
      %2241 = vrot.lane.b32.xlu0 %v2174, 64
      %v2242 = vpop.permute.xlu0 %2241
      %2243 = vrot.lane.b32.xlu0 %v2176, 64
      %v2244 = vpop.permute.xlu0 %2243
      %2245 = vrot.lane.b32.xlu0 %v2178, 64
      %v2246 = vpop.permute.xlu0 %2245
      %2247 = vrot.lane.b32.xlu0 %v2180, 64
      %v2248 = vpop.permute.xlu0 %2247
      %2249 = vrot.lane.b32.xlu0 %v2182, 64
      %v2250 = vpop.permute.xlu0 %2249
      %2251 = vrot.lane.b32.xlu0 %v2184, 64
      %v2252 = vpop.permute.xlu0 %2251
      %2253 = vrot.lane.b32.xlu0 %v2186, 64
      %v2254 = vpop.permute.xlu0 %2253
      %2255 = vrot.lane.b32.xlu0 %v2188, 64
      %v2256 = vpop.permute.xlu0 %2255
      %2257 = vrot.lane.b32.xlu0 %v2190, 64
      %v2258 = vpop.permute.xlu0 %2257
      %2259 = vrot.lane.b32.xlu0 %v2192, 64
      %v2260 = vpop.permute.xlu0 %2259
      %2261 = vrot.lane.b32.xlu0 %v2194, 64
      %v2262 = vpop.permute.xlu0 %2261
      %2263 = vrot.lane.b32.xlu0 %v2196, 64
      %v2264 = vpop.permute.xlu0 %2263
      %2265 = vrot.lane.b32.xlu0 %v2198, 64
      %v2266 = vpop.permute.xlu0 %2265
      %2267 = vrot.lane.b32.xlu0 %v2200, 64
      %v2268 = vpop.permute.xlu0 %2267
      %2269 = vrot.lane.b32.xlu0 %v2202, 64
      %v2270 = vpop.permute.xlu0 %2269
      %2271 = vrot.lane.b32.xlu0 %v2204, 64
      %v2272 = vpop.permute.xlu0 %2271
      %2273 = vrot.lane.b32.xlu0 %v2206, 64
      %v2274 = vpop.permute.xlu0 %2273
      %2275 = vrot.lane.b32.xlu0 %v2208, 64
      %v2276 = vpop.permute.xlu0 %2275
      %2277 = vrot.lane.b32.xlu0 %v2210, 64
      %v2278 = vpop.permute.xlu0 %2277
      %2279 = vrot.lane.b32.xlu0 %v2212, 64
      %v2280 = vpop.permute.xlu0 %2279
      %vm2315 = vcmask 785922
      %2316 = vst.msk [vmem:[#allocation2 + $0x30] sm:$0xfc] %vm2315, %v2214
      %vm2317 = vcmask 785920
      %2318 = vst.msk [vmem:[#allocation2 + $0x48] sm:$0xff] %vm2317, %v2216
      %2319 = vst.msk [vmem:[#allocation2 + $0x60] sm:$0xff] %vm2317, %v2218
      %2320 = vst.msk [vmem:[#allocation2 + $0x78] sm:$0xff] %vm2317, %v2220
      %2321 = vst.msk [vmem:[#allocation2 + $0x90] sm:$0xff] %vm2317, %v2222
      %2322 = vst.msk [vmem:[#allocation2 + $0xa8] sm:$0xff] %vm2317, %v2224
      %2323 = vst.msk [vmem:[#allocation2 + $0xc0] sm:$0xff] %vm2317, %v2226
      %2324 = vst.msk [vmem:[#allocation2 + $0xd8] sm:$0xff] %vm2317, %v2228
      %2325 = vst.msk [vmem:[#allocation2 + $0xf0] sm:$0xff] %vm2317, %v2230
      %2326 = vst.msk [vmem:[#allocation2 + $0x108] sm:$0xff] %vm2317, %v2232
      %2327 = vst.msk [vmem:[#allocation2 + $0x120] sm:$0xff] %vm2317, %v2234
      %2328 = vst.msk [vmem:[#allocation2 + $0x138] sm:$0xff] %vm2317, %v2236
      %2329 = vst.msk [vmem:[#allocation2 + $0x150] sm:$0xff] %vm2317, %v2238
      %2330 = vst.msk [vmem:[#allocation2 + $0x168] sm:$0xff] %vm2317, %v2240
      %2331 = vst.msk [vmem:[#allocation2 + $0x180] sm:$0xff] %vm2317, %v2242
      %2332 = vst.msk [vmem:[#allocation2 + $0x198] sm:$0xff] %vm2317, %v2244
      %2333 = vst.msk [vmem:[#allocation2 + $0x1b0] sm:$0xff] %vm2317, %v2246
      %2334 = vst.msk [vmem:[#allocation2 + $0x1c8] sm:$0xff] %vm2317, %v2248
      %2335 = vst.msk [vmem:[#allocation2 + $0x1e0] sm:$0xff] %vm2317, %v2250
      %2336 = vst.msk [vmem:[#allocation2 + $0x1f8] sm:$0xff] %vm2317, %v2252
      %2337 = vst.msk [vmem:[#allocation2 + $0x210] sm:$0xff] %vm2317, %v2254
      %2338 = vst.msk [vmem:[#allocation2 + $0x228] sm:$0xff] %vm2317, %v2256
      %2339 = vst.msk [vmem:[#allocation2 + $0x240] sm:$0xff] %vm2317, %v2258
      %2340 = vst.msk [vmem:[#allocation2 + $0x258] sm:$0xff] %vm2317, %v2260
      %2341 = vst.msk [vmem:[#allocation2 + $0x270] sm:$0xff] %vm2317, %v2262
      %2342 = vst.msk [vmem:[#allocation2 + $0x288] sm:$0xff] %vm2317, %v2264
      %2343 = vst.msk [vmem:[#allocation2 + $0x2a0] sm:$0xff] %vm2317, %v2266
      %2344 = vst.msk [vmem:[#allocation2 + $0x2b8] sm:$0xff] %vm2317, %v2268
      %2345 = vst.msk [vmem:[#allocation2 + $0x2d0] sm:$0xff] %vm2317, %v2270
      %2346 = vst.msk [vmem:[#allocation2 + $0x2e8] sm:$0xff] %vm2317, %v2272
      %2347 = vst.msk [vmem:[#allocation2 + $0x300] sm:$0xff] %vm2317, %v2274
      %2348 = vst.msk [vmem:[#allocation2 + $0x318] sm:$0xff] %vm2317, %v2276
      %2349 = vst.msk [vmem:[#allocation2 + $0x330] sm:$0xff] %vm2317, %v2278
      %2350 = vst.msk [vmem:[#allocation2 + $0x348] sm:$0xff] %vm2317, %v2280
      %2351 = vst.msk [vmem:[#allocation2] sm:$0xff] %vm2317, 0.0
      %2352 = vst.msk [vmem:[#allocation2 + $0x18] sm:$0xff] %vm2317, 0.0
      %vm2353 = vcmask 779776
      %2354 = vst.msk [vmem:[#allocation2 + $0x30] sm:$0x3] %vm2353, 0.0
      %v2355 = vrot.slane %v1830, 7
      %v2356 = vrot.slane %v1831, 7
      %v2357 = vsel %vm1324, %v2355, %v2356
      %v2358 = vrot.slane %v1832, 7
      %v2359 = vsel %vm1324, %v2356, %v2358
      %v2360 = vrot.slane %v1833, 7
      %v2361 = vsel %vm1324, %v2358, %v2360
      %v2362 = vrot.slane %v1834, 7
      %v2363 = vsel %vm1324, %v2360, %v2362
      %v2364 = vrot.slane %v1835, 7
      %v2365 = vsel %vm1324, %v2362, %v2364
      %v2366 = vrot.slane %v1836, 7
      %v2367 = vsel %vm1324, %v2364, %v2366
      %v2368 = vrot.slane %v1837, 7
      %v2369 = vsel %vm1324, %v2366, %v2368
      %v2370 = vrot.slane %v1838, 7
      %v2371 = vsel %vm1324, %v2368, %v2370
      %v2372 = vrot.slane %v1839, 7
      %v2373 = vsel %vm1324, %v2370, %v2372
      %v2374 = vrot.slane %v1840, 7
      %v2375 = vsel %vm1324, %v2372, %v2374
      %v2376 = vrot.slane %v1841, 7
      %v2377 = vsel %vm1324, %v2374, %v2376
      %v2378 = vrot.slane %v1842, 7
      %v2379 = vsel %vm1324, %v2376, %v2378
      %v2380 = vrot.slane %v1843, 7
      %v2381 = vsel %vm1324, %v2378, %v2380
      %v2382 = vrot.slane %v1844, 7
      %v2383 = vsel %vm1324, %v2380, %v2382
      %v2384 = vrot.slane %v1845, 7
      %v2385 = vsel %vm1324, %v2382, %v2384
      %v2386 = vrot.slane %v1846, 7
      %v2387 = vsel %vm1324, %v2384, %v2386
      %v2388 = vrot.slane %v1847, 7
      %v2389 = vsel %vm1324, %v2386, %v2388
      %v2390 = vrot.slane %v1848, 7
      %v2391 = vsel %vm1324, %v2388, %v2390
      %v2392 = vrot.slane %v1849, 7
      %v2393 = vsel %vm1324, %v2390, %v2392
      %v2394 = vrot.slane %v1850, 7
      %v2395 = vsel %vm1324, %v2392, %v2394
      %v2396 = vrot.slane %v1851, 7
      %v2397 = vsel %vm1324, %v2394, %v2396
      %v2398 = vrot.slane %v1852, 7
      %v2399 = vsel %vm1324, %v2396, %v2398
      %v2400 = vrot.slane %v1853, 7
      %v2401 = vsel %vm1324, %v2398, %v2400
      %v2402 = vrot.slane %v1854, 7
      %v2403 = vsel %vm1324, %v2400, %v2402
      %v2404 = vrot.slane %v1855, 7
      %v2405 = vsel %vm1324, %v2402, %v2404
      %v2406 = vrot.slane %v1856, 7
      %v2407 = vsel %vm1324, %v2404, %v2406
      %v2408 = vrot.slane %v1857, 7
      %v2409 = vsel %vm1324, %v2406, %v2408
      %v2410 = vrot.slane %v1858, 7
      %v2411 = vsel %vm1324, %v2408, %v2410
      %v2412 = vrot.slane %v1859, 7
      %v2413 = vsel %vm1324, %v2410, %v2412
      %v2414 = vrot.slane %v1860, 7
      %v2415 = vsel %vm1324, %v2412, %v2414
      %v2416 = vrot.slane %v1861, 7
      %v2417 = vsel %vm1324, %v2414, %v2416
      %v2418 = vrot.slane %v1862, 7
      %v2419 = vsel %vm1324, %v2416, %v2418
      %v2420 = vrot.slane %v1863, 7
      %v2421 = vsel %vm1324, %v2418, %v2420
      %2422 = vrot.lane.b32.xlu0 %v2355, 96
      %v2423 = vpop.permute.xlu0 %2422
      %2424 = vrot.lane.b32.xlu0 %v2357, 96
      %v2425 = vpop.permute.xlu0 %2424
      %2426 = vrot.lane.b32.xlu0 %v2359, 96
      %v2427 = vpop.permute.xlu0 %2426
      %2428 = vrot.lane.b32.xlu0 %v2361, 96
      %v2429 = vpop.permute.xlu0 %2428
      %2430 = vrot.lane.b32.xlu0 %v2363, 96
      %v2431 = vpop.permute.xlu0 %2430
      %2432 = vrot.lane.b32.xlu0 %v2365, 96
      %v2433 = vpop.permute.xlu0 %2432
      %2434 = vrot.lane.b32.xlu0 %v2367, 96
      %v2435 = vpop.permute.xlu0 %2434
      %2436 = vrot.lane.b32.xlu0 %v2369, 96
      %v2437 = vpop.permute.xlu0 %2436
      %2438 = vrot.lane.b32.xlu0 %v2371, 96
      %v2439 = vpop.permute.xlu0 %2438
      %2440 = vrot.lane.b32.xlu0 %v2373, 96
      %v2441 = vpop.permute.xlu0 %2440
      %2442 = vrot.lane.b32.xlu0 %v2375, 96
      %v2443 = vpop.permute.xlu0 %2442
      %2444 = vrot.lane.b32.xlu0 %v2377, 96
      %v2445 = vpop.permute.xlu0 %2444
      %2446 = vrot.lane.b32.xlu0 %v2379, 96
      %v2447 = vpop.permute.xlu0 %2446
      %2448 = vrot.lane.b32.xlu0 %v2381, 96
      %v2449 = vpop.permute.xlu0 %2448
      %2450 = vrot.lane.b32.xlu0 %v2383, 96
      %v2451 = vpop.permute.xlu0 %2450
      %2452 = vrot.lane.b32.xlu0 %v2385, 96
      %v2453 = vpop.permute.xlu0 %2452
      %2454 = vrot.lane.b32.xlu0 %v2387, 96
      %v2455 = vpop.permute.xlu0 %2454
      %2456 = vrot.lane.b32.xlu0 %v2389, 96
      %v2457 = vpop.permute.xlu0 %2456
      %2458 = vrot.lane.b32.xlu0 %v2391, 96
      %v2459 = vpop.permute.xlu0 %2458
      %2460 = vrot.lane.b32.xlu0 %v2393, 96
      %v2461 = vpop.permute.xlu0 %2460
      %2462 = vrot.lane.b32.xlu0 %v2395, 96
      %v2463 = vpop.permute.xlu0 %2462
      %2464 = vrot.lane.b32.xlu0 %v2397, 96
      %v2465 = vpop.permute.xlu0 %2464
      %2466 = vrot.lane.b32.xlu0 %v2399, 96
      %v2467 = vpop.permute.xlu0 %2466
      %2468 = vrot.lane.b32.xlu0 %v2401, 96
      %v2469 = vpop.permute.xlu0 %2468
      %2470 = vrot.lane.b32.xlu0 %v2403, 96
      %v2471 = vpop.permute.xlu0 %2470
      %2472 = vrot.lane.b32.xlu0 %v2405, 96
      %v2473 = vpop.permute.xlu0 %2472
      %2474 = vrot.lane.b32.xlu0 %v2407, 96
      %v2475 = vpop.permute.xlu0 %2474
      %2476 = vrot.lane.b32.xlu0 %v2409, 96
      %v2477 = vpop.permute.xlu0 %2476
      %2478 = vrot.lane.b32.xlu0 %v2411, 96
      %v2479 = vpop.permute.xlu0 %2478
      %2480 = vrot.lane.b32.xlu0 %v2413, 96
      %v2481 = vpop.permute.xlu0 %2480
      %2482 = vrot.lane.b32.xlu0 %v2415, 96
      %v2483 = vpop.permute.xlu0 %2482
      %2484 = vrot.lane.b32.xlu0 %v2417, 96
      %v2485 = vpop.permute.xlu0 %2484
      %2486 = vrot.lane.b32.xlu0 %v2419, 96
      %v2487 = vpop.permute.xlu0 %2486
      %2488 = vrot.lane.b32.xlu0 %v2421, 96
      %v2489 = vpop.permute.xlu0 %2488
      %vm2524 = vcmask 1048321
      %2525 = vst.msk [vmem:[#allocation2 + $0x30] sm:$0xfe] %vm2524, %v2423
      %vm2526 = vcmask 1048320
      %2527 = vst.msk [vmem:[#allocation2 + $0x48] sm:$0xff] %vm2526, %v2425
      %2528 = vst.msk [vmem:[#allocation2 + $0x60] sm:$0xff] %vm2526, %v2427
      %2529 = vst.msk [vmem:[#allocation2 + $0x78] sm:$0xff] %vm2526, %v2429
      %2530 = vst.msk [vmem:[#allocation2 + $0x90] sm:$0xff] %vm2526, %v2431
      %2531 = vst.msk [vmem:[#allocation2 + $0xa8] sm:$0xff] %vm2526, %v2433
      %2532 = vst.msk [vmem:[#allocation2 + $0xc0] sm:$0xff] %vm2526, %v2435
      %2533 = vst.msk [vmem:[#allocation2 + $0xd8] sm:$0xff] %vm2526, %v2437
      %2534 = vst.msk [vmem:[#allocation2 + $0xf0] sm:$0xff] %vm2526, %v2439
      %2535 = vst.msk [vmem:[#allocation2 + $0x108] sm:$0xff] %vm2526, %v2441
      %2536 = vst.msk [vmem:[#allocation2 + $0x120] sm:$0xff] %vm2526, %v2443
      %2537 = vst.msk [vmem:[#allocation2 + $0x138] sm:$0xff] %vm2526, %v2445
      %2538 = vst.msk [vmem:[#allocation2 + $0x150] sm:$0xff] %vm2526, %v2447
      %2539 = vst.msk [vmem:[#allocation2 + $0x168] sm:$0xff] %vm2526, %v2449
      %2540 = vst.msk [vmem:[#allocation2 + $0x180] sm:$0xff] %vm2526, %v2451
      %2541 = vst.msk [vmem:[#allocation2 + $0x198] sm:$0xff] %vm2526, %v2453
      %2542 = vst.msk [vmem:[#allocation2 + $0x1b0] sm:$0xff] %vm2526, %v2455
      %2543 = vst.msk [vmem:[#allocation2 + $0x1c8] sm:$0xff] %vm2526, %v2457
      %2544 = vst.msk [vmem:[#allocation2 + $0x1e0] sm:$0xff] %vm2526, %v2459
      %2545 = vst.msk [vmem:[#allocation2 + $0x1f8] sm:$0xff] %vm2526, %v2461
      %2546 = vst.msk [vmem:[#allocation2 + $0x210] sm:$0xff] %vm2526, %v2463
      %2547 = vst.msk [vmem:[#allocation2 + $0x228] sm:$0xff] %vm2526, %v2465
      %2548 = vst.msk [vmem:[#allocation2 + $0x240] sm:$0xff] %vm2526, %v2467
      %2549 = vst.msk [vmem:[#allocation2 + $0x258] sm:$0xff] %vm2526, %v2469
      %2550 = vst.msk [vmem:[#allocation2 + $0x270] sm:$0xff] %vm2526, %v2471
      %2551 = vst.msk [vmem:[#allocation2 + $0x288] sm:$0xff] %vm2526, %v2473
      %2552 = vst.msk [vmem:[#allocation2 + $0x2a0] sm:$0xff] %vm2526, %v2475
      %2553 = vst.msk [vmem:[#allocation2 + $0x2b8] sm:$0xff] %vm2526, %v2477
      %2554 = vst.msk [vmem:[#allocation2 + $0x2d0] sm:$0xff] %vm2526, %v2479
      %2555 = vst.msk [vmem:[#allocation2 + $0x2e8] sm:$0xff] %vm2526, %v2481
      %2556 = vst.msk [vmem:[#allocation2 + $0x300] sm:$0xff] %vm2526, %v2483
      %2557 = vst.msk [vmem:[#allocation2 + $0x318] sm:$0xff] %vm2526, %v2485
      %2558 = vst.msk [vmem:[#allocation2 + $0x330] sm:$0xff] %vm2526, %v2487
      %2559 = vst.msk [vmem:[#allocation2 + $0x348] sm:$0xff] %vm2526, %v2489
      %2560 = vst.msk [vmem:[#allocation2] sm:$0xff] %vm2526, 0.0
      %2561 = vst.msk [vmem:[#allocation2 + $0x18] sm:$0xff] %vm2526, 0.0
      %vm2562 = vcmask 1041152
      %2563 = vst.msk [vmem:[#allocation2 + $0x30] sm:$0x1] %vm2562, 0.0
      %v2566 = vrot.slane %v1864, 7
      %v2567 = vsel %vm1324, %v2420, %v2566
      %v2568 = vrot.slane %v1865, 7
      %v2569 = vsel %vm1324, %v2566, %v2568
      %vm2606 = vcmask 261121
      %2607 = vst.msk [vmem:[#allocation2 + $0x8] sm:$0xfe] %vm2606, %v2355
      %2608 = vst.msk [vmem:[#allocation2 + $0x20] sm:$0xff] %vm1133, %v2357
      %2609 = vst.msk [vmem:[#allocation2 + $0x38] sm:$0xff] %vm1133, %v2359
      %2610 = vst.msk [vmem:[#allocation2 + $0x50] sm:$0xff] %vm1133, %v2361
      %2611 = vst.msk [vmem:[#allocation2 + $0x68] sm:$0xff] %vm1133, %v2363
      %2612 = vst.msk [vmem:[#allocation2 + $0x80] sm:$0xff] %vm1133, %v2365
      %2613 = vst.msk [vmem:[#allocation2 + $0x98] sm:$0xff] %vm1133, %v2367
      %2614 = vst.msk [vmem:[#allocation2 + $0xb0] sm:$0xff] %vm1133, %v2369
      %2615 = vst.msk [vmem:[#allocation2 + $0xc8] sm:$0xff] %vm1133, %v2371
      %2616 = vst.msk [vmem:[#allocation2 + $0xe0] sm:$0xff] %vm1133, %v2373
      %2617 = vst.msk [vmem:[#allocation2 + $0xf8] sm:$0xff] %vm1133, %v2375
      %2618 = vst.msk [vmem:[#allocation2 + $0x110] sm:$0xff] %vm1133, %v2377
      %2619 = vst.msk [vmem:[#allocation2 + $0x128] sm:$0xff] %vm1133, %v2379
      %2620 = vst.msk [vmem:[#allocation2 + $0x140] sm:$0xff] %vm1133, %v2381
      %2621 = vst.msk [vmem:[#allocation2 + $0x158] sm:$0xff] %vm1133, %v2383
      %2622 = vst.msk [vmem:[#allocation2 + $0x170] sm:$0xff] %vm1133, %v2385
      %2623 = vst.msk [vmem:[#allocation2 + $0x188] sm:$0xff] %vm1133, %v2387
      %2624 = vst.msk [vmem:[#allocation2 + $0x1a0] sm:$0xff] %vm1133, %v2389
      %2625 = vst.msk [vmem:[#allocation2 + $0x1b8] sm:$0xff] %vm1133, %v2391
      %2626 = vst.msk [vmem:[#allocation2 + $0x1d0] sm:$0xff] %vm1133, %v2393
      %2627 = vst.msk [vmem:[#allocation2 + $0x1e8] sm:$0xff] %vm1133, %v2395
      %2628 = vst.msk [vmem:[#allocation2 + $0x200] sm:$0xff] %vm1133, %v2397
      %2629 = vst.msk [vmem:[#allocation2 + $0x218] sm:$0xff] %vm1133, %v2399
      %2630 = vst.msk [vmem:[#allocation2 + $0x230] sm:$0xff] %vm1133, %v2401
      %2631 = vst.msk [vmem:[#allocation2 + $0x248] sm:$0xff] %vm1133, %v2403
      %2632 = vst.msk [vmem:[#allocation2 + $0x260] sm:$0xff] %vm1133, %v2405
      %2633 = vst.msk [vmem:[#allocation2 + $0x278] sm:$0xff] %vm1133, %v2407
      %2634 = vst.msk [vmem:[#allocation2 + $0x290] sm:$0xff] %vm1133, %v2409
      %2635 = vst.msk [vmem:[#allocation2 + $0x2a8] sm:$0xff] %vm1133, %v2411
      %2636 = vst.msk [vmem:[#allocation2 + $0x2c0] sm:$0xff] %vm1133, %v2413
      %2637 = vst.msk [vmem:[#allocation2 + $0x2d8] sm:$0xff] %vm1133, %v2415
      %2638 = vst.msk [vmem:[#allocation2 + $0x2f0] sm:$0xff] %vm1133, %v2417
      %2639 = vst.msk [vmem:[#allocation2 + $0x308] sm:$0xff] %vm1133, %v2419
      %2640 = vst.msk [vmem:[#allocation2 + $0x320] sm:$0xff] %vm1133, %v2421
      %2641 = vst.msk [vmem:[#allocation2 + $0x338] sm:$0xff] %vm1133, %v2567
      %2642 = vst.msk [vmem:[#allocation2 + $0x350] sm:$0xff] %vm1133, %v2569
      %vm2643 = vcmask 253952
      %2644 = vst.msk [vmem:[#allocation2 + $0x8] sm:$0x1] %vm2643, 0.0
      %vm2645 = vcmask 1046528
      %v2646 = vrot.slane %v1830, 1
      %v2647 = vrot.slane %v1831, 1
      %v2648 = vsel %vm2645, %v2646, %v2647
      %v2649 = vrot.slane %v1832, 1
      %v2650 = vsel %vm2645, %v2647, %v2649
      %v2651 = vrot.slane %v1833, 1
      %v2652 = vsel %vm2645, %v2649, %v2651
      %v2653 = vrot.slane %v1834, 1
      %v2654 = vsel %vm2645, %v2651, %v2653
      %v2655 = vrot.slane %v1835, 1
      %v2656 = vsel %vm2645, %v2653, %v2655
      %v2657 = vrot.slane %v1836, 1
      %v2658 = vsel %vm2645, %v2655, %v2657
      %v2659 = vrot.slane %v1837, 1
      %v2660 = vsel %vm2645, %v2657, %v2659
      %v2661 = vrot.slane %v1838, 1
      %v2662 = vsel %vm2645, %v2659, %v2661
      %v2663 = vrot.slane %v1839, 1
      %v2664 = vsel %vm2645, %v2661, %v2663
      %v2665 = vrot.slane %v1840, 1
      %v2666 = vsel %vm2645, %v2663, %v2665
      %v2667 = vrot.slane %v1841, 1
      %v2668 = vsel %vm2645, %v2665, %v2667
      %v2669 = vrot.slane %v1842, 1
      %v2670 = vsel %vm2645, %v2667, %v2669
      %v2671 = vrot.slane %v1843, 1
      %v2672 = vsel %vm2645, %v2669, %v2671
      %v2673 = vrot.slane %v1844, 1
      %v2674 = vsel %vm2645, %v2671, %v2673
      %v2675 = vrot.slane %v1845, 1
      %v2676 = vsel %vm2645, %v2673, %v2675
      %v2677 = vrot.slane %v1846, 1
      %v2678 = vsel %vm2645, %v2675, %v2677
      %v2679 = vrot.slane %v1847, 1
      %v2680 = vsel %vm2645, %v2677, %v2679
      %v2681 = vrot.slane %v1848, 1
      %v2682 = vsel %vm2645, %v2679, %v2681
      %v2683 = vrot.slane %v1849, 1
      %v2684 = vsel %vm2645, %v2681, %v2683
      %v2685 = vrot.slane %v1850, 1
      %v2686 = vsel %vm2645, %v2683, %v2685
      %v2687 = vrot.slane %v1851, 1
      %v2688 = vsel %vm2645, %v2685, %v2687
      %v2689 = vrot.slane %v1852, 1
      %v2690 = vsel %vm2645, %v2687, %v2689
      %v2691 = vrot.slane %v1853, 1
      %v2692 = vsel %vm2645, %v2689, %v2691
      %v2693 = vrot.slane %v1854, 1
      %v2694 = vsel %vm2645, %v2691, %v2693
      %v2695 = vrot.slane %v1855, 1
      %v2696 = vsel %vm2645, %v2693, %v2695
      %v2697 = vrot.slane %v1856, 1
      %v2698 = vsel %vm2645, %v2695, %v2697
      %v2699 = vrot.slane %v1857, 1
      %v2700 = vsel %vm2645, %v2697, %v2699
      %v2701 = vrot.slane %v1858, 1
      %v2702 = vsel %vm2645, %v2699, %v2701
      %v2703 = vrot.slane %v1859, 1
      %v2704 = vsel %vm2645, %v2701, %v2703
      %v2705 = vrot.slane %v1860, 1
      %v2706 = vsel %vm2645, %v2703, %v2705
      %v2707 = vrot.slane %v1861, 1
      %v2708 = vsel %vm2645, %v2705, %v2707
      %v2709 = vrot.slane %v1862, 1
      %v2710 = vsel %vm2645, %v2707, %v2709
      %v2711 = vrot.slane %v1863, 1
      %v2712 = vsel %vm2645, %v2709, %v2711
      %v2713 = vrot.slane %v1864, 1
      %v2714 = vsel %vm2645, %v2711, %v2713
      %v2715 = vrot.slane %v1865, 1
      %v2716 = vsel %vm2645, %v2713, %v2715
      %2717 = vrot.lane.b32.xlu0 %v2648, 32
      %v2718 = vpop.permute.xlu0 %2717
      %2719 = vrot.lane.b32.xlu0 %v2650, 32
      %v2720 = vpop.permute.xlu0 %2719
      %2721 = vrot.lane.b32.xlu0 %v2652, 32
      %v2722 = vpop.permute.xlu0 %2721
      %2723 = vrot.lane.b32.xlu0 %v2654, 32
      %v2724 = vpop.permute.xlu0 %2723
      %2725 = vrot.lane.b32.xlu0 %v2656, 32
      %v2726 = vpop.permute.xlu0 %2725
      %2727 = vrot.lane.b32.xlu0 %v2658, 32
      %v2728 = vpop.permute.xlu0 %2727
      %2729 = vrot.lane.b32.xlu0 %v2660, 32
      %v2730 = vpop.permute.xlu0 %2729
      %2731 = vrot.lane.b32.xlu0 %v2662, 32
      %v2732 = vpop.permute.xlu0 %2731
      %2733 = vrot.lane.b32.xlu0 %v2664, 32
      %v2734 = vpop.permute.xlu0 %2733
      %2735 = vrot.lane.b32.xlu0 %v2666, 32
      %v2736 = vpop.permute.xlu0 %2735
      %2737 = vrot.lane.b32.xlu0 %v2668, 32
      %v2738 = vpop.permute.xlu0 %2737
      %2739 = vrot.lane.b32.xlu0 %v2670, 32
      %v2740 = vpop.permute.xlu0 %2739
      %2741 = vrot.lane.b32.xlu0 %v2672, 32
      %v2742 = vpop.permute.xlu0 %2741
      %2743 = vrot.lane.b32.xlu0 %v2674, 32
      %v2744 = vpop.permute.xlu0 %2743
      %2745 = vrot.lane.b32.xlu0 %v2676, 32
      %v2746 = vpop.permute.xlu0 %2745
      %2747 = vrot.lane.b32.xlu0 %v2678, 32
      %v2748 = vpop.permute.xlu0 %2747
      %2749 = vrot.lane.b32.xlu0 %v2680, 32
      %v2750 = vpop.permute.xlu0 %2749
      %2751 = vrot.lane.b32.xlu0 %v2682, 32
      %v2752 = vpop.permute.xlu0 %2751
      %2753 = vrot.lane.b32.xlu0 %v2684, 32
      %v2754 = vpop.permute.xlu0 %2753
      %2755 = vrot.lane.b32.xlu0 %v2686, 32
      %v2756 = vpop.permute.xlu0 %2755
      %2757 = vrot.lane.b32.xlu0 %v2688, 32
      %v2758 = vpop.permute.xlu0 %2757
      %2759 = vrot.lane.b32.xlu0 %v2690, 32
      %v2760 = vpop.permute.xlu0 %2759
      %2761 = vrot.lane.b32.xlu0 %v2692, 32
      %v2762 = vpop.permute.xlu0 %2761
      %2763 = vrot.lane.b32.xlu0 %v2694, 32
      %v2764 = vpop.permute.xlu0 %2763
      %2765 = vrot.lane.b32.xlu0 %v2696, 32
      %v2766 = vpop.permute.xlu0 %2765
      %2767 = vrot.lane.b32.xlu0 %v2698, 32
      %v2768 = vpop.permute.xlu0 %2767
      %2769 = vrot.lane.b32.xlu0 %v2700, 32
      %v2770 = vpop.permute.xlu0 %2769
      %2771 = vrot.lane.b32.xlu0 %v2702, 32
      %v2772 = vpop.permute.xlu0 %2771
      %2773 = vrot.lane.b32.xlu0 %v2704, 32
      %v2774 = vpop.permute.xlu0 %2773
      %2775 = vrot.lane.b32.xlu0 %v2706, 32
      %v2776 = vpop.permute.xlu0 %2775
      %2777 = vrot.lane.b32.xlu0 %v2708, 32
      %v2778 = vpop.permute.xlu0 %2777
      %2779 = vrot.lane.b32.xlu0 %v2710, 32
      %v2780 = vpop.permute.xlu0 %2779
      %2781 = vrot.lane.b32.xlu0 %v2712, 32
      %v2782 = vpop.permute.xlu0 %2781
      %2783 = vrot.lane.b32.xlu0 %v2714, 32
      %v2784 = vpop.permute.xlu0 %2783
      %2785 = vrot.lane.b32.xlu0 %v2716, 32
      %v2786 = vpop.permute.xlu0 %2785
      %2787 = vrot.lane.b32.xlu0 %v2715, 32
      %v2788 = vpop.permute.xlu0 %2787
      %2825 = vst.msk [vmem:[#allocation2 + $0x8] sm:$0xff] %vm2108, %v2718
      %2826 = vst.msk [vmem:[#allocation2 + $0x20] sm:$0xff] %vm2108, %v2720
      %2827 = vst.msk [vmem:[#allocation2 + $0x38] sm:$0xff] %vm2108, %v2722
      %2828 = vst.msk [vmem:[#allocation2 + $0x50] sm:$0xff] %vm2108, %v2724
      %2829 = vst.msk [vmem:[#allocation2 + $0x68] sm:$0xff] %vm2108, %v2726
      %2830 = vst.msk [vmem:[#allocation2 + $0x80] sm:$0xff] %vm2108, %v2728
      %2831 = vst.msk [vmem:[#allocation2 + $0x98] sm:$0xff] %vm2108, %v2730
      %2832 = vst.msk [vmem:[#allocation2 + $0xb0] sm:$0xff] %vm2108, %v2732
      %2833 = vst.msk [vmem:[#allocation2 + $0xc8] sm:$0xff] %vm2108, %v2734
      %2834 = vst.msk [vmem:[#allocation2 + $0xe0] sm:$0xff] %vm2108, %v2736
      %2835 = vst.msk [vmem:[#allocation2 + $0xf8] sm:$0xff] %vm2108, %v2738
      %2836 = vst.msk [vmem:[#allocation2 + $0x110] sm:$0xff] %vm2108, %v2740
      %2837 = vst.msk [vmem:[#allocation2 + $0x128] sm:$0xff] %vm2108, %v2742
      %2838 = vst.msk [vmem:[#allocation2 + $0x140] sm:$0xff] %vm2108, %v2744
      %2839 = vst.msk [vmem:[#allocation2 + $0x158] sm:$0xff] %vm2108, %v2746
      %2840 = vst.msk [vmem:[#allocation2 + $0x170] sm:$0xff] %vm2108, %v2748
      %2841 = vst.msk [vmem:[#allocation2 + $0x188] sm:$0xff] %vm2108, %v2750
      %2842 = vst.msk [vmem:[#allocation2 + $0x1a0] sm:$0xff] %vm2108, %v2752
      %2843 = vst.msk [vmem:[#allocation2 + $0x1b8] sm:$0xff] %vm2108, %v2754
      %2844 = vst.msk [vmem:[#allocation2 + $0x1d0] sm:$0xff] %vm2108, %v2756
      %2845 = vst.msk [vmem:[#allocation2 + $0x1e8] sm:$0xff] %vm2108, %v2758
      %2846 = vst.msk [vmem:[#allocation2 + $0x200] sm:$0xff] %vm2108, %v2760
      %2847 = vst.msk [vmem:[#allocation2 + $0x218] sm:$0xff] %vm2108, %v2762
      %2848 = vst.msk [vmem:[#allocation2 + $0x230] sm:$0xff] %vm2108, %v2764
      %2849 = vst.msk [vmem:[#allocation2 + $0x248] sm:$0xff] %vm2108, %v2766
      %2850 = vst.msk [vmem:[#allocation2 + $0x260] sm:$0xff] %vm2108, %v2768
      %2851 = vst.msk [vmem:[#allocation2 + $0x278] sm:$0xff] %vm2108, %v2770
      %2852 = vst.msk [vmem:[#allocation2 + $0x290] sm:$0xff] %vm2108, %v2772
      %2853 = vst.msk [vmem:[#allocation2 + $0x2a8] sm:$0xff] %vm2108, %v2774
      %2854 = vst.msk [vmem:[#allocation2 + $0x2c0] sm:$0xff] %vm2108, %v2776
      %2855 = vst.msk [vmem:[#allocation2 + $0x2d8] sm:$0xff] %vm2108, %v2778
      %2856 = vst.msk [vmem:[#allocation2 + $0x2f0] sm:$0xff] %vm2108, %v2780
      %2857 = vst.msk [vmem:[#allocation2 + $0x308] sm:$0xff] %vm2108, %v2782
      %2858 = vst.msk [vmem:[#allocation2 + $0x320] sm:$0xff] %vm2108, %v2784
      %2859 = vst.msk [vmem:[#allocation2 + $0x338] sm:$0xff] %vm2108, %v2786
      %vm2860 = vcmask 522496
      %2861 = vst.msk [vmem:[#allocation2 + $0x350] sm:$0x7f] %vm2860, %v2788
      %vm2862 = vcmask 516352
      %2863 = vst.msk [vmem:[#allocation2 + $0x357] sm:$0x1] %vm2862, 0.0
      %2864 = vrot.lane.b32.xlu0 %v2652, 64
      %v2865 = vpop.permute.xlu0 %2864
      %2866 = vrot.lane.b32.xlu0 %v2654, 64
      %v2867 = vpop.permute.xlu0 %2866
      %2868 = vrot.lane.b32.xlu0 %v2656, 64
      %v2869 = vpop.permute.xlu0 %2868
      %2870 = vrot.lane.b32.xlu0 %v2658, 64
      %v2871 = vpop.permute.xlu0 %2870
      %2872 = vrot.lane.b32.xlu0 %v2660, 64
      %v2873 = vpop.permute.xlu0 %2872
      %2874 = vrot.lane.b32.xlu0 %v2662, 64
      %v2875 = vpop.permute.xlu0 %2874
      %2876 = vrot.lane.b32.xlu0 %v2664, 64
      %v2877 = vpop.permute.xlu0 %2876
      %2878 = vrot.lane.b32.xlu0 %v2666, 64
      %v2879 = vpop.permute.xlu0 %2878
      %2880 = vrot.lane.b32.xlu0 %v2668, 64
      %v2881 = vpop.permute.xlu0 %2880
      %2882 = vrot.lane.b32.xlu0 %v2670, 64
      %v2883 = vpop.permute.xlu0 %2882
      %2884 = vrot.lane.b32.xlu0 %v2672, 64
      %v2885 = vpop.permute.xlu0 %2884
      %2886 = vrot.lane.b32.xlu0 %v2674, 64
      %v2887 = vpop.permute.xlu0 %2886
      %2888 = vrot.lane.b32.xlu0 %v2676, 64
      %v2889 = vpop.permute.xlu0 %2888
      %2890 = vrot.lane.b32.xlu0 %v2678, 64
      %v2891 = vpop.permute.xlu0 %2890
      %2892 = vrot.lane.b32.xlu0 %v2680, 64
      %v2893 = vpop.permute.xlu0 %2892
      %2894 = vrot.lane.b32.xlu0 %v2682, 64
      %v2895 = vpop.permute.xlu0 %2894
      %2896 = vrot.lane.b32.xlu0 %v2684, 64
      %v2897 = vpop.permute.xlu0 %2896
      %2898 = vrot.lane.b32.xlu0 %v2686, 64
      %v2899 = vpop.permute.xlu0 %2898
      %2900 = vrot.lane.b32.xlu0 %v2688, 64
      %v2901 = vpop.permute.xlu0 %2900
      %2902 = vrot.lane.b32.xlu0 %v2690, 64
      %v2903 = vpop.permute.xlu0 %2902
      %2904 = vrot.lane.b32.xlu0 %v2692, 64
      %v2905 = vpop.permute.xlu0 %2904
      %2906 = vrot.lane.b32.xlu0 %v2694, 64
      %v2907 = vpop.permute.xlu0 %2906
      %2908 = vrot.lane.b32.xlu0 %v2696, 64
      %v2909 = vpop.permute.xlu0 %2908
      %2910 = vrot.lane.b32.xlu0 %v2698, 64
      %v2911 = vpop.permute.xlu0 %2910
      %2912 = vrot.lane.b32.xlu0 %v2700, 64
      %v2913 = vpop.permute.xlu0 %2912
      %2914 = vrot.lane.b32.xlu0 %v2702, 64
      %v2915 = vpop.permute.xlu0 %2914
      %2916 = vrot.lane.b32.xlu0 %v2704, 64
      %v2917 = vpop.permute.xlu0 %2916
      %2918 = vrot.lane.b32.xlu0 %v2706, 64
      %v2919 = vpop.permute.xlu0 %2918
      %2920 = vrot.lane.b32.xlu0 %v2708, 64
      %v2921 = vpop.permute.xlu0 %2920
      %2922 = vrot.lane.b32.xlu0 %v2710, 64
      %v2923 = vpop.permute.xlu0 %2922
      %2924 = vrot.lane.b32.xlu0 %v2712, 64
      %v2925 = vpop.permute.xlu0 %2924
      %2926 = vrot.lane.b32.xlu0 %v2714, 64
      %v2927 = vpop.permute.xlu0 %2926
      %2928 = vrot.lane.b32.xlu0 %v2716, 64
      %v2929 = vpop.permute.xlu0 %2928
      %2930 = vrot.lane.b32.xlu0 %v2715, 64
      %v2931 = vpop.permute.xlu0 %2930
      %2966 = vst.msk [vmem:[#allocation2 + $0x8] sm:$0xff] %vm2317, %v2865
      %2967 = vst.msk [vmem:[#allocation2 + $0x20] sm:$0xff] %vm2317, %v2867
      %2968 = vst.msk [vmem:[#allocation2 + $0x38] sm:$0xff] %vm2317, %v2869
      %2969 = vst.msk [vmem:[#allocation2 + $0x50] sm:$0xff] %vm2317, %v2871
      %2970 = vst.msk [vmem:[#allocation2 + $0x68] sm:$0xff] %vm2317, %v2873
      %2971 = vst.msk [vmem:[#allocation2 + $0x80] sm:$0xff] %vm2317, %v2875
      %2972 = vst.msk [vmem:[#allocation2 + $0x98] sm:$0xff] %vm2317, %v2877
      %2973 = vst.msk [vmem:[#allocation2 + $0xb0] sm:$0xff] %vm2317, %v2879
      %2974 = vst.msk [vmem:[#allocation2 + $0xc8] sm:$0xff] %vm2317, %v2881
      %2975 = vst.msk [vmem:[#allocation2 + $0xe0] sm:$0xff] %vm2317, %v2883
      %2976 = vst.msk [vmem:[#allocation2 + $0xf8] sm:$0xff] %vm2317, %v2885
      %2977 = vst.msk [vmem:[#allocation2 + $0x110] sm:$0xff] %vm2317, %v2887
      %2978 = vst.msk [vmem:[#allocation2 + $0x128] sm:$0xff] %vm2317, %v2889
      %2979 = vst.msk [vmem:[#allocation2 + $0x140] sm:$0xff] %vm2317, %v2891
      %2980 = vst.msk [vmem:[#allocation2 + $0x158] sm:$0xff] %vm2317, %v2893
      %2981 = vst.msk [vmem:[#allocation2 + $0x170] sm:$0xff] %vm2317, %v2895
      %2982 = vst.msk [vmem:[#allocation2 + $0x188] sm:$0xff] %vm2317, %v2897
      %2983 = vst.msk [vmem:[#allocation2 + $0x1a0] sm:$0xff] %vm2317, %v2899
      %2984 = vst.msk [vmem:[#allocation2 + $0x1b8] sm:$0xff] %vm2317, %v2901
      %2985 = vst.msk [vmem:[#allocation2 + $0x1d0] sm:$0xff] %vm2317, %v2903
      %2986 = vst.msk [vmem:[#allocation2 + $0x1e8] sm:$0xff] %vm2317, %v2905
      %2987 = vst.msk [vmem:[#allocation2 + $0x200] sm:$0xff] %vm2317, %v2907
      %2988 = vst.msk [vmem:[#allocation2 + $0x218] sm:$0xff] %vm2317, %v2909
      %2989 = vst.msk [vmem:[#allocation2 + $0x230] sm:$0xff] %vm2317, %v2911
      %2990 = vst.msk [vmem:[#allocation2 + $0x248] sm:$0xff] %vm2317, %v2913
      %2991 = vst.msk [vmem:[#allocation2 + $0x260] sm:$0xff] %vm2317, %v2915
      %2992 = vst.msk [vmem:[#allocation2 + $0x278] sm:$0xff] %vm2317, %v2917
      %2993 = vst.msk [vmem:[#allocation2 + $0x290] sm:$0xff] %vm2317, %v2919
      %2994 = vst.msk [vmem:[#allocation2 + $0x2a8] sm:$0xff] %vm2317, %v2921
      %2995 = vst.msk [vmem:[#allocation2 + $0x2c0] sm:$0xff] %vm2317, %v2923
      %2996 = vst.msk [vmem:[#allocation2 + $0x2d8] sm:$0xff] %vm2317, %v2925
      %2997 = vst.msk [vmem:[#allocation2 + $0x2f0] sm:$0xff] %vm2317, %v2927
      %2998 = vst.msk [vmem:[#allocation2 + $0x308] sm:$0xff] %vm2317, %v2929
      %vm2999 = vcmask 784896
      %3000 = vst.msk [vmem:[#allocation2 + $0x320] sm:$0x7f] %vm2999, %v2931
      %vm3001 = vcmask 785927
      %3002 = vst.msk [vmem:[#allocation2 + $0x320] sm:$0x80] %vm3001, 0.0
      %3003 = vst.msk [vmem:[#allocation2 + $0x338] sm:$0xff] %vm2317, 0.0
      %3004 = vst.msk [vmem:[#allocation2 + $0x350] sm:$0xff] %vm2317, 0.0
      %vm3005 = vcmask 1045504
      %v3006 = vrot.slane %v1832, 2
      %v3007 = vrot.slane %v1833, 2
      %v3008 = vsel %vm3005, %v3006, %v3007
      %v3009 = vrot.slane %v1834, 2
      %v3010 = vsel %vm3005, %v3007, %v3009
      %v3011 = vrot.slane %v1835, 2
      %v3012 = vsel %vm3005, %v3009, %v3011
      %v3013 = vrot.slane %v1836, 2
      %v3014 = vsel %vm3005, %v3011, %v3013
      %v3015 = vrot.slane %v1837, 2
      %v3016 = vsel %vm3005, %v3013, %v3015
      %v3017 = vrot.slane %v1838, 2
      %v3018 = vsel %vm3005, %v3015, %v3017
      %v3019 = vrot.slane %v1839, 2
      %v3020 = vsel %vm3005, %v3017, %v3019
      %v3021 = vrot.slane %v1840, 2
      %v3022 = vsel %vm3005, %v3019, %v3021
      %v3023 = vrot.slane %v1841, 2
      %v3024 = vsel %vm3005, %v3021, %v3023
      %v3025 = vrot.slane %v1842, 2
      %v3026 = vsel %vm3005, %v3023, %v3025
      %v3027 = vrot.slane %v1843, 2
      %v3028 = vsel %vm3005, %v3025, %v3027
      %v3029 = vrot.slane %v1844, 2
      %v3030 = vsel %vm3005, %v3027, %v3029
      %v3031 = vrot.slane %v1845, 2
      %v3032 = vsel %vm3005, %v3029, %v3031
      %v3033 = vrot.slane %v1846, 2
      %v3034 = vsel %vm3005, %v3031, %v3033
      %v3035 = vrot.slane %v1847, 2
      %v3036 = vsel %vm3005, %v3033, %v3035
      %v3037 = vrot.slane %v1848, 2
      %v3038 = vsel %vm3005, %v3035, %v3037
      %v3039 = vrot.slane %v1849, 2
      %v3040 = vsel %vm3005, %v3037, %v3039
      %v3041 = vrot.slane %v1850, 2
      %v3042 = vsel %vm3005, %v3039, %v3041
      %v3043 = vrot.slane %v1851, 2
      %v3044 = vsel %vm3005, %v3041, %v3043
      %v3045 = vrot.slane %v1852, 2
      %v3046 = vsel %vm3005, %v3043, %v3045
      %v3047 = vrot.slane %v1853, 2
      %v3048 = vsel %vm3005, %v3045, %v3047
      %v3049 = vrot.slane %v1854, 2
      %v3050 = vsel %vm3005, %v3047, %v3049
      %v3051 = vrot.slane %v1855, 2
      %v3052 = vsel %vm3005, %v3049, %v3051
      %v3053 = vrot.slane %v1856, 2
      %v3054 = vsel %vm3005, %v3051, %v3053
      %v3055 = vrot.slane %v1857, 2
      %v3056 = vsel %vm3005, %v3053, %v3055
      %v3057 = vrot.slane %v1858, 2
      %v3058 = vsel %vm3005, %v3055, %v3057
      %v3059 = vrot.slane %v1859, 2
      %v3060 = vsel %vm3005, %v3057, %v3059
      %v3061 = vrot.slane %v1860, 2
      %v3062 = vsel %vm3005, %v3059, %v3061
      %v3063 = vrot.slane %v1861, 2
      %v3064 = vsel %vm3005, %v3061, %v3063
      %v3065 = vrot.slane %v1862, 2
      %v3066 = vsel %vm3005, %v3063, %v3065
      %v3067 = vrot.slane %v1863, 2
      %v3068 = vsel %vm3005, %v3065, %v3067
      %v3069 = vrot.slane %v1864, 2
      %v3070 = vsel %vm3005, %v3067, %v3069
      %v3071 = vrot.slane %v1865, 2
      %v3072 = vsel %vm3005, %v3069, %v3071
      %3073 = vrot.lane.b32.xlu0 %v3008, 96
      %v3074 = vpop.permute.xlu0 %3073
      %3075 = vrot.lane.b32.xlu0 %v3010, 96
      %v3076 = vpop.permute.xlu0 %3075
      %3077 = vrot.lane.b32.xlu0 %v3012, 96
      %v3078 = vpop.permute.xlu0 %3077
      %3079 = vrot.lane.b32.xlu0 %v3014, 96
      %v3080 = vpop.permute.xlu0 %3079
      %3081 = vrot.lane.b32.xlu0 %v3016, 96
      %v3082 = vpop.permute.xlu0 %3081
      %3083 = vrot.lane.b32.xlu0 %v3018, 96
      %v3084 = vpop.permute.xlu0 %3083
      %3085 = vrot.lane.b32.xlu0 %v3020, 96
      %v3086 = vpop.permute.xlu0 %3085
      %3087 = vrot.lane.b32.xlu0 %v3022, 96
      %v3088 = vpop.permute.xlu0 %3087
      %3089 = vrot.lane.b32.xlu0 %v3024, 96
      %v3090 = vpop.permute.xlu0 %3089
      %3091 = vrot.lane.b32.xlu0 %v3026, 96
      %v3092 = vpop.permute.xlu0 %3091
      %3093 = vrot.lane.b32.xlu0 %v3028, 96
      %v3094 = vpop.permute.xlu0 %3093
      %3095 = vrot.lane.b32.xlu0 %v3030, 96
      %v3096 = vpop.permute.xlu0 %3095
      %3097 = vrot.lane.b32.xlu0 %v3032, 96
      %v3098 = vpop.permute.xlu0 %3097
      %3099 = vrot.lane.b32.xlu0 %v3034, 96
      %v3100 = vpop.permute.xlu0 %3099
      %3101 = vrot.lane.b32.xlu0 %v3036, 96
      %v3102 = vpop.permute.xlu0 %3101
      %3103 = vrot.lane.b32.xlu0 %v3038, 96
      %v3104 = vpop.permute.xlu0 %3103
      %3105 = vrot.lane.b32.xlu0 %v3040, 96
      %v3106 = vpop.permute.xlu0 %3105
      %3107 = vrot.lane.b32.xlu0 %v3042, 96
      %v3108 = vpop.permute.xlu0 %3107
      %3109 = vrot.lane.b32.xlu0 %v3044, 96
      %v3110 = vpop.permute.xlu0 %3109
      %3111 = vrot.lane.b32.xlu0 %v3046, 96
      %v3112 = vpop.permute.xlu0 %3111
      %3113 = vrot.lane.b32.xlu0 %v3048, 96
      %v3114 = vpop.permute.xlu0 %3113
      %3115 = vrot.lane.b32.xlu0 %v3050, 96
      %v3116 = vpop.permute.xlu0 %3115
      %3117 = vrot.lane.b32.xlu0 %v3052, 96
      %v3118 = vpop.permute.xlu0 %3117
      %3119 = vrot.lane.b32.xlu0 %v3054, 96
      %v3120 = vpop.permute.xlu0 %3119
      %3121 = vrot.lane.b32.xlu0 %v3056, 96
      %v3122 = vpop.permute.xlu0 %3121
      %3123 = vrot.lane.b32.xlu0 %v3058, 96
      %v3124 = vpop.permute.xlu0 %3123
      %3125 = vrot.lane.b32.xlu0 %v3060, 96
      %v3126 = vpop.permute.xlu0 %3125
      %3127 = vrot.lane.b32.xlu0 %v3062, 96
      %v3128 = vpop.permute.xlu0 %3127
      %3129 = vrot.lane.b32.xlu0 %v3064, 96
      %v3130 = vpop.permute.xlu0 %3129
      %3131 = vrot.lane.b32.xlu0 %v3066, 96
      %v3132 = vpop.permute.xlu0 %3131
      %3133 = vrot.lane.b32.xlu0 %v3068, 96
      %v3134 = vpop.permute.xlu0 %3133
      %3135 = vrot.lane.b32.xlu0 %v3070, 96
      %v3136 = vpop.permute.xlu0 %3135
      %3137 = vrot.lane.b32.xlu0 %v3072, 96
      %v3138 = vpop.permute.xlu0 %3137
      %3139 = vrot.lane.b32.xlu0 %v3071, 96
      %v3140 = vpop.permute.xlu0 %3139
      %3175 = vst.msk [vmem:[#allocation2 + $0x8] sm:$0xff] %vm2526, %v3074
      %3176 = vst.msk [vmem:[#allocation2 + $0x20] sm:$0xff] %vm2526, %v3076
      %3177 = vst.msk [vmem:[#allocation2 + $0x38] sm:$0xff] %vm2526, %v3078
      %3178 = vst.msk [vmem:[#allocation2 + $0x50] sm:$0xff] %vm2526, %v3080
      %3179 = vst.msk [vmem:[#allocation2 + $0x68] sm:$0xff] %vm2526, %v3082
      %3180 = vst.msk [vmem:[#allocation2 + $0x80] sm:$0xff] %vm2526, %v3084
      %3181 = vst.msk [vmem:[#allocation2 + $0x98] sm:$0xff] %vm2526, %v3086
      %3182 = vst.msk [vmem:[#allocation2 + $0xb0] sm:$0xff] %vm2526, %v3088
      %3183 = vst.msk [vmem:[#allocation2 + $0xc8] sm:$0xff] %vm2526, %v3090
      %3184 = vst.msk [vmem:[#allocation2 + $0xe0] sm:$0xff] %vm2526, %v3092
      %3185 = vst.msk [vmem:[#allocation2 + $0xf8] sm:$0xff] %vm2526, %v3094
      %3186 = vst.msk [vmem:[#allocation2 + $0x110] sm:$0xff] %vm2526, %v3096
      %3187 = vst.msk [vmem:[#allocation2 + $0x128] sm:$0xff] %vm2526, %v3098
      %3188 = vst.msk [vmem:[#allocation2 + $0x140] sm:$0xff] %vm2526, %v3100
      %3189 = vst.msk [vmem:[#allocation2 + $0x158] sm:$0xff] %vm2526, %v3102
      %3190 = vst.msk [vmem:[#allocation2 + $0x170] sm:$0xff] %vm2526, %v3104
      %3191 = vst.msk [vmem:[#allocation2 + $0x188] sm:$0xff] %vm2526, %v3106
      %3192 = vst.msk [vmem:[#allocation2 + $0x1a0] sm:$0xff] %vm2526, %v3108
      %3193 = vst.msk [vmem:[#allocation2 + $0x1b8] sm:$0xff] %vm2526, %v3110
      %3194 = vst.msk [vmem:[#allocation2 + $0x1d0] sm:$0xff] %vm2526, %v3112
      %3195 = vst.msk [vmem:[#allocation2 + $0x1e8] sm:$0xff] %vm2526, %v3114
      %3196 = vst.msk [vmem:[#allocation2 + $0x200] sm:$0xff] %vm2526, %v3116
      %3197 = vst.msk [vmem:[#allocation2 + $0x218] sm:$0xff] %vm2526, %v3118
      %3198 = vst.msk [vmem:[#allocation2 + $0x230] sm:$0xff] %vm2526, %v3120
      %3199 = vst.msk [vmem:[#allocation2 + $0x248] sm:$0xff] %vm2526, %v3122
      %3200 = vst.msk [vmem:[#allocation2 + $0x260] sm:$0xff] %vm2526, %v3124
      %3201 = vst.msk [vmem:[#allocation2 + $0x278] sm:$0xff] %vm2526, %v3126
      %3202 = vst.msk [vmem:[#allocation2 + $0x290] sm:$0xff] %vm2526, %v3128
      %3203 = vst.msk [vmem:[#allocation2 + $0x2a8] sm:$0xff] %vm2526, %v3130
      %3204 = vst.msk [vmem:[#allocation2 + $0x2c0] sm:$0xff] %vm2526, %v3132
      %3205 = vst.msk [vmem:[#allocation2 + $0x2d8] sm:$0xff] %vm2526, %v3134
      %3206 = vst.msk [vmem:[#allocation2 + $0x2f0] sm:$0xff] %vm2526, %v3136
      %3207 = vst.msk [vmem:[#allocation2 + $0x308] sm:$0xff] %vm2526, %v3138
      %vm3208 = vcmask 1046272
      %3209 = vst.msk [vmem:[#allocation2 + $0x320] sm:$0x3f] %vm3208, %v3140
      %vm3210 = vcmask 1048326
      %3211 = vst.msk [vmem:[#allocation2 + $0x320] sm:$0xc0] %vm3210, 0.0
      %3212 = vst.msk [vmem:[#allocation2 + $0x338] sm:$0xff] %vm2526, 0.0
      %3213 = vst.msk [vmem:[#allocation2 + $0x350] sm:$0xff] %vm2526, 0.0
      %vm3214 = vcmask 1044480
      %v3215 = vrot.slane %v1832, 3
      %v3216 = vrot.slane %v1833, 3
      %v3217 = vsel %vm3214, %v3215, %v3216
      %v3218 = vrot.slane %v1834, 3
      %v3219 = vsel %vm3214, %v3216, %v3218
      %v3220 = vrot.slane %v1835, 3
      %v3221 = vsel %vm3214, %v3218, %v3220
      %v3222 = vrot.slane %v1836, 3
      %v3223 = vsel %vm3214, %v3220, %v3222
      %v3224 = vrot.slane %v1837, 3
      %v3225 = vsel %vm3214, %v3222, %v3224
      %v3226 = vrot.slane %v1838, 3
      %v3227 = vsel %vm3214, %v3224, %v3226
      %v3228 = vrot.slane %v1839, 3
      %v3229 = vsel %vm3214, %v3226, %v3228
      %v3230 = vrot.slane %v1840, 3
      %v3231 = vsel %vm3214, %v3228, %v3230
      %v3232 = vrot.slane %v1841, 3
      %v3233 = vsel %vm3214, %v3230, %v3232
      %v3234 = vrot.slane %v1842, 3
      %v3235 = vsel %vm3214, %v3232, %v3234
      %v3236 = vrot.slane %v1843, 3
      %v3237 = vsel %vm3214, %v3234, %v3236
      %v3238 = vrot.slane %v1844, 3
      %v3239 = vsel %vm3214, %v3236, %v3238
      %v3240 = vrot.slane %v1845, 3
      %v3241 = vsel %vm3214, %v3238, %v3240
      %v3242 = vrot.slane %v1846, 3
      %v3243 = vsel %vm3214, %v3240, %v3242
      %v3244 = vrot.slane %v1847, 3
      %v3245 = vsel %vm3214, %v3242, %v3244
      %v3246 = vrot.slane %v1848, 3
      %v3247 = vsel %vm3214, %v3244, %v3246
      %v3248 = vrot.slane %v1849, 3
      %v3249 = vsel %vm3214, %v3246, %v3248
      %v3250 = vrot.slane %v1850, 3
      %v3251 = vsel %vm3214, %v3248, %v3250
      %v3252 = vrot.slane %v1851, 3
      %v3253 = vsel %vm3214, %v3250, %v3252
      %v3254 = vrot.slane %v1852, 3
      %v3255 = vsel %vm3214, %v3252, %v3254
      %v3256 = vrot.slane %v1853, 3
      %v3257 = vsel %vm3214, %v3254, %v3256
      %v3258 = vrot.slane %v1854, 3
      %v3259 = vsel %vm3214, %v3256, %v3258
      %v3260 = vrot.slane %v1855, 3
      %v3261 = vsel %vm3214, %v3258, %v3260
      %v3262 = vrot.slane %v1856, 3
      %v3263 = vsel %vm3214, %v3260, %v3262
      %v3264 = vrot.slane %v1857, 3
      %v3265 = vsel %vm3214, %v3262, %v3264
      %v3266 = vrot.slane %v1858, 3
      %v3267 = vsel %vm3214, %v3264, %v3266
      %v3268 = vrot.slane %v1859, 3
      %v3269 = vsel %vm3214, %v3266, %v3268
      %v3270 = vrot.slane %v1860, 3
      %v3271 = vsel %vm3214, %v3268, %v3270
      %v3272 = vrot.slane %v1861, 3
      %v3273 = vsel %vm3214, %v3270, %v3272
      %v3274 = vrot.slane %v1862, 3
      %v3275 = vsel %vm3214, %v3272, %v3274
      %v3276 = vrot.slane %v1863, 3
      %v3277 = vsel %vm3214, %v3274, %v3276
      %v3278 = vrot.slane %v1864, 3
      %v3279 = vsel %vm3214, %v3276, %v3278
      %v3280 = vrot.slane %v1865, 3
      %v3281 = vsel %vm3214, %v3278, %v3280
      %3316 = vst.msk [vmem:[#allocation2 + $0x10] sm:$0xff] %vm1133, %v3217
      %3317 = vst.msk [vmem:[#allocation2 + $0x28] sm:$0xff] %vm1133, %v3219
      %3318 = vst.msk [vmem:[#allocation2 + $0x40] sm:$0xff] %vm1133, %v3221
      %3319 = vst.msk [vmem:[#allocation2 + $0x58] sm:$0xff] %vm1133, %v3223
      %3320 = vst.msk [vmem:[#allocation2 + $0x70] sm:$0xff] %vm1133, %v3225
      %3321 = vst.msk [vmem:[#allocation2 + $0x88] sm:$0xff] %vm1133, %v3227
      %3322 = vst.msk [vmem:[#allocation2 + $0xa0] sm:$0xff] %vm1133, %v3229
      %3323 = vst.msk [vmem:[#allocation2 + $0xb8] sm:$0xff] %vm1133, %v3231
      %3324 = vst.msk [vmem:[#allocation2 + $0xd0] sm:$0xff] %vm1133, %v3233
      %3325 = vst.msk [vmem:[#allocation2 + $0xe8] sm:$0xff] %vm1133, %v3235
      %3326 = vst.msk [vmem:[#allocation2 + $0x100] sm:$0xff] %vm1133, %v3237
      %3327 = vst.msk [vmem:[#allocation2 + $0x118] sm:$0xff] %vm1133, %v3239
      %3328 = vst.msk [vmem:[#allocation2 + $0x130] sm:$0xff] %vm1133, %v3241
      %3329 = vst.msk [vmem:[#allocation2 + $0x148] sm:$0xff] %vm1133, %v3243
      %3330 = vst.msk [vmem:[#allocation2 + $0x160] sm:$0xff] %vm1133, %v3245
      %3331 = vst.msk [vmem:[#allocation2 + $0x178] sm:$0xff] %vm1133, %v3247
      %3332 = vst.msk [vmem:[#allocation2 + $0x190] sm:$0xff] %vm1133, %v3249
      %3333 = vst.msk [vmem:[#allocation2 + $0x1a8] sm:$0xff] %vm1133, %v3251
      %3334 = vst.msk [vmem:[#allocation2 + $0x1c0] sm:$0xff] %vm1133, %v3253
      %3335 = vst.msk [vmem:[#allocation2 + $0x1d8] sm:$0xff] %vm1133, %v3255
      %3336 = vst.msk [vmem:[#allocation2 + $0x1f0] sm:$0xff] %vm1133, %v3257
      %3337 = vst.msk [vmem:[#allocation2 + $0x208] sm:$0xff] %vm1133, %v3259
      %3338 = vst.msk [vmem:[#allocation2 + $0x220] sm:$0xff] %vm1133, %v3261
      %3339 = vst.msk [vmem:[#allocation2 + $0x238] sm:$0xff] %vm1133, %v3263
      %3340 = vst.msk [vmem:[#allocation2 + $0x250] sm:$0xff] %vm1133, %v3265
      %3341 = vst.msk [vmem:[#allocation2 + $0x268] sm:$0xff] %vm1133, %v3267
      %3342 = vst.msk [vmem:[#allocation2 + $0x280] sm:$0xff] %vm1133, %v3269
      %3343 = vst.msk [vmem:[#allocation2 + $0x298] sm:$0xff] %vm1133, %v3271
      %3344 = vst.msk [vmem:[#allocation2 + $0x2b0] sm:$0xff] %vm1133, %v3273
      %3345 = vst.msk [vmem:[#allocation2 + $0x2c8] sm:$0xff] %vm1133, %v3275
      %3346 = vst.msk [vmem:[#allocation2 + $0x2e0] sm:$0xff] %vm1133, %v3277
      %3347 = vst.msk [vmem:[#allocation2 + $0x2f8] sm:$0xff] %vm1133, %v3279
      %3348 = vst.msk [vmem:[#allocation2 + $0x310] sm:$0xff] %vm1133, %v3281
      %vm3349 = vcmask 258048
      %3350 = vst.msk [vmem:[#allocation2 + $0x328] sm:$0x1f] %vm3349, %v3280
      %vm3351 = vcmask 261125
      %3352 = vst.msk [vmem:[#allocation2 + $0x328] sm:$0xe0] %vm3351, 0.0
      %3353 = vst.msk [vmem:[#allocation2 + $0x340] sm:$0xff] %vm1133, 0.0
      %3354 = vst.msk [vmem:[#allocation2 + $0x358] sm:$0xff] %vm1133, 0.0
      %v3355 = vld [vmem:[#allocation2] sm:$0xff]
      %v3356 = vld [vmem:[#allocation2 + $0x8] sm:$0xff]
      %v3357 = vld [vmem:[#allocation2 + $0x10] sm:$0xff]
      %v3358 = vld [vmem:[#allocation2 + $0x18] sm:$0xff]
      %v3359 = vld [vmem:[#allocation2 + $0x20] sm:$0xff]
      %v3360 = vld [vmem:[#allocation2 + $0x28] sm:$0xff]
      %v3361 = vld [vmem:[#allocation2 + $0x30] sm:$0xff]
      %v3362 = vld [vmem:[#allocation2 + $0x38] sm:$0xff]
      %v3363 = vld [vmem:[#allocation2 + $0x40] sm:$0xff]
      %v3364 = vld [vmem:[#allocation2 + $0x48] sm:$0xff]
      %v3365 = vld [vmem:[#allocation2 + $0x50] sm:$0xff]
      %v3366 = vld [vmem:[#allocation2 + $0x58] sm:$0xff]
      %v3367 = vld [vmem:[#allocation2 + $0x60] sm:$0xff]
      %v3368 = vld [vmem:[#allocation2 + $0x68] sm:$0xff]
      %v3369 = vld [vmem:[#allocation2 + $0x70] sm:$0xff]
      %v3370 = vld [vmem:[#allocation2 + $0x78] sm:$0xff]
      %v3371 = vld [vmem:[#allocation2 + $0x80] sm:$0xff]
      %v3372 = vld [vmem:[#allocation2 + $0x88] sm:$0xff]
      %v3373 = vld [vmem:[#allocation2 + $0x90] sm:$0xff]
      %v3374 = vld [vmem:[#allocation2 + $0x98] sm:$0xff]
      %v3375 = vld [vmem:[#allocation2 + $0xa0] sm:$0xff]
      %v3376 = vld [vmem:[#allocation2 + $0xa8] sm:$0xff]
      %v3377 = vld [vmem:[#allocation2 + $0xb0] sm:$0xff]
      %v3378 = vld [vmem:[#allocation2 + $0xb8] sm:$0xff]
      %v3379 = vld [vmem:[#allocation2 + $0xc0] sm:$0xff]
      %v3380 = vld [vmem:[#allocation2 + $0xc8] sm:$0xff]
      %v3381 = vld [vmem:[#allocation2 + $0xd0] sm:$0xff]
      %v3382 = vld [vmem:[#allocation2 + $0xd8] sm:$0xff]
      %v3383 = vld [vmem:[#allocation2 + $0xe0] sm:$0xff]
      %v3384 = vld [vmem:[#allocation2 + $0xe8] sm:$0xff]
      %v3385 = vld [vmem:[#allocation2 + $0xf0] sm:$0xff]
      %v3386 = vld [vmem:[#allocation2 + $0xf8] sm:$0xff]
      %v3387 = vld [vmem:[#allocation2 + $0x100] sm:$0xff]
      %v3388 = vld [vmem:[#allocation2 + $0x108] sm:$0xff]
      %v3389 = vld [vmem:[#allocation2 + $0x110] sm:$0xff]
      %v3390 = vld [vmem:[#allocation2 + $0x118] sm:$0xff]
      %v3391 = vld [vmem:[#allocation2 + $0x120] sm:$0xff]
      %v3392 = vld [vmem:[#allocation2 + $0x128] sm:$0xff]
      %v3393 = vld [vmem:[#allocation2 + $0x130] sm:$0xff]
      %v3394 = vld [vmem:[#allocation2 + $0x138] sm:$0xff]
      %v3395 = vld [vmem:[#allocation2 + $0x140] sm:$0xff]
      %v3396 = vld [vmem:[#allocation2 + $0x148] sm:$0xff]
      %v3397 = vld [vmem:[#allocation2 + $0x150] sm:$0xff]
      %v3398 = vld [vmem:[#allocation2 + $0x158] sm:$0xff]
      %v3399 = vld [vmem:[#allocation2 + $0x160] sm:$0xff]
      %v3400 = vld [vmem:[#allocation2 + $0x168] sm:$0xff]
      %v3401 = vld [vmem:[#allocation2 + $0x170] sm:$0xff]
      %v3402 = vld [vmem:[#allocation2 + $0x178] sm:$0xff]
      %v3403 = vld [vmem:[#allocation2 + $0x180] sm:$0xff]
      %v3404 = vld [vmem:[#allocation2 + $0x188] sm:$0xff]
      %v3405 = vld [vmem:[#allocation2 + $0x190] sm:$0xff]
      %v3406 = vld [vmem:[#allocation2 + $0x198] sm:$0xff]
      %v3407 = vld [vmem:[#allocation2 + $0x1a0] sm:$0xff]
      %v3408 = vld [vmem:[#allocation2 + $0x1a8] sm:$0xff]
      %v3409 = vld [vmem:[#allocation2 + $0x1b0] sm:$0xff]
      %v3410 = vld [vmem:[#allocation2 + $0x1b8] sm:$0xff]
      %v3411 = vld [vmem:[#allocation2 + $0x1c0] sm:$0xff]
      %v3412 = vld [vmem:[#allocation2 + $0x1c8] sm:$0xff]
      %v3413 = vld [vmem:[#allocation2 + $0x1d0] sm:$0xff]
      %v3414 = vld [vmem:[#allocation2 + $0x1d8] sm:$0xff]
      %v3415 = vld [vmem:[#allocation2 + $0x1e0] sm:$0xff]
      %v3416 = vld [vmem:[#allocation2 + $0x1e8] sm:$0xff]
      %v3417 = vld [vmem:[#allocation2 + $0x1f0] sm:$0xff]
      %v3418 = vld [vmem:[#allocation2 + $0x1f8] sm:$0xff]
      %v3419 = vld [vmem:[#allocation2 + $0x200] sm:$0xff]
      %v3420 = vld [vmem:[#allocation2 + $0x208] sm:$0xff]
      %v3421 = vld [vmem:[#allocation2 + $0x210] sm:$0xff]
      %v3422 = vld [vmem:[#allocation2 + $0x218] sm:$0xff]
      %v3423 = vld [vmem:[#allocation2 + $0x220] sm:$0xff]
      %v3424 = vld [vmem:[#allocation2 + $0x228] sm:$0xff]
      %v3425 = vld [vmem:[#allocation2 + $0x230] sm:$0xff]
      %v3426 = vld [vmem:[#allocation2 + $0x238] sm:$0xff]
      %v3427 = vld [vmem:[#allocation2 + $0x240] sm:$0xff]
      %v3428 = vld [vmem:[#allocation2 + $0x248] sm:$0xff]
      %v3429 = vld [vmem:[#allocation2 + $0x250] sm:$0xff]
      %v3430 = vld [vmem:[#allocation2 + $0x258] sm:$0xff]
      %v3431 = vld [vmem:[#allocation2 + $0x260] sm:$0xff]
      %v3432 = vld [vmem:[#allocation2 + $0x268] sm:$0xff]
      %v3433 = vld [vmem:[#allocation2 + $0x270] sm:$0xff]
      %v3434 = vld [vmem:[#allocation2 + $0x278] sm:$0xff]
      %v3435 = vld [vmem:[#allocation2 + $0x280] sm:$0xff]
      %v3436 = vld [vmem:[#allocation2 + $0x288] sm:$0xff]
      %v3437 = vld [vmem:[#allocation2 + $0x290] sm:$0xff]
      %v3438 = vld [vmem:[#allocation2 + $0x298] sm:$0xff]
      %v3439 = vld [vmem:[#allocation2 + $0x2a0] sm:$0xff]
      %v3440 = vld [vmem:[#allocation2 + $0x2a8] sm:$0xff]
      %v3441 = vld [vmem:[#allocation2 + $0x2b0] sm:$0xff]
      %v3442 = vld [vmem:[#allocation2 + $0x2b8] sm:$0xff]
      %v3443 = vld [vmem:[#allocation2 + $0x2c0] sm:$0xff]
      %v3444 = vld [vmem:[#allocation2 + $0x2c8] sm:$0xff]
      %v3445 = vld [vmem:[#allocation2 + $0x2d0] sm:$0xff]
      %v3446 = vld [vmem:[#allocation2 + $0x2d8] sm:$0xff]
      %v3447 = vld [vmem:[#allocation2 + $0x2e0] sm:$0xff]
      %v3448 = vld [vmem:[#allocation2 + $0x2e8] sm:$0xff]
      %v3449 = vld [vmem:[#allocation2 + $0x2f0] sm:$0xff]
      %v3450 = vld [vmem:[#allocation2 + $0x2f8] sm:$0xff]
      %v3451 = vld [vmem:[#allocation2 + $0x300] sm:$0xff]
      %v3452 = vld [vmem:[#allocation2 + $0x308] sm:$0xff]
      %v3453 = vld [vmem:[#allocation2 + $0x310] sm:$0xff]
      %v3454 = vld [vmem:[#allocation2 + $0x318] sm:$0xff]
      %v3455 = vld [vmem:[#allocation2 + $0x320] sm:$0xff]
      %v3456 = vld [vmem:[#allocation2 + $0x328] sm:$0xff]
      %v3457 = vld [vmem:[#allocation2 + $0x330] sm:$0xff]
      %v3458 = vld [vmem:[#allocation2 + $0x338] sm:$0xff]
      %v3459 = vld [vmem:[#allocation2 + $0x340] sm:$0xff]
      %v3460 = vld [vmem:[#allocation2 + $0x348] sm:$0xff]
      %v3461 = vld [vmem:[#allocation2 + $0x350] sm:$0xff]
      %v3462 = vld [vmem:[#allocation2 + $0x358] sm:$0xff]
      %v3463 = vpack.c.bf16 %v3358, %v3355
      %v3464 = vpack.c.bf16 %v3359, %v3356
      %v3465 = vpack.c.bf16 %v3360, %v3357
      %v3466 = vpack.c.bf16 %v3364, %v3361
      %v3467 = vpack.c.bf16 %v3365, %v3362
      %v3468 = vpack.c.bf16 %v3366, %v3363
      %v3469 = vpack.c.bf16 %v3370, %v3367
      %v3470 = vpack.c.bf16 %v3371, %v3368
      %v3471 = vpack.c.bf16 %v3372, %v3369
      %v3472 = vpack.c.bf16 %v3376, %v3373
      %v3473 = vpack.c.bf16 %v3377, %v3374
      %v3474 = vpack.c.bf16 %v3378, %v3375
      %v3475 = vpack.c.bf16 %v3382, %v3379
      %v3476 = vpack.c.bf16 %v3383, %v3380
      %v3477 = vpack.c.bf16 %v3384, %v3381
      %v3478 = vpack.c.bf16 %v3388, %v3385
      %v3479 = vpack.c.bf16 %v3389, %v3386
      %v3480 = vpack.c.bf16 %v3390, %v3387
      %v3481 = vpack.c.bf16 %v3394, %v3391
      %v3482 = vpack.c.bf16 %v3395, %v3392
      %v3483 = vpack.c.bf16 %v3396, %v3393
      %v3484 = vpack.c.bf16 %v3400, %v3397
      %v3485 = vpack.c.bf16 %v3401, %v3398
      %v3486 = vpack.c.bf16 %v3402, %v3399
      %v3487 = vpack.c.bf16 %v3406, %v3403
      %v3488 = vpack.c.bf16 %v3407, %v3404
      %v3489 = vpack.c.bf16 %v3408, %v3405
      %v3490 = vpack.c.bf16 %v3412, %v3409
      %v3491 = vpack.c.bf16 %v3413, %v3410
      %v3492 = vpack.c.bf16 %v3414, %v3411
      %v3493 = vpack.c.bf16 %v3418, %v3415
      %v3494 = vpack.c.bf16 %v3419, %v3416
      %v3495 = vpack.c.bf16 %v3420, %v3417
      %v3496 = vpack.c.bf16 %v3424, %v3421
      %v3497 = vpack.c.bf16 %v3425, %v3422
      %v3498 = vpack.c.bf16 %v3426, %v3423
      %v3499 = vpack.c.bf16 %v3430, %v3427
      %v3500 = vpack.c.bf16 %v3431, %v3428
      %v3501 = vpack.c.bf16 %v3432, %v3429
      %v3502 = vpack.c.bf16 %v3436, %v3433
      %v3503 = vpack.c.bf16 %v3437, %v3434
      %v3504 = vpack.c.bf16 %v3438, %v3435
      %v3505 = vpack.c.bf16 %v3442, %v3439
      %v3506 = vpack.c.bf16 %v3443, %v3440
      %v3507 = vpack.c.bf16 %v3444, %v3441
      %v3508 = vpack.c.bf16 %v3448, %v3445
      %v3509 = vpack.c.bf16 %v3449, %v3446
      %v3510 = vpack.c.bf16 %v3450, %v3447
      %v3511 = vpack.c.bf16 %v3454, %v3451
      %v3512 = vpack.c.bf16 %v3455, %v3452
      %v3513 = vpack.c.bf16 %v3456, %v3453
      %v3514 = vpack.c.bf16 %v3460, %v3457
      %v3515 = vpack.c.bf16 %v3461, %v3458
      %v3516 = vpack.c.bf16 %v3462, %v3459
      %v3517 = vld [vmem:[%s6] sm:$0xf]
      %v3518 = vld [vmem:[%s6 + $0x4] sm:$0xf]
      %v3519 = vld [vmem:[%s6 + $0x8] sm:$0xf]
      %v3520 = vld [vmem:[%s6 + $0xc] sm:$0xf]
      %v3521 = vld [vmem:[%s6 + $0x10] sm:$0xf]
      %v3522 = vld [vmem:[%s6 + $0x14] sm:$0xf]
      %v3523 = vld [vmem:[%s6 + $0x18] sm:$0xf]
      %v3524 = vld [vmem:[%s6 + $0x1c] sm:$0xf]
      %v3525 = vld [vmem:[%s6 + $0x20] sm:$0xf]
      %v3526 = vld [vmem:[%s6 + $0x24] sm:$0xf]
      %v3527 = vld [vmem:[%s6 + $0x28] sm:$0xf]
      %v3528 = vld [vmem:[%s6 + $0x2c] sm:$0xf]
      %v3529 = vld [vmem:[%s6 + $0x30] sm:$0xf]
      %v3530 = vld [vmem:[%s6 + $0x34] sm:$0xf]
      %v3531 = vld [vmem:[%s6 + $0x38] sm:$0xf]
      %v3532 = vld [vmem:[%s6 + $0x3c] sm:$0xf]
      %v3533 = vld [vmem:[%s6 + $0x40] sm:$0xf]
      %v3534 = vld [vmem:[%s6 + $0x44] sm:$0xf]
      %v3535 = vld [vmem:[%s6 + $0x48] sm:$0xf]
      %v3536 = vld [vmem:[%s6 + $0x4c] sm:$0xf]
      %v3537 = vld [vmem:[%s6 + $0x50] sm:$0xf]
      %v3538 = vld [vmem:[%s6 + $0x54] sm:$0xf]
      %v3539 = vld [vmem:[%s6 + $0x58] sm:$0xf]
      %v3540 = vld [vmem:[%s6 + $0x5c] sm:$0xf]
      %v3541 = vld [vmem:[%s6 + $0x60] sm:$0xf]
      %v3542 = vld [vmem:[%s6 + $0x64] sm:$0xf]
      %v3543 = vld [vmem:[%s6 + $0x68] sm:$0xf]
      %v3544 = vld [vmem:[%s6 + $0x6c] sm:$0xf]
      %v3545 = vld [vmem:[%s6 + $0x70] sm:$0xf]
      %v3546 = vld [vmem:[%s6 + $0x74] sm:$0xf]
      %v3547 = vld [vmem:[%s6 + $0x78] sm:$0xf]
      %v3548 = vld [vmem:[%s6 + $0x7c] sm:$0xf]
      %v3549 = vld [vmem:[%s6 + $0x80] sm:$0xf]
      %v3550 = vld [vmem:[%s6 + $0x84] sm:$0xf]
      %v3551 = vld [vmem:[%s6 + $0x88] sm:$0xf]
      %v3552 = vld [vmem:[%s6 + $0x8c] sm:$0xf]
      %v3553 = vld [vmem:[%s7] sm:$0x1]
      %v3555 = vlaneseq
      %v3556 = vshrl.u32 %v3555, 7
      %v3557 = vsub.s32 0, %v3556
      %v3558 = vrot.slane %v3553, %v3557
      %v3596 = vunpack.c.l.b16 %v3517
      %v3597 = vunpack.c.l.b16 %v3518
      %v3598 = vunpack.c.l.b16 %v3519
      %v3599 = vunpack.c.l.b16 %v3520
      %v3600 = vunpack.c.l.b16 %v3521
      %v3601 = vunpack.c.l.b16 %v3522
      %v3602 = vunpack.c.l.b16 %v3523
      %v3603 = vunpack.c.l.b16 %v3524
      %v3604 = vunpack.c.l.b16 %v3525
      %v3605 = vunpack.c.l.b16 %v3526
      %v3606 = vunpack.c.l.b16 %v3527
      %v3607 = vunpack.c.l.b16 %v3528
      %v3608 = vunpack.c.l.b16 %v3529
      %v3609 = vunpack.c.l.b16 %v3530
      %v3610 = vunpack.c.l.b16 %v3531
      %v3611 = vunpack.c.l.b16 %v3532
      %v3612 = vunpack.c.l.b16 %v3533
      %v3613 = vunpack.c.l.b16 %v3534
      %v3614 = vunpack.c.l.b16 %v3535
      %v3615 = vunpack.c.l.b16 %v3536
      %v3616 = vunpack.c.l.b16 %v3537
      %v3617 = vunpack.c.l.b16 %v3538
      %v3618 = vunpack.c.l.b16 %v3539
      %v3619 = vunpack.c.l.b16 %v3540
      %v3620 = vunpack.c.l.b16 %v3541
      %v3621 = vunpack.c.l.b16 %v3542
      %v3622 = vunpack.c.l.b16 %v3543
      %v3623 = vunpack.c.l.b16 %v3544
      %v3624 = vunpack.c.l.b16 %v3545
      %v3625 = vunpack.c.l.b16 %v3546
      %v3626 = vunpack.c.l.b16 %v3547
      %v3627 = vunpack.c.l.b16 %v3548
      %v3628 = vunpack.c.l.b16 %v3549
      %v3629 = vunpack.c.l.b16 %v3550
      %v3630 = vunpack.c.l.b16 %v3551
      %v3631 = vunpack.c.l.b16 %v3552
      %v3632 = vpack.c.b16 %v3597, %v3596
      %v3633 = vpack.c.b16 %v3599, %v3598
      %v3634 = vpack.c.b16 %v3601, %v3600
      %v3635 = vpack.c.b16 %v3603, %v3602
      %v3636 = vpack.c.b16 %v3605, %v3604
      %v3637 = vpack.c.b16 %v3607, %v3606
      %v3638 = vpack.c.b16 %v3609, %v3608
      %v3639 = vpack.c.b16 %v3611, %v3610
      %v3640 = vpack.c.b16 %v3613, %v3612
      %v3641 = vpack.c.b16 %v3615, %v3614
      %v3642 = vpack.c.b16 %v3617, %v3616
      %v3643 = vpack.c.b16 %v3619, %v3618
      %v3644 = vpack.c.b16 %v3621, %v3620
      %v3645 = vpack.c.b16 %v3623, %v3622
      %v3646 = vpack.c.b16 %v3625, %v3624
      %v3647 = vpack.c.b16 %v3627, %v3626
      %v3648 = vpack.c.b16 %v3629, %v3628
      %v3649 = vpack.c.b16 %v3631, %v3630
      %v3669 = vsel %vm1133, %v3465, 0
      %v3672 = vsel %vm1133, %v3468, 0
      %v3675 = vsel %vm1133, %v3471, 0
      %v3678 = vsel %vm1133, %v3474, 0
      %v3681 = vsel %vm1133, %v3477, 0
      %v3684 = vsel %vm1133, %v3480, 0
      %v3687 = vsel %vm1133, %v3483, 0
      %v3690 = vsel %vm1133, %v3486, 0
      %v3693 = vsel %vm1133, %v3489, 0
      %v3696 = vsel %vm1133, %v3492, 0
      %v3699 = vsel %vm1133, %v3495, 0
      %v3702 = vsel %vm1133, %v3498, 0
      %v3705 = vsel %vm1133, %v3501, 0
      %v3708 = vsel %vm1133, %v3504, 0
      %v3711 = vsel %vm1133, %v3507, 0
      %v3714 = vsel %vm1133, %v3510, 0
      %v3717 = vsel %vm1133, %v3513, 0
      %v3720 = vsel %vm1133, %v3516, 0
      %3722 = vmatprep.subr.bf16.mxu0 0
      %3723 = vmatpush1.bf16.msra.mxu0 %v3639
      %3724 = vmatprep.subr.bf16.mxu0 0
      %3725 = vmatpush1.bf16.msra.mxu0 %v3638
      %3726 = vmatprep.subr.bf16.mxu0 0
      %3727 = vmatpush1.bf16.msra.mxu0 %v3637
      %3728 = vmatprep.subr.bf16.mxu0 0
      %3729 = vmatpush1.bf16.msra.mxu0 %v3636
      %3730 = vmatprep.subr.bf16.mxu0 0
      %3731 = vmatpush1.bf16.msra.mxu0 %v3635
      %3732 = vmatprep.subr.bf16.mxu0 0
      %3733 = vmatpush1.bf16.msra.mxu0 %v3634
      %3734 = vmatprep.subr.bf16.mxu0 0
      %3735 = vmatpush1.bf16.msra.mxu0 %v3633
      %3736 = vmatprep.subr.bf16.mxu0 0
      %3737 = vmatpush1.bf16.msra.mxu0 %v3632
      %3738 = vmatprep.subr.bf16.mxu0 0
      %3739 = vmatpush2.bf16.msra.mxu0 %v3647
      %3740 = vmatprep.subr.bf16.mxu0 0
      %3741 = vmatpush2.bf16.msra.mxu0 %v3646
      %3742 = vmatprep.subr.bf16.mxu0 0
      %3743 = vmatpush2.bf16.msra.mxu0 %v3645
      %3744 = vmatprep.subr.bf16.mxu0 0
      %3745 = vmatpush2.bf16.msra.mxu0 %v3644
      %3746 = vmatprep.subr.bf16.mxu0 0
      %3747 = vmatpush2.bf16.msra.mxu0 %v3643
      %3748 = vmatprep.subr.bf16.mxu0 0
      %3749 = vmatpush2.bf16.msra.mxu0 %v3642
      %3750 = vmatprep.subr.bf16.mxu0 0
      %3751 = vmatpush2.bf16.msra.mxu0 %v3641
      %3752 = vmatprep.subr.bf16.mxu0 0
      %3753 = vmatpush2.bf16.msra.mxu0 %v3640
      %3754 = vmatprep.mubr.bf16.mxu0 %v3464
      %3755 = vmatmul.mubr.bf16.gmra.mxu0 %v3463
      %v3756 = vpop.f32.mrf.mxu0
      %v3757 = vadd.f32 %v3558, %v3756
      %v3758 = vpop.f32.mrf.mxu0
      %v3759 = vpop.f32.mrf.mxu0
      %v3760 = vadd.f32 %v3558, %v3759
      %v3761 = vpop.f32.mrf.mxu0
      %3762 = vmatprep.mubr.bf16.mxu0 %v3467
      %3763 = vmatmul.mubr.bf16.gmra.mxu0 %v3466
      %v3764 = vpop.f32.mrf.mxu0
      %v3765 = vadd.f32 %v3558, %v3764
      %v3766 = vpop.f32.mrf.mxu0
      %v3767 = vpop.f32.mrf.mxu0
      %v3768 = vadd.f32 %v3558, %v3767
      %v3769 = vpop.f32.mrf.mxu0
      %3770 = vmatprep.mubr.bf16.mxu0 %v3470
      %3771 = vmatmul.mubr.bf16.gmra.mxu0 %v3469
      %v3772 = vpop.f32.mrf.mxu0
      %v3773 = vadd.f32 %v3558, %v3772
      %v3774 = vpop.f32.mrf.mxu0
      %v3775 = vpop.f32.mrf.mxu0
      %v3776 = vadd.f32 %v3558, %v3775
      %v3777 = vpop.f32.mrf.mxu0
      %3778 = vmatprep.mubr.bf16.mxu0 %v3473
      %3779 = vmatmul.mubr.bf16.gmra.mxu0 %v3472
      %v3780 = vpop.f32.mrf.mxu0
      %v3781 = vadd.f32 %v3558, %v3780
      %v3782 = vpop.f32.mrf.mxu0
      %v3783 = vpop.f32.mrf.mxu0
      %v3784 = vadd.f32 %v3558, %v3783
      %v3785 = vpop.f32.mrf.mxu0
      %3786 = vmatprep.mubr.bf16.mxu0 %v3476
      %3787 = vmatmul.mubr.bf16.gmra.mxu0 %v3475
      %v3788 = vpop.f32.mrf.mxu0
      %v3789 = vadd.f32 %v3558, %v3788
      %v3790 = vpop.f32.mrf.mxu0
      %v3791 = vpop.f32.mrf.mxu0
      %v3792 = vadd.f32 %v3558, %v3791
      %v3793 = vpop.f32.mrf.mxu0
      %3794 = vmatprep.mubr.bf16.mxu0 %v3479
      %3795 = vmatmul.mubr.bf16.gmra.mxu0 %v3478
      %v3796 = vpop.f32.mrf.mxu0
      %v3797 = vadd.f32 %v3558, %v3796
      %v3798 = vpop.f32.mrf.mxu0
      %v3799 = vpop.f32.mrf.mxu0
      %v3800 = vadd.f32 %v3558, %v3799
      %v3801 = vpop.f32.mrf.mxu0
      %3802 = vmatprep.mubr.bf16.mxu0 %v3482
      %3803 = vmatmul.mubr.bf16.gmra.mxu0 %v3481
      %v3804 = vpop.f32.mrf.mxu0
      %v3805 = vadd.f32 %v3558, %v3804
      %v3806 = vpop.f32.mrf.mxu0
      %v3807 = vpop.f32.mrf.mxu0
      %v3808 = vadd.f32 %v3558, %v3807
      %v3809 = vpop.f32.mrf.mxu0
      %3810 = vmatprep.mubr.bf16.mxu0 %v3485
      %3811 = vmatmul.mubr.bf16.gmra.mxu0 %v3484
      %v3812 = vpop.f32.mrf.mxu0
      %v3813 = vadd.f32 %v3558, %v3812
      %v3814 = vpop.f32.mrf.mxu0
      %v3815 = vpop.f32.mrf.mxu0
      %v3816 = vadd.f32 %v3558, %v3815
      %v3817 = vpop.f32.mrf.mxu0
      %3818 = vmatprep.mubr.bf16.mxu0 %v3488
      %3819 = vmatmul.mubr.bf16.gmra.mxu0 %v3487
      %v3820 = vpop.f32.mrf.mxu0
      %v3821 = vadd.f32 %v3558, %v3820
      %v3822 = vpop.f32.mrf.mxu0
      %v3823 = vpop.f32.mrf.mxu0
      %v3824 = vadd.f32 %v3558, %v3823
      %v3825 = vpop.f32.mrf.mxu0
      %3826 = vmatprep.mubr.bf16.mxu0 %v3491
      %3827 = vmatmul.mubr.bf16.gmra.mxu0 %v3490
      %v3828 = vpop.f32.mrf.mxu0
      %v3829 = vadd.f32 %v3558, %v3828
      %v3830 = vpop.f32.mrf.mxu0
      %v3831 = vpop.f32.mrf.mxu0
      %v3832 = vadd.f32 %v3558, %v3831
      %v3833 = vpop.f32.mrf.mxu0
      %3834 = vmatprep.mubr.bf16.mxu0 %v3494
      %3835 = vmatmul.mubr.bf16.gmra.mxu0 %v3493
      %v3836 = vpop.f32.mrf.mxu0
      %v3837 = vadd.f32 %v3558, %v3836
      %v3838 = vpop.f32.mrf.mxu0
      %v3839 = vpop.f32.mrf.mxu0
      %v3840 = vadd.f32 %v3558, %v3839
      %v3841 = vpop.f32.mrf.mxu0
      %3842 = vmatprep.mubr.bf16.mxu0 %v3497
      %3843 = vmatmul.mubr.bf16.gmra.mxu0 %v3496
      %v3844 = vpop.f32.mrf.mxu0
      %v3845 = vadd.f32 %v3558, %v3844
      %v3846 = vpop.f32.mrf.mxu0
      %v3847 = vpop.f32.mrf.mxu0
      %v3848 = vadd.f32 %v3558, %v3847
      %v3849 = vpop.f32.mrf.mxu0
      %3850 = vmatprep.mubr.bf16.mxu0 %v3500
      %3851 = vmatmul.mubr.bf16.gmra.mxu0 %v3499
      %v3852 = vpop.f32.mrf.mxu0
      %v3853 = vadd.f32 %v3558, %v3852
      %v3854 = vpop.f32.mrf.mxu0
      %v3855 = vpop.f32.mrf.mxu0
      %v3856 = vadd.f32 %v3558, %v3855
      %v3857 = vpop.f32.mrf.mxu0
      %3858 = vmatprep.mubr.bf16.mxu0 %v3503
      %3859 = vmatmul.mubr.bf16.gmra.mxu0 %v3502
      %v3860 = vpop.f32.mrf.mxu0
      %v3861 = vadd.f32 %v3558, %v3860
      %v3862 = vpop.f32.mrf.mxu0
      %v3863 = vpop.f32.mrf.mxu0
      %v3864 = vadd.f32 %v3558, %v3863
      %v3865 = vpop.f32.mrf.mxu0
      %3866 = vmatprep.mubr.bf16.mxu0 %v3506
      %3867 = vmatmul.mubr.bf16.gmra.mxu0 %v3505
      %v3868 = vpop.f32.mrf.mxu0
      %v3869 = vadd.f32 %v3558, %v3868
      %v3870 = vpop.f32.mrf.mxu0
      %v3871 = vpop.f32.mrf.mxu0
      %v3872 = vadd.f32 %v3558, %v3871
      %v3873 = vpop.f32.mrf.mxu0
      %3874 = vmatprep.mubr.bf16.mxu0 %v3509
      %3875 = vmatmul.mubr.bf16.gmra.mxu0 %v3508
      %v3876 = vpop.f32.mrf.mxu0
      %v3877 = vadd.f32 %v3558, %v3876
      %v3878 = vpop.f32.mrf.mxu0
      %v3879 = vpop.f32.mrf.mxu0
      %v3880 = vadd.f32 %v3558, %v3879
      %v3881 = vpop.f32.mrf.mxu0
      %3882 = vmatprep.mubr.bf16.mxu0 %v3512
      %3883 = vmatmul.mubr.bf16.gmra.mxu0 %v3511
      %v3884 = vpop.f32.mrf.mxu0
      %v3885 = vadd.f32 %v3558, %v3884
      %v3886 = vpop.f32.mrf.mxu0
      %v3887 = vpop.f32.mrf.mxu0
      %v3888 = vadd.f32 %v3558, %v3887
      %v3889 = vpop.f32.mrf.mxu0
      %3890 = vmatprep.mubr.bf16.mxu0 %v3515
      %3891 = vmatmul.mubr.bf16.gmra.mxu0 %v3514
      %v3892 = vpop.f32.mrf.mxu0
      %v3893 = vadd.f32 %v3558, %v3892
      %v3894 = vpop.f32.mrf.mxu0
      %v3895 = vpop.f32.mrf.mxu0
      %v3896 = vadd.f32 %v3558, %v3895
      %v3897 = vpop.f32.mrf.mxu0
      %3898 = vdwg.mxu0
      %3899 = vmatprep.subr.bf16.mxu0 0
      %3900 = vmatpush1.bf16.msra.mxu0 0
      %3901 = vmatprep.subr.bf16.mxu0 0
      %3902 = vmatpush1.bf16.msra.mxu0 0
      %3903 = vmatprep.subr.bf16.mxu0 0
      %3904 = vmatpush1.bf16.msra.mxu0 0
      %3905 = vmatprep.subr.bf16.mxu0 0
      %3906 = vmatpush1.bf16.msra.mxu0 0
      %3907 = vmatprep.subr.bf16.mxu0 0
      %3908 = vmatpush1.bf16.msra.mxu0 0
      %3909 = vmatprep.subr.bf16.mxu0 0
      %3910 = vmatpush1.bf16.msra.mxu0 0
      %3911 = vmatprep.subr.bf16.mxu0 0
      %3912 = vmatpush1.bf16.msra.mxu0 %v3649
      %3913 = vmatprep.subr.bf16.mxu0 0
      %3914 = vmatpush1.bf16.msra.mxu0 %v3648
      %3915 = vmatprep.subr.bf16.mxu0 0
      %3916 = vmatpush2.bf16.msra.mxu0 0
      %3917 = vmatprep.subr.bf16.mxu0 0
      %3918 = vmatpush2.bf16.msra.mxu0 0
      %3919 = vmatprep.subr.bf16.mxu0 0
      %3920 = vmatpush2.bf16.msra.mxu0 0
      %3921 = vmatprep.subr.bf16.mxu0 0
      %3922 = vmatpush2.bf16.msra.mxu0 0
      %3923 = vmatprep.subr.bf16.mxu0 0
      %3924 = vmatpush2.bf16.msra.mxu0 0
      %3925 = vmatprep.subr.bf16.mxu0 0
      %3926 = vmatpush2.bf16.msra.mxu0 0
      %3927 = vmatprep.subr.bf16.mxu0 0
      %3928 = vmatpush2.bf16.msra.mxu0 0
      %3929 = vmatprep.subr.bf16.mxu0 0
      %3930 = vmatpush2.bf16.msra.mxu0 0
      %3931 = vmatprep.mubr.bf16.mxu0 0
      %3932 = vmatmul.mubr.bf16.gmra.mxu0 %v3669
      %v3933 = vpop.f32.mrf.mxu0
      %v3934 = vadd.f32 %v3757, %v3933
      %v3935 = vpop.f32.mrf.mxu0
      %v3936 = vpop.f32.mrf.mxu0
      %v3937 = vadd.f32 %v3760, %v3936
      %v3938 = vpop.f32.mrf.mxu0
      %3939 = vmatprep.mubr.bf16.mxu0 0
      %3940 = vmatmul.mubr.bf16.gmra.mxu0 %v3672
      %v3941 = vpop.f32.mrf.mxu0
      %v3942 = vadd.f32 %v3765, %v3941
      %v3943 = vpop.f32.mrf.mxu0
      %v3944 = vpop.f32.mrf.mxu0
      %v3945 = vadd.f32 %v3768, %v3944
      %v3946 = vpop.f32.mrf.mxu0
      %3947 = vmatprep.mubr.bf16.mxu0 0
      %3948 = vmatmul.mubr.bf16.gmra.mxu0 %v3675
      %v3949 = vpop.f32.mrf.mxu0
      %v3950 = vadd.f32 %v3773, %v3949
      %v3951 = vpop.f32.mrf.mxu0
      %v3952 = vpop.f32.mrf.mxu0
      %v3953 = vadd.f32 %v3776, %v3952
      %v3954 = vpop.f32.mrf.mxu0
      %3955 = vmatprep.mubr.bf16.mxu0 0
      %3956 = vmatmul.mubr.bf16.gmra.mxu0 %v3678
      %v3957 = vpop.f32.mrf.mxu0
      %v3958 = vadd.f32 %v3781, %v3957
      %v3959 = vpop.f32.mrf.mxu0
      %v3960 = vpop.f32.mrf.mxu0
      %v3961 = vadd.f32 %v3784, %v3960
      %v3962 = vpop.f32.mrf.mxu0
      %3963 = vmatprep.mubr.bf16.mxu0 0
      %3964 = vmatmul.mubr.bf16.gmra.mxu0 %v3681
      %v3965 = vpop.f32.mrf.mxu0
      %v3966 = vadd.f32 %v3789, %v3965
      %v3967 = vpop.f32.mrf.mxu0
      %v3968 = vpop.f32.mrf.mxu0
      %v3969 = vadd.f32 %v3792, %v3968
      %v3970 = vpop.f32.mrf.mxu0
      %3971 = vmatprep.mubr.bf16.mxu0 0
      %3972 = vmatmul.mubr.bf16.gmra.mxu0 %v3684
      %v3973 = vpop.f32.mrf.mxu0
      %v3974 = vadd.f32 %v3797, %v3973
      %v3975 = vpop.f32.mrf.mxu0
      %v3976 = vpop.f32.mrf.mxu0
      %v3977 = vadd.f32 %v3800, %v3976
      %v3978 = vpop.f32.mrf.mxu0
      %3979 = vmatprep.mubr.bf16.mxu0 0
      %3980 = vmatmul.mubr.bf16.gmra.mxu0 %v3687
      %v3981 = vpop.f32.mrf.mxu0
      %v3982 = vadd.f32 %v3805, %v3981
      %v3983 = vpop.f32.mrf.mxu0
      %v3984 = vpop.f32.mrf.mxu0
      %v3985 = vadd.f32 %v3808, %v3984
      %v3986 = vpop.f32.mrf.mxu0
      %3987 = vmatprep.mubr.bf16.mxu0 0
      %3988 = vmatmul.mubr.bf16.gmra.mxu0 %v3690
      %v3989 = vpop.f32.mrf.mxu0
      %v3990 = vadd.f32 %v3813, %v3989
      %v3991 = vpop.f32.mrf.mxu0
      %v3992 = vpop.f32.mrf.mxu0
      %v3993 = vadd.f32 %v3816, %v3992
      %v3994 = vpop.f32.mrf.mxu0
      %3995 = vmatprep.mubr.bf16.mxu0 0
      %3996 = vmatmul.mubr.bf16.gmra.mxu0 %v3693
      %v3997 = vpop.f32.mrf.mxu0
      %v3998 = vadd.f32 %v3821, %v3997
      %v3999 = vpop.f32.mrf.mxu0
      %v4000 = vpop.f32.mrf.mxu0
      %v4001 = vadd.f32 %v3824, %v4000
      %v4002 = vpop.f32.mrf.mxu0
      %4003 = vmatprep.mubr.bf16.mxu0 0
      %4004 = vmatmul.mubr.bf16.gmra.mxu0 %v3696
      %v4005 = vpop.f32.mrf.mxu0
      %v4006 = vadd.f32 %v3829, %v4005
      %v4007 = vpop.f32.mrf.mxu0
      %v4008 = vpop.f32.mrf.mxu0
      %v4009 = vadd.f32 %v3832, %v4008
      %v4010 = vpop.f32.mrf.mxu0
      %4011 = vmatprep.mubr.bf16.mxu0 0
      %4012 = vmatmul.mubr.bf16.gmra.mxu0 %v3699
      %v4013 = vpop.f32.mrf.mxu0
      %v4014 = vadd.f32 %v3837, %v4013
      %v4015 = vpop.f32.mrf.mxu0
      %v4016 = vpop.f32.mrf.mxu0
      %v4017 = vadd.f32 %v3840, %v4016
      %v4018 = vpop.f32.mrf.mxu0
      %4019 = vmatprep.mubr.bf16.mxu0 0
      %4020 = vmatmul.mubr.bf16.gmra.mxu0 %v3702
      %v4021 = vpop.f32.mrf.mxu0
      %v4022 = vadd.f32 %v3845, %v4021
      %v4023 = vpop.f32.mrf.mxu0
      %v4024 = vpop.f32.mrf.mxu0
      %v4025 = vadd.f32 %v3848, %v4024
      %v4026 = vpop.f32.mrf.mxu0
      %4027 = vmatprep.mubr.bf16.mxu0 0
      %4028 = vmatmul.mubr.bf16.gmra.mxu0 %v3705
      %v4029 = vpop.f32.mrf.mxu0
      %v4030 = vadd.f32 %v3853, %v4029
      %v4031 = vpop.f32.mrf.mxu0
      %v4032 = vpop.f32.mrf.mxu0
      %v4033 = vadd.f32 %v3856, %v4032
      %v4034 = vpop.f32.mrf.mxu0
      %4035 = vmatprep.mubr.bf16.mxu0 0
      %4036 = vmatmul.mubr.bf16.gmra.mxu0 %v3708
      %v4037 = vpop.f32.mrf.mxu0
      %v4038 = vadd.f32 %v3861, %v4037
      %v4039 = vpop.f32.mrf.mxu0
      %v4040 = vpop.f32.mrf.mxu0
      %v4041 = vadd.f32 %v3864, %v4040
      %v4042 = vpop.f32.mrf.mxu0
      %4043 = vmatprep.mubr.bf16.mxu0 0
      %4044 = vmatmul.mubr.bf16.gmra.mxu0 %v3711
      %v4045 = vpop.f32.mrf.mxu0
      %v4046 = vadd.f32 %v3869, %v4045
      %v4047 = vpop.f32.mrf.mxu0
      %v4048 = vpop.f32.mrf.mxu0
      %v4049 = vadd.f32 %v3872, %v4048
      %v4050 = vpop.f32.mrf.mxu0
      %4051 = vmatprep.mubr.bf16.mxu0 0
      %4052 = vmatmul.mubr.bf16.gmra.mxu0 %v3714
      %v4053 = vpop.f32.mrf.mxu0
      %v4054 = vadd.f32 %v3877, %v4053
      %v4055 = vpop.f32.mrf.mxu0
      %v4056 = vpop.f32.mrf.mxu0
      %v4057 = vadd.f32 %v3880, %v4056
      %v4058 = vpop.f32.mrf.mxu0
      %4059 = vmatprep.mubr.bf16.mxu0 0
      %4060 = vmatmul.mubr.bf16.gmra.mxu0 %v3717
      %v4061 = vpop.f32.mrf.mxu0
      %v4062 = vadd.f32 %v3885, %v4061
      %v4063 = vpop.f32.mrf.mxu0
      %v4064 = vpop.f32.mrf.mxu0
      %v4065 = vadd.f32 %v3888, %v4064
      %v4066 = vpop.f32.mrf.mxu0
      %4067 = vmatprep.mubr.bf16.mxu0 0
      %4068 = vmatmul.mubr.bf16.gmra.mxu0 %v3720
      %v4069 = vpop.f32.mrf.mxu0
      %v4070 = vadd.f32 %v3893, %v4069
      %v4071 = vpop.f32.mrf.mxu0
      %v4072 = vpop.f32.mrf.mxu0
      %v4073 = vadd.f32 %v3896, %v4072
      %v4074 = vpop.f32.mrf.mxu0
      %4075 = vdwg.mxu0
      %v4076 = vmul.f32 %v3934, %v914
      %v4077 = vmul.f32 %v3937, %v919
      %v4078 = vmul.f32 %v3942, %v924
      %v4079 = vmul.f32 %v3945, %v929
      %v4080 = vmul.f32 %v3950, %v934
      %v4081 = vmul.f32 %v3953, %v939
      %v4082 = vmul.f32 %v3958, %v944
      %v4083 = vmul.f32 %v3961, %v949
      %v4084 = vmul.f32 %v3966, %v954
      %v4085 = vmul.f32 %v3969, %v959
      %v4086 = vmul.f32 %v3974, %v964
      %v4087 = vmul.f32 %v3977, %v969
      %v4088 = vmul.f32 %v3982, %v974
      %v4089 = vmul.f32 %v3985, %v979
      %v4090 = vmul.f32 %v3990, %v984
      %v4091 = vmul.f32 %v3993, %v989
      %v4092 = vmul.f32 %v3998, %v994
      %v4093 = vmul.f32 %v4001, %v999
      %v4094 = vmul.f32 %v4006, %v1004
      %v4095 = vmul.f32 %v4009, %v1009
      %v4096 = vmul.f32 %v4014, %v1014
      %v4097 = vmul.f32 %v4017, %v1019
      %v4098 = vmul.f32 %v4022, %v1024
      %v4099 = vmul.f32 %v4025, %v1029
      %v4100 = vmul.f32 %v4030, %v1034
      %v4101 = vmul.f32 %v4033, %v1039
      %v4102 = vmul.f32 %v4038, %v1044
      %v4103 = vmul.f32 %v4041, %v1049
      %v4104 = vmul.f32 %v4046, %v1054
      %v4105 = vmul.f32 %v4049, %v1059
      %v4106 = vmul.f32 %v4054, %v1064
      %v4107 = vmul.f32 %v4057, %v1069
      %v4108 = vmul.f32 %v4062, %v1074
      %v4109 = vmul.f32 %v4065, %v1079
      %v4110 = vmul.f32 %v4070, %v1084
      %v4111 = vmul.f32 %v4073, %v1089
      %v4112 = vld [vmem:[%s8] sm:$0x1]
      %v4113 = vld [vmem:[%s9] sm:$0x1]
      %v4114 = vld [vmem:[%s13] sm:$0xff]
      %v4115 = vld [vmem:[%s13 + $0x8] sm:$0xff]
      %v4116 = vld [vmem:[%s13 + $0x10] sm:$0xff]
      %v4117 = vld [vmem:[%s13 + $0x18] sm:$0xff]
      %v4118 = vsel %vm1133, %v4076, 0.0
      %v4119 = vsel %vm1133, %v4077, 0.0
      %v4120 = vadd.f32 %v4118, %v4119
      %v4121 = vsel %vm1133, %v4078, 0.0
      %v4122 = vadd.f32 %v4120, %v4121
      %v4123 = vsel %vm1133, %v4079, 0.0
      %v4124 = vadd.f32 %v4122, %v4123
      %v4125 = vsel %vm1133, %v4080, 0.0
      %v4126 = vadd.f32 %v4124, %v4125
      %v4127 = vsel %vm1133, %v4081, 0.0
      %v4128 = vadd.f32 %v4126, %v4127
      %v4129 = vsel %vm1133, %v4082, 0.0
      %v4130 = vadd.f32 %v4128, %v4129
      %v4131 = vsel %vm1133, %v4083, 0.0
      %v4132 = vadd.f32 %v4130, %v4131
      %v4133 = vsel %vm1133, %v4084, 0.0
      %v4134 = vadd.f32 %v4132, %v4133
      %v4135 = vsel %vm1133, %v4085, 0.0
      %v4136 = vadd.f32 %v4134, %v4135
      %v4137 = vsel %vm1133, %v4086, 0.0
      %v4138 = vadd.f32 %v4136, %v4137
      %v4139 = vsel %vm1133, %v4087, 0.0
      %v4140 = vadd.f32 %v4138, %v4139
      %v4141 = vsel %vm1133, %v4088, 0.0
      %v4142 = vadd.f32 %v4140, %v4141
      %v4143 = vsel %vm1133, %v4089, 0.0
      %v4144 = vadd.f32 %v4142, %v4143
      %v4145 = vsel %vm1133, %v4090, 0.0
      %v4146 = vadd.f32 %v4144, %v4145
      %v4147 = vsel %vm1133, %v4091, 0.0
      %v4148 = vadd.f32 %v4146, %v4147
      %v4149 = vsel %vm1133, %v4092, 0.0
      %v4150 = vadd.f32 %v4148, %v4149
      %v4151 = vsel %vm1133, %v4093, 0.0
      %v4152 = vadd.f32 %v4150, %v4151
      %v4153 = vsel %vm1133, %v4094, 0.0
      %v4154 = vadd.f32 %v4152, %v4153
      %v4155 = vsel %vm1133, %v4095, 0.0
      %v4156 = vadd.f32 %v4154, %v4155
      %v4157 = vsel %vm1133, %v4096, 0.0
      %v4158 = vadd.f32 %v4156, %v4157
      %v4159 = vsel %vm1133, %v4097, 0.0
      %v4160 = vadd.f32 %v4158, %v4159
      %v4161 = vsel %vm1133, %v4098, 0.0
      %v4162 = vadd.f32 %v4160, %v4161
      %v4163 = vsel %vm1133, %v4099, 0.0
      %v4164 = vadd.f32 %v4162, %v4163
      %v4165 = vsel %vm1133, %v4100, 0.0
      %v4166 = vadd.f32 %v4164, %v4165
      %v4167 = vsel %vm1133, %v4101, 0.0
      %v4168 = vadd.f32 %v4166, %v4167
      %v4169 = vsel %vm1133, %v4102, 0.0
      %v4170 = vadd.f32 %v4168, %v4169
      %v4171 = vsel %vm1133, %v4103, 0.0
      %v4172 = vadd.f32 %v4170, %v4171
      %v4173 = vsel %vm1133, %v4104, 0.0
      %v4174 = vadd.f32 %v4172, %v4173
      %v4175 = vsel %vm1133, %v4105, 0.0
      %v4176 = vadd.f32 %v4174, %v4175
      %v4177 = vsel %vm1133, %v4106, 0.0
      %v4178 = vadd.f32 %v4176, %v4177
      %v4179 = vsel %vm1133, %v4107, 0.0
      %v4180 = vadd.f32 %v4178, %v4179
      %v4181 = vsel %vm1133, %v4108, 0.0
      %v4182 = vadd.f32 %v4180, %v4181
      %v4183 = vsel %vm1133, %v4109, 0.0
      %v4184 = vadd.f32 %v4182, %v4183
      %v4185 = vsel %vm1133, %v4110, 0.0
      %v4186 = vadd.f32 %v4184, %v4185
      %v4187 = vsel %vm1133, %v4111, 0.0
      %v4188 = vadd.f32 %v4186, %v4187
      %v4189 = vrot.slane %v4188, 4
      %v4190 = vadd.f32 %v4188, %v4189
      %v4191 = vrot.slane %v4190, 2
      %v4192 = vadd.f32 %v4190, %v4191
      %v4193 = vrot.slane %v4192, 1
      %v4194 = vadd.f32 %v4192, %v4193
      %v4195 = vmul.f32 %v4076, %v4076
      %v4196 = vmul.f32 %v4077, %v4077
      %v4197 = vmul.f32 %v4078, %v4078
      %v4198 = vmul.f32 %v4079, %v4079
      %v4199 = vmul.f32 %v4080, %v4080
      %v4200 = vmul.f32 %v4081, %v4081
      %v4201 = vmul.f32 %v4082, %v4082
      %v4202 = vmul.f32 %v4083, %v4083
      %v4203 = vmul.f32 %v4084, %v4084
      %v4204 = vmul.f32 %v4085, %v4085
      %v4205 = vmul.f32 %v4086, %v4086
      %v4206 = vmul.f32 %v4087, %v4087
      %v4207 = vmul.f32 %v4088, %v4088
      %v4208 = vmul.f32 %v4089, %v4089
      %v4209 = vmul.f32 %v4090, %v4090
      %v4210 = vmul.f32 %v4091, %v4091
      %v4211 = vmul.f32 %v4092, %v4092
      %v4212 = vmul.f32 %v4093, %v4093
      %v4213 = vmul.f32 %v4094, %v4094
      %v4214 = vmul.f32 %v4095, %v4095
      %v4215 = vmul.f32 %v4096, %v4096
      %v4216 = vmul.f32 %v4097, %v4097
      %v4217 = vmul.f32 %v4098, %v4098
      %v4218 = vmul.f32 %v4099, %v4099
      %v4219 = vmul.f32 %v4100, %v4100
      %v4220 = vmul.f32 %v4101, %v4101
      %v4221 = vmul.f32 %v4102, %v4102
      %v4222 = vmul.f32 %v4103, %v4103
      %v4223 = vmul.f32 %v4104, %v4104
      %v4224 = vmul.f32 %v4105, %v4105
      %v4225 = vmul.f32 %v4106, %v4106
      %v4226 = vmul.f32 %v4107, %v4107
      %v4227 = vmul.f32 %v4108, %v4108
      %v4228 = vmul.f32 %v4109, %v4109
      %v4229 = vmul.f32 %v4110, %v4110
      %v4230 = vmul.f32 %v4111, %v4111
      %v4231 = vsel %vm1133, %v4195, 0.0
      %v4232 = vsel %vm1133, %v4196, 0.0
      %v4233 = vadd.f32 %v4231, %v4232
      %v4234 = vsel %vm1133, %v4197, 0.0
      %v4235 = vadd.f32 %v4233, %v4234
      %v4236 = vsel %vm1133, %v4198, 0.0
      %v4237 = vadd.f32 %v4235, %v4236
      %v4238 = vsel %vm1133, %v4199, 0.0
      %v4239 = vadd.f32 %v4237, %v4238
      %v4240 = vsel %vm1133, %v4200, 0.0
      %v4241 = vadd.f32 %v4239, %v4240
      %v4242 = vsel %vm1133, %v4201, 0.0
      %v4243 = vadd.f32 %v4241, %v4242
      %v4244 = vsel %vm1133, %v4202, 0.0
      %v4245 = vadd.f32 %v4243, %v4244
      %v4246 = vsel %vm1133, %v4203, 0.0
      %v4247 = vadd.f32 %v4245, %v4246
      %v4248 = vsel %vm1133, %v4204, 0.0
      %v4249 = vadd.f32 %v4247, %v4248
      %v4250 = vsel %vm1133, %v4205, 0.0
      %v4251 = vadd.f32 %v4249, %v4250
      %v4252 = vsel %vm1133, %v4206, 0.0
      %v4253 = vadd.f32 %v4251, %v4252
      %v4254 = vsel %vm1133, %v4207, 0.0
      %v4255 = vadd.f32 %v4253, %v4254
      %v4256 = vsel %vm1133, %v4208, 0.0
      %v4257 = vadd.f32 %v4255, %v4256
      %v4258 = vsel %vm1133, %v4209, 0.0
      %v4259 = vadd.f32 %v4257, %v4258
      %v4260 = vsel %vm1133, %v4210, 0.0
      %v4261 = vadd.f32 %v4259, %v4260
      %v4262 = vsel %vm1133, %v4211, 0.0
      %v4263 = vadd.f32 %v4261, %v4262
      %v4264 = vsel %vm1133, %v4212, 0.0
      %v4265 = vadd.f32 %v4263, %v4264
      %v4266 = vsel %vm1133, %v4213, 0.0
      %v4267 = vadd.f32 %v4265, %v4266
      %v4268 = vsel %vm1133, %v4214, 0.0
      %v4269 = vadd.f32 %v4267, %v4268
      %v4270 = vsel %vm1133, %v4215, 0.0
      %v4271 = vadd.f32 %v4269, %v4270
      %v4272 = vsel %vm1133, %v4216, 0.0
      %v4273 = vadd.f32 %v4271, %v4272
      %v4274 = vsel %vm1133, %v4217, 0.0
      %v4275 = vadd.f32 %v4273, %v4274
      %v4276 = vsel %vm1133, %v4218, 0.0
      %v4277 = vadd.f32 %v4275, %v4276
      %v4278 = vsel %vm1133, %v4219, 0.0
      %v4279 = vadd.f32 %v4277, %v4278
      %v4280 = vsel %vm1133, %v4220, 0.0
      %v4281 = vadd.f32 %v4279, %v4280
      %v4282 = vsel %vm1133, %v4221, 0.0
      %v4283 = vadd.f32 %v4281, %v4282
      %v4284 = vsel %vm1133, %v4222, 0.0
      %v4285 = vadd.f32 %v4283, %v4284
      %v4286 = vsel %vm1133, %v4223, 0.0
      %v4287 = vadd.f32 %v4285, %v4286
      %v4288 = vsel %vm1133, %v4224, 0.0
      %v4289 = vadd.f32 %v4287, %v4288
      %v4290 = vsel %vm1133, %v4225, 0.0
      %v4291 = vadd.f32 %v4289, %v4290
      %v4292 = vsel %vm1133, %v4226, 0.0
      %v4293 = vadd.f32 %v4291, %v4292
      %v4294 = vsel %vm1133, %v4227, 0.0
      %v4295 = vadd.f32 %v4293, %v4294
      %v4296 = vsel %vm1133, %v4228, 0.0
      %v4297 = vadd.f32 %v4295, %v4296
      %v4298 = vsel %vm1133, %v4229, 0.0
      %v4299 = vadd.f32 %v4297, %v4298
      %v4300 = vsel %vm1133, %v4230, 0.0
      %v4301 = vadd.f32 %v4299, %v4300
      %v4302 = vrot.slane %v4301, 4
      %v4303 = vadd.f32 %v4301, %v4302
      %v4304 = vrot.slane %v4303, 2
      %v4305 = vadd.f32 %v4303, %v4304
      %v4306 = vrot.slane %v4305, 1
      %v4307 = vadd.f32 %v4305, %v4306
      %v4308 = vsel %vm1324, %v4194, %v4307
      %v4310 = vsel %vm1133, %v4308, 0
      %4312 = vmatprep.subr.mxu0 0.0
      %4313 = vmatpush1.msra.mxu0 0.0
      %4314 = vmatprep.subr.mxu0 0.0
      %4315 = vmatpush1.msra.mxu0 0.0
      %4316 = vmatprep.subr.mxu0 0.0
      %4317 = vmatpush1.msra.mxu0 0.0
      %4318 = vmatprep.subr.mxu0 0.0
      %4319 = vmatpush1.msra.mxu0 0.0
      %4320 = vmatprep.subr.mxu0 0.0
      %4321 = vmatpush1.msra.mxu0 0.0
      %4322 = vmatprep.subr.mxu0 0.0
      %4323 = vmatpush1.msra.mxu0 0.0
      %4324 = vmatprep.subr.mxu0 0.0
      %4325 = vmatpush1.msra.mxu0 0.0
      %4326 = vmatprep.subr.mxu0 0.0
      %4327 = vmatpush1.msra.mxu0 0.0
      %4328 = vmatprep.subr.mxu0 0.0
      %4329 = vmatpush1.msra.mxu0 0.0
      %4330 = vmatprep.subr.mxu0 0.0
      %4331 = vmatpush1.msra.mxu0 0.0
      %4332 = vmatprep.subr.mxu0 0.0
      %4333 = vmatpush1.msra.mxu0 0.0
      %4334 = vmatprep.subr.mxu0 0.0
      %4335 = vmatpush1.msra.mxu0 0.0
      %4336 = vmatprep.subr.mxu0 0.0
      %4337 = vmatpush1.msra.mxu0 %v4117
      %4338 = vmatprep.subr.mxu0 0.0
      %4339 = vmatpush1.msra.mxu0 %v4116
      %4340 = vmatprep.subr.mxu0 0.0
      %4341 = vmatpush1.msra.mxu0 %v4115
      %4342 = vmatprep.subr.mxu0 0.0
      %4343 = vmatpush1.msra.mxu0 %v4114
      %4344 = vmatprep.subr.mxu0 0.0
      %4345 = vmatpush2.msra.mxu0 0.0
      %4346 = vmatprep.subr.mxu0 0.0
      %4347 = vmatpush2.msra.mxu0 0.0
      %4348 = vmatprep.subr.mxu0 0.0
      %4349 = vmatpush2.msra.mxu0 0.0
      %4350 = vmatprep.subr.mxu0 0.0
      %4351 = vmatpush2.msra.mxu0 0.0
      %4352 = vmatprep.subr.mxu0 0.0
      %4353 = vmatpush2.msra.mxu0 0.0
      %4354 = vmatprep.subr.mxu0 0.0
      %4355 = vmatpush2.msra.mxu0 0.0
      %4356 = vmatprep.subr.mxu0 0.0
      %4357 = vmatpush2.msra.mxu0 0.0
      %4358 = vmatprep.subr.mxu0 0.0
      %4359 = vmatpush2.msra.mxu0 0.0
      %4360 = vmatprep.subr.mxu0 0.0
      %4361 = vmatpush2.msra.mxu0 0.0
      %4362 = vmatprep.subr.mxu0 0.0
      %4363 = vmatpush2.msra.mxu0 0.0
      %4364 = vmatprep.subr.mxu0 0.0
      %4365 = vmatpush2.msra.mxu0 0.0
      %4366 = vmatprep.subr.mxu0 0.0
      %4367 = vmatpush2.msra.mxu0 0.0
      %4368 = vmatprep.subr.mxu0 0.0
      %4369 = vmatpush2.msra.mxu0 0.0
      %4370 = vmatprep.subr.mxu0 0.0
      %4371 = vmatpush2.msra.mxu0 0.0
      %4372 = vmatprep.subr.mxu0 0.0
      %4373 = vmatpush2.msra.mxu0 0.0
      %4374 = vmatprep.subr.mxu0 0.0
      %4375 = vmatpush2.msra.mxu0 0.0
      %4376 = vmatprep.mubr.f32.mxu0 0.0
      %4377 = vmatmul.mubr.f32.gmra.mxu0 %v4310
      %v4378 = vpop.f32.mrf.mxu0
      %v4379 = vadd.f32 0.0, %v4378
      %v4380 = vpop.f32.mrf.mxu0
      %4381 = vdwg.mxu0
      %v4382 = vmul.f32 %v4379, %v4379
      %v4384 = vrot.slane %v4382, 7
      %v4386 = vsub.f32 %v4379, %v4384
      %v4387 = vmax.f32 %v4386, 0.0
      %v4388 = vlaneseq
      %v4389 = vshrl.u32 %v4388, 7
      %v4390 = vsub.s32 0, %v4389
      %v4391 = vrot.slane %v4379, %v4390
      %v4392 = vsub.f32 %v4076, %v4391
      %v4393 = vsub.f32 %v4077, %v4391
      %v4394 = vsub.f32 %v4078, %v4391
      %v4395 = vsub.f32 %v4079, %v4391
      %v4396 = vsub.f32 %v4080, %v4391
      %v4397 = vsub.f32 %v4081, %v4391
      %v4398 = vsub.f32 %v4082, %v4391
      %v4399 = vsub.f32 %v4083, %v4391
      %v4400 = vsub.f32 %v4084, %v4391
      %v4401 = vsub.f32 %v4085, %v4391
      %v4402 = vsub.f32 %v4086, %v4391
      %v4403 = vsub.f32 %v4087, %v4391
      %v4404 = vsub.f32 %v4088, %v4391
      %v4405 = vsub.f32 %v4089, %v4391
      %v4406 = vsub.f32 %v4090, %v4391
      %v4407 = vsub.f32 %v4091, %v4391
      %v4408 = vsub.f32 %v4092, %v4391
      %v4409 = vsub.f32 %v4093, %v4391
      %v4410 = vsub.f32 %v4094, %v4391
      %v4411 = vsub.f32 %v4095, %v4391
      %v4412 = vsub.f32 %v4096, %v4391
      %v4413 = vsub.f32 %v4097, %v4391
      %v4414 = vsub.f32 %v4098, %v4391
      %v4415 = vsub.f32 %v4099, %v4391
      %v4416 = vsub.f32 %v4100, %v4391
      %v4417 = vsub.f32 %v4101, %v4391
      %v4418 = vsub.f32 %v4102, %v4391
      %v4419 = vsub.f32 %v4103, %v4391
      %v4420 = vsub.f32 %v4104, %v4391
      %v4421 = vsub.f32 %v4105, %v4391
      %v4422 = vsub.f32 %v4106, %v4391
      %v4423 = vsub.f32 %v4107, %v4391
      %v4424 = vsub.f32 %v4108, %v4391
      %v4425 = vsub.f32 %v4109, %v4391
      %v4426 = vsub.f32 %v4110, %v4391
      %v4427 = vsub.f32 %v4111, %v4391
      %v4428 = vadd.f32 %v4387, 1e-05
      %v4429 = vrsqrt.pop %v4428
      %v4430 = vlaneseq
      %v4431 = vshrl.u32 %v4430, 7
      %v4432 = vsub.s32 1, %v4431
      %v4433 = vrot.slane %v4429, %v4432
      %v4434 = vmul.f32 %v4392, %v4433
      %v4435 = vmul.f32 %v4393, %v4433
      %v4436 = vmul.f32 %v4394, %v4433
      %v4437 = vmul.f32 %v4395, %v4433
      %v4438 = vmul.f32 %v4396, %v4433
      %v4439 = vmul.f32 %v4397, %v4433
      %v4440 = vmul.f32 %v4398, %v4433
      %v4441 = vmul.f32 %v4399, %v4433
      %v4442 = vmul.f32 %v4400, %v4433
      %v4443 = vmul.f32 %v4401, %v4433
      %v4444 = vmul.f32 %v4402, %v4433
      %v4445 = vmul.f32 %v4403, %v4433
      %v4446 = vmul.f32 %v4404, %v4433
      %v4447 = vmul.f32 %v4405, %v4433
      %v4448 = vmul.f32 %v4406, %v4433
      %v4449 = vmul.f32 %v4407, %v4433
      %v4450 = vmul.f32 %v4408, %v4433
      %v4451 = vmul.f32 %v4409, %v4433
      %v4452 = vmul.f32 %v4410, %v4433
      %v4453 = vmul.f32 %v4411, %v4433
      %v4454 = vmul.f32 %v4412, %v4433
      %v4455 = vmul.f32 %v4413, %v4433
      %v4456 = vmul.f32 %v4414, %v4433
      %v4457 = vmul.f32 %v4415, %v4433
      %v4458 = vmul.f32 %v4416, %v4433
      %v4459 = vmul.f32 %v4417, %v4433
      %v4460 = vmul.f32 %v4418, %v4433
      %v4461 = vmul.f32 %v4419, %v4433
      %v4462 = vmul.f32 %v4420, %v4433
      %v4463 = vmul.f32 %v4421, %v4433
      %v4464 = vmul.f32 %v4422, %v4433
      %v4465 = vmul.f32 %v4423, %v4433
      %v4466 = vmul.f32 %v4424, %v4433
      %v4467 = vmul.f32 %v4425, %v4433
      %v4468 = vmul.f32 %v4426, %v4433
      %v4469 = vmul.f32 %v4427, %v4433
      %v4471 = vlaneseq
      %v4472 = vshrl.u32 %v4471, 7
      %v4473 = vsub.s32 0, %v4472
      %v4474 = vrot.slane %v4112, %v4473
      %v4476 = vmul.f32 %v4434, %v4474
      %v4477 = vmul.f32 %v4435, %v4474
      %v4478 = vmul.f32 %v4436, %v4474
      %v4479 = vmul.f32 %v4437, %v4474
      %v4480 = vmul.f32 %v4438, %v4474
      %v4481 = vmul.f32 %v4439, %v4474
      %v4482 = vmul.f32 %v4440, %v4474
      %v4483 = vmul.f32 %v4441, %v4474
      %v4484 = vmul.f32 %v4442, %v4474
      %v4485 = vmul.f32 %v4443, %v4474
      %v4486 = vmul.f32 %v4444, %v4474
      %v4487 = vmul.f32 %v4445, %v4474
      %v4488 = vmul.f32 %v4446, %v4474
      %v4489 = vmul.f32 %v4447, %v4474
      %v4490 = vmul.f32 %v4448, %v4474
      %v4491 = vmul.f32 %v4449, %v4474
      %v4492 = vmul.f32 %v4450, %v4474
      %v4493 = vmul.f32 %v4451, %v4474
      %v4494 = vmul.f32 %v4452, %v4474
      %v4495 = vmul.f32 %v4453, %v4474
      %v4496 = vmul.f32 %v4454, %v4474
      %v4497 = vmul.f32 %v4455, %v4474
      %v4498 = vmul.f32 %v4456, %v4474
      %v4499 = vmul.f32 %v4457, %v4474
      %v4500 = vmul.f32 %v4458, %v4474
      %v4501 = vmul.f32 %v4459, %v4474
      %v4502 = vmul.f32 %v4460, %v4474
      %v4503 = vmul.f32 %v4461, %v4474
      %v4504 = vmul.f32 %v4462, %v4474
      %v4505 = vmul.f32 %v4463, %v4474
      %v4506 = vmul.f32 %v4464, %v4474
      %v4507 = vmul.f32 %v4465, %v4474
      %v4508 = vmul.f32 %v4466, %v4474
      %v4509 = vmul.f32 %v4467, %v4474
      %v4510 = vmul.f32 %v4468, %v4474
      %v4511 = vmul.f32 %v4469, %v4474
      %v4513 = vlaneseq
      %v4514 = vshrl.u32 %v4513, 7
      %v4515 = vsub.s32 0, %v4514
      %v4516 = vrot.slane %v4113, %v4515
      %v4518 = vadd.f32 %v4476, %v4516
      %v4519 = vadd.f32 %v4477, %v4516
      %v4520 = vadd.f32 %v4478, %v4516
      %v4521 = vadd.f32 %v4479, %v4516
      %v4522 = vadd.f32 %v4480, %v4516
      %v4523 = vadd.f32 %v4481, %v4516
      %v4524 = vadd.f32 %v4482, %v4516
      %v4525 = vadd.f32 %v4483, %v4516
      %v4526 = vadd.f32 %v4484, %v4516
      %v4527 = vadd.f32 %v4485, %v4516
      %v4528 = vadd.f32 %v4486, %v4516
      %v4529 = vadd.f32 %v4487, %v4516
      %v4530 = vadd.f32 %v4488, %v4516
      %v4531 = vadd.f32 %v4489, %v4516
      %v4532 = vadd.f32 %v4490, %v4516
      %v4533 = vadd.f32 %v4491, %v4516
      %v4534 = vadd.f32 %v4492, %v4516
      %v4535 = vadd.f32 %v4493, %v4516
      %v4536 = vadd.f32 %v4494, %v4516
      %v4537 = vadd.f32 %v4495, %v4516
      %v4538 = vadd.f32 %v4496, %v4516
      %v4539 = vadd.f32 %v4497, %v4516
      %v4540 = vadd.f32 %v4498, %v4516
      %v4541 = vadd.f32 %v4499, %v4516
      %v4542 = vadd.f32 %v4500, %v4516
      %v4543 = vadd.f32 %v4501, %v4516
      %v4544 = vadd.f32 %v4502, %v4516
      %v4545 = vadd.f32 %v4503, %v4516
      %v4546 = vadd.f32 %v4504, %v4516
      %v4547 = vadd.f32 %v4505, %v4516
      %v4548 = vadd.f32 %v4506, %v4516
      %v4549 = vadd.f32 %v4507, %v4516
      %v4550 = vadd.f32 %v4508, %v4516
      %v4551 = vadd.f32 %v4509, %v4516
      %v4552 = vadd.f32 %v4510, %v4516
      %v4553 = vadd.f32 %v4511, %v4516
      %v4554 = vsub.f32 0.0, %v4518
      %v4555 = vsub.f32 0.0, %v4519
      %v4556 = vsub.f32 0.0, %v4520
      %v4557 = vsub.f32 0.0, %v4521
      %v4558 = vsub.f32 0.0, %v4522
      %v4559 = vsub.f32 0.0, %v4523
      %v4560 = vsub.f32 0.0, %v4524
      %v4561 = vsub.f32 0.0, %v4525
      %v4562 = vsub.f32 0.0, %v4526
      %v4563 = vsub.f32 0.0, %v4527
      %v4564 = vsub.f32 0.0, %v4528
      %v4565 = vsub.f32 0.0, %v4529
      %v4566 = vsub.f32 0.0, %v4530
      %v4567 = vsub.f32 0.0, %v4531
      %v4568 = vsub.f32 0.0, %v4532
      %v4569 = vsub.f32 0.0, %v4533
      %v4570 = vsub.f32 0.0, %v4534
      %v4571 = vsub.f32 0.0, %v4535
      %v4572 = vsub.f32 0.0, %v4536
      %v4573 = vsub.f32 0.0, %v4537
      %v4574 = vsub.f32 0.0, %v4538
      %v4575 = vsub.f32 0.0, %v4539
      %v4576 = vsub.f32 0.0, %v4540
      %v4577 = vsub.f32 0.0, %v4541
      %v4578 = vsub.f32 0.0, %v4542
      %v4579 = vsub.f32 0.0, %v4543
      %v4580 = vsub.f32 0.0, %v4544
      %v4581 = vsub.f32 0.0, %v4545
      %v4582 = vsub.f32 0.0, %v4546
      %v4583 = vsub.f32 0.0, %v4547
      %v4584 = vsub.f32 0.0, %v4548
      %v4585 = vsub.f32 0.0, %v4549
      %v4586 = vsub.f32 0.0, %v4550
      %v4587 = vsub.f32 0.0, %v4551
      %v4588 = vsub.f32 0.0, %v4552
      %v4589 = vsub.f32 0.0, %v4553
      %v4590 = vmul.f32 %v4554, 1.442695
      %v4591 = vpow.pop %v4590
      %v4592 = vmul.f32 %v4555, 1.442695
      %v4593 = vpow.pop %v4592
      %v4594 = vmul.f32 %v4556, 1.442695
      %v4595 = vpow.pop %v4594
      %v4596 = vmul.f32 %v4557, 1.442695
      %v4597 = vpow.pop %v4596
      %v4598 = vmul.f32 %v4558, 1.442695
      %v4599 = vpow.pop %v4598
      %v4600 = vmul.f32 %v4559, 1.442695
      %v4601 = vpow.pop %v4600
      %v4602 = vmul.f32 %v4560, 1.442695
      %v4603 = vpow.pop %v4602
      %v4604 = vmul.f32 %v4561, 1.442695
      %v4605 = vpow.pop %v4604
      %v4606 = vmul.f32 %v4562, 1.442695
      %v4607 = vpow.pop %v4606
      %v4608 = vmul.f32 %v4563, 1.442695
      %v4609 = vpow.pop %v4608
      %v4610 = vmul.f32 %v4564, 1.442695
      %v4611 = vpow.pop %v4610
      %v4612 = vmul.f32 %v4565, 1.442695
      %v4613 = vpow.pop %v4612
      %v4614 = vmul.f32 %v4566, 1.442695
      %v4615 = vpow.pop %v4614
      %v4616 = vmul.f32 %v4567, 1.442695
      %v4617 = vpow.pop %v4616
      %v4618 = vmul.f32 %v4568, 1.442695
      %v4619 = vpow.pop %v4618
      %v4620 = vmul.f32 %v4569, 1.442695
      %v4621 = vpow.pop %v4620
      %v4622 = vmul.f32 %v4570, 1.442695
      %v4623 = vpow.pop %v4622
      %v4624 = vmul.f32 %v4571, 1.442695
      %v4625 = vpow.pop %v4624
      %v4626 = vmul.f32 %v4572, 1.442695
      %v4627 = vpow.pop %v4626
      %v4628 = vmul.f32 %v4573, 1.442695
      %v4629 = vpow.pop %v4628
      %v4630 = vmul.f32 %v4574, 1.442695
      %v4631 = vpow.pop %v4630
      %v4632 = vmul.f32 %v4575, 1.442695
      %v4633 = vpow.pop %v4632
      %v4634 = vmul.f32 %v4576, 1.442695
      %v4635 = vpow.pop %v4634
      %v4636 = vmul.f32 %v4577, 1.442695
      %v4637 = vpow.pop %v4636
      %v4638 = vmul.f32 %v4578, 1.442695
      %v4639 = vpow.pop %v4638
      %v4640 = vmul.f32 %v4579, 1.442695
      %v4641 = vpow.pop %v4640
      %v4642 = vmul.f32 %v4580, 1.442695
      %v4643 = vpow.pop %v4642
      %v4644 = vmul.f32 %v4581, 1.442695
      %v4645 = vpow.pop %v4644
      %v4646 = vmul.f32 %v4582, 1.442695
      %v4647 = vpow.pop %v4646
      %v4648 = vmul.f32 %v4583, 1.442695
      %v4649 = vpow.pop %v4648
      %v4650 = vmul.f32 %v4584, 1.442695
      %v4651 = vpow.pop %v4650
      %v4652 = vmul.f32 %v4585, 1.442695
      %v4653 = vpow.pop %v4652
      %v4654 = vmul.f32 %v4586, 1.442695
      %v4655 = vpow.pop %v4654
      %v4656 = vmul.f32 %v4587, 1.442695
      %v4657 = vpow.pop %v4656
      %v4658 = vmul.f32 %v4588, 1.442695
      %v4659 = vpow.pop %v4658
      %v4660 = vmul.f32 %v4589, 1.442695
      %v4661 = vpow.pop %v4660
      %v4662 = vadd.f32 %v4591, 1.0
      %v4663 = vadd.f32 %v4593, 1.0
      %v4664 = vadd.f32 %v4595, 1.0
      %v4665 = vadd.f32 %v4597, 1.0
      %v4666 = vadd.f32 %v4599, 1.0
      %v4667 = vadd.f32 %v4601, 1.0
      %v4668 = vadd.f32 %v4603, 1.0
      %v4669 = vadd.f32 %v4605, 1.0
      %v4670 = vadd.f32 %v4607, 1.0
      %v4671 = vadd.f32 %v4609, 1.0
      %v4672 = vadd.f32 %v4611, 1.0
      %v4673 = vadd.f32 %v4613, 1.0
      %v4674 = vadd.f32 %v4615, 1.0
      %v4675 = vadd.f32 %v4617, 1.0
      %v4676 = vadd.f32 %v4619, 1.0
      %v4677 = vadd.f32 %v4621, 1.0
      %v4678 = vadd.f32 %v4623, 1.0
      %v4679 = vadd.f32 %v4625, 1.0
      %v4680 = vadd.f32 %v4627, 1.0
      %v4681 = vadd.f32 %v4629, 1.0
      %v4682 = vadd.f32 %v4631, 1.0
      %v4683 = vadd.f32 %v4633, 1.0
      %v4684 = vadd.f32 %v4635, 1.0
      %v4685 = vadd.f32 %v4637, 1.0
      %v4686 = vadd.f32 %v4639, 1.0
      %v4687 = vadd.f32 %v4641, 1.0
      %v4688 = vadd.f32 %v4643, 1.0
      %v4689 = vadd.f32 %v4645, 1.0
      %v4690 = vadd.f32 %v4647, 1.0
      %v4691 = vadd.f32 %v4649, 1.0
      %v4692 = vadd.f32 %v4651, 1.0
      %v4693 = vadd.f32 %v4653, 1.0
      %v4694 = vadd.f32 %v4655, 1.0
      %v4695 = vadd.f32 %v4657, 1.0
      %v4696 = vadd.f32 %v4659, 1.0
      %v4697 = vadd.f32 %v4661, 1.0
      %v4698 = vrcp.pop %v4662
      %v4699 = vrcp.pop %v4663
      %v4700 = vrcp.pop %v4664
      %v4701 = vrcp.pop %v4665
      %v4702 = vrcp.pop %v4666
      %v4703 = vrcp.pop %v4667
      %v4704 = vrcp.pop %v4668
      %v4705 = vrcp.pop %v4669
      %v4706 = vrcp.pop %v4670
      %v4707 = vrcp.pop %v4671
      %v4708 = vrcp.pop %v4672
      %v4709 = vrcp.pop %v4673
      %v4710 = vrcp.pop %v4674
      %v4711 = vrcp.pop %v4675
      %v4712 = vrcp.pop %v4676
      %v4713 = vrcp.pop %v4677
      %v4714 = vrcp.pop %v4678
      %v4715 = vrcp.pop %v4679
      %v4716 = vrcp.pop %v4680
      %v4717 = vrcp.pop %v4681
      %v4718 = vrcp.pop %v4682
      %v4719 = vrcp.pop %v4683
      %v4720 = vrcp.pop %v4684
      %v4721 = vrcp.pop %v4685
      %v4722 = vrcp.pop %v4686
      %v4723 = vrcp.pop %v4687
      %v4724 = vrcp.pop %v4688
      %v4725 = vrcp.pop %v4689
      %v4726 = vrcp.pop %v4690
      %v4727 = vrcp.pop %v4691
      %v4728 = vrcp.pop %v4692
      %v4729 = vrcp.pop %v4693
      %v4730 = vrcp.pop %v4694
      %v4731 = vrcp.pop %v4695
      %v4732 = vrcp.pop %v4696
      %v4733 = vrcp.pop %v4697
      %v4734 = vmul.f32 %v4518, %v4698
      %v4735 = vmul.f32 %v4519, %v4699
      %v4736 = vmul.f32 %v4520, %v4700
      %v4737 = vmul.f32 %v4521, %v4701
      %v4738 = vmul.f32 %v4522, %v4702
      %v4739 = vmul.f32 %v4523, %v4703
      %v4740 = vmul.f32 %v4524, %v4704
      %v4741 = vmul.f32 %v4525, %v4705
      %v4742 = vmul.f32 %v4526, %v4706
      %v4743 = vmul.f32 %v4527, %v4707
      %v4744 = vmul.f32 %v4528, %v4708
      %v4745 = vmul.f32 %v4529, %v4709
      %v4746 = vmul.f32 %v4530, %v4710
      %v4747 = vmul.f32 %v4531, %v4711
      %v4748 = vmul.f32 %v4532, %v4712
      %v4749 = vmul.f32 %v4533, %v4713
      %v4750 = vmul.f32 %v4534, %v4714
      %v4751 = vmul.f32 %v4535, %v4715
      %v4752 = vmul.f32 %v4536, %v4716
      %v4753 = vmul.f32 %v4537, %v4717
      %v4754 = vmul.f32 %v4538, %v4718
      %v4755 = vmul.f32 %v4539, %v4719
      %v4756 = vmul.f32 %v4540, %v4720
      %v4757 = vmul.f32 %v4541, %v4721
      %v4758 = vmul.f32 %v4542, %v4722
      %v4759 = vmul.f32 %v4543, %v4723
      %v4760 = vmul.f32 %v4544, %v4724
      %v4761 = vmul.f32 %v4545, %v4725
      %v4762 = vmul.f32 %v4546, %v4726
      %v4763 = vmul.f32 %v4547, %v4727
      %v4764 = vmul.f32 %v4548, %v4728
      %v4765 = vmul.f32 %v4549, %v4729
      %v4766 = vmul.f32 %v4550, %v4730
      %v4767 = vmul.f32 %v4551, %v4731
      %v4768 = vmul.f32 %v4552, %v4732
      %v4769 = vmul.f32 %v4553, %v4733
      %v4770 = vld [vmem:[%s474] sm:$0xf]
      %v4771 = vld [vmem:[%s474 + $0x4] sm:$0xf]
      %v4772 = vld [vmem:[%s474 + $0x8] sm:$0xf]
      %v4773 = vld [vmem:[%s474 + $0xc] sm:$0xf]
      %v4774 = vld [vmem:[%s474 + $0x10] sm:$0xf]
      %v4775 = vld [vmem:[%s474 + $0x14] sm:$0xf]
      %v4776 = vld [vmem:[%s474 + $0x18] sm:$0xf]
      %v4777 = vld [vmem:[%s474 + $0x1c] sm:$0xf]
      %v4778 = vld [vmem:[%s474 + $0x20] sm:$0xf]
      %v4779 = vld [vmem:[%s474 + $0x24] sm:$0xf]
      %v4780 = vld [vmem:[%s474 + $0x28] sm:$0xf]
      %v4781 = vld [vmem:[%s474 + $0x2c] sm:$0xf]
      %v4782 = vld [vmem:[%s474 + $0x30] sm:$0xf]
      %v4783 = vld [vmem:[%s474 + $0x34] sm:$0xf]
      %v4784 = vld [vmem:[%s474 + $0x38] sm:$0xf]
      %v4785 = vld [vmem:[%s474 + $0x3c] sm:$0xf]
      %v4786 = vld [vmem:[%s474 + $0x40] sm:$0xf]
      %v4787 = vld [vmem:[%s474 + $0x44] sm:$0xf]
      %v4788 = vld [vmem:[%s474 + $0x48] sm:$0xf]
      %v4789 = vld [vmem:[%s474 + $0x4c] sm:$0xf]
      %v4790 = vld [vmem:[%s474 + $0x50] sm:$0xf]
      %v4791 = vld [vmem:[%s474 + $0x54] sm:$0xf]
      %v4792 = vld [vmem:[%s474 + $0x58] sm:$0xf]
      %v4793 = vld [vmem:[%s474 + $0x5c] sm:$0xf]
      %v4794 = vld [vmem:[%s474 + $0x60] sm:$0xf]
      %v4795 = vld [vmem:[%s474 + $0x64] sm:$0xf]
      %v4796 = vld [vmem:[%s474 + $0x68] sm:$0xf]
      %v4797 = vld [vmem:[%s474 + $0x6c] sm:$0xf]
      %v4798 = vld [vmem:[%s474 + $0x70] sm:$0xf]
      %v4799 = vld [vmem:[%s474 + $0x74] sm:$0xf]
      %v4800 = vld [vmem:[%s474 + $0x78] sm:$0xf]
      %v4801 = vld [vmem:[%s474 + $0x7c] sm:$0xf]
      %v4802 = vld [vmem:[%s474 + $0x80] sm:$0xf]
      %v4803 = vld [vmem:[%s474 + $0x84] sm:$0xf]
      %v4804 = vld [vmem:[%s474 + $0x88] sm:$0xf]
      %v4805 = vld [vmem:[%s474 + $0x8c] sm:$0xf]
      %v4806 = vld [vmem:[%s10] sm:$0x3]
      %v4807 = vld [vmem:[%s11] sm:$0x1]
      %v4809 = vlaneseq
      %v4810 = vshrl.u32 %v4809, 7
      %v4811 = vsub.s32 0, %v4810
      %v4812 = vrot.slane %v4807, %v4811
      %v4850 = vunpack.c.l.b16 %v4770
      %v4851 = vunpack.c.l.b16 %v4771
      %v4852 = vunpack.c.l.b16 %v4772
      %v4853 = vunpack.c.l.b16 %v4773
      %v4854 = vunpack.c.l.b16 %v4774
      %v4855 = vunpack.c.l.b16 %v4775
      %v4856 = vunpack.c.l.b16 %v4776
      %v4857 = vunpack.c.l.b16 %v4777
      %v4858 = vunpack.c.l.b16 %v4778
      %v4859 = vunpack.c.l.b16 %v4779
      %v4860 = vunpack.c.l.b16 %v4780
      %v4861 = vunpack.c.l.b16 %v4781
      %v4862 = vunpack.c.l.b16 %v4782
      %v4863 = vunpack.c.l.b16 %v4783
      %v4864 = vunpack.c.l.b16 %v4784
      %v4865 = vunpack.c.l.b16 %v4785
      %v4866 = vunpack.c.l.b16 %v4786
      %v4867 = vunpack.c.l.b16 %v4787
      %v4868 = vunpack.c.l.b16 %v4788
      %v4869 = vunpack.c.l.b16 %v4789
      %v4870 = vunpack.c.l.b16 %v4790
      %v4871 = vunpack.c.l.b16 %v4791
      %v4872 = vunpack.c.l.b16 %v4792
      %v4873 = vunpack.c.l.b16 %v4793
      %v4874 = vunpack.c.l.b16 %v4794
      %v4875 = vunpack.c.l.b16 %v4795
      %v4876 = vunpack.c.l.b16 %v4796
      %v4877 = vunpack.c.l.b16 %v4797
      %v4878 = vunpack.c.l.b16 %v4798
      %v4879 = vunpack.c.l.b16 %v4799
      %v4880 = vunpack.c.l.b16 %v4800
      %v4881 = vunpack.c.l.b16 %v4801
      %v4882 = vunpack.c.l.b16 %v4802
      %v4883 = vunpack.c.l.b16 %v4803
      %v4884 = vunpack.c.l.b16 %v4804
      %v4885 = vunpack.c.l.b16 %v4805
      %v4886 = vpack.c.b16 %v4851, %v4850
      %v4887 = vpack.c.b16 %v4853, %v4852
      %v4888 = vpack.c.b16 %v4855, %v4854
      %v4889 = vpack.c.b16 %v4857, %v4856
      %v4890 = vpack.c.b16 %v4859, %v4858
      %v4891 = vpack.c.b16 %v4861, %v4860
      %v4892 = vpack.c.b16 %v4863, %v4862
      %v4893 = vpack.c.b16 %v4865, %v4864
      %v4894 = vpack.c.b16 %v4867, %v4866
      %v4895 = vpack.c.b16 %v4869, %v4868
      %v4896 = vpack.c.b16 %v4871, %v4870
      %v4897 = vpack.c.b16 %v4873, %v4872
      %v4898 = vpack.c.b16 %v4875, %v4874
      %v4899 = vpack.c.b16 %v4877, %v4876
      %v4900 = vpack.c.b16 %v4879, %v4878
      %v4901 = vpack.c.b16 %v4881, %v4880
      %v4902 = vpack.c.b16 %v4883, %v4882
      %v4903 = vpack.c.b16 %v4885, %v4884
      %vm4904 = vcmask 31744
      %v4906 = vsel %vm4904, %v4886, 0
      %v4909 = vsel %vm4904, %v4887, 0
      %v4912 = vsel %vm4904, %v4888, 0
      %v4915 = vsel %vm4904, %v4889, 0
      %v4918 = vsel %vm4904, %v4890, 0
      %v4921 = vsel %vm4904, %v4891, 0
      %v4924 = vsel %vm4904, %v4892, 0
      %v4927 = vsel %vm4904, %v4893, 0
      %v4930 = vsel %vm4904, %v4894, 0
      %v4933 = vsel %vm4904, %v4895, 0
      %v4936 = vsel %vm4904, %v4896, 0
      %v4939 = vsel %vm4904, %v4897, 0
      %v4942 = vsel %vm4904, %v4898, 0
      %v4945 = vsel %vm4904, %v4899, 0
      %v4948 = vsel %vm4904, %v4900, 0
      %v4951 = vsel %vm4904, %v4901, 0
      %v4954 = vsel %vm4904, %v4902, 0
      %v4957 = vsel %vm4904, %v4903, 0
      %v4960 = vsel %vm730, %v4806, 0
      %4962 = vmatprep.subr.bf16.mxu0 0
      %4963 = vmatpush1.bf16.msra.mxu0 0
      %4964 = vmatprep.subr.bf16.mxu0 0
      %4965 = vmatpush1.bf16.msra.mxu0 0
      %4966 = vmatprep.subr.bf16.mxu0 0
      %4967 = vmatpush1.bf16.msra.mxu0 0
      %4968 = vmatprep.subr.bf16.mxu0 0
      %4969 = vmatpush1.bf16.msra.mxu0 0
      %4970 = vmatprep.subr.bf16.mxu0 0
      %4971 = vmatpush1.bf16.msra.mxu0 0
      %4972 = vmatprep.subr.bf16.mxu0 0
      %4973 = vmatpush1.bf16.msra.mxu0 0
      %4974 = vmatprep.subr.bf16.mxu0 0
      %4975 = vmatpush1.bf16.msra.mxu0 0
      %4976 = vmatprep.subr.bf16.mxu0 0
      %4977 = vmatpush1.bf16.msra.mxu0 %v4960
      %4978 = vmatprep.subr.bf16.mxu0 0
      %4979 = vmatpush2.bf16.msra.mxu0 0
      %4980 = vmatprep.subr.bf16.mxu0 0
      %4981 = vmatpush2.bf16.msra.mxu0 0
      %4982 = vmatprep.subr.bf16.mxu0 0
      %4983 = vmatpush2.bf16.msra.mxu0 0
      %4984 = vmatprep.subr.bf16.mxu0 0
      %4985 = vmatpush2.bf16.msra.mxu0 0
      %4986 = vmatprep.subr.bf16.mxu0 0
      %4987 = vmatpush2.bf16.msra.mxu0 0
      %4988 = vmatprep.subr.bf16.mxu0 0
      %4989 = vmatpush2.bf16.msra.mxu0 0
      %4990 = vmatprep.subr.bf16.mxu0 0
      %4991 = vmatpush2.bf16.msra.mxu0 0
      %4992 = vmatprep.subr.bf16.mxu0 0
      %4993 = vmatpush2.bf16.msra.mxu0 0
      %4994 = vmatprep.mubr.bf16.mxu0 0
      %4995 = vmatmul.mubr.bf16.gmra.mxu0 %v4906
      %v4996 = vpop.f32.mrf.mxu0
      %v4997 = vadd.f32 %v4812, %v4996
      %v4998 = vpop.f32.mrf.mxu0
      %v4999 = vpop.f32.mrf.mxu0
      %v5000 = vadd.f32 %v4812, %v4999
      %v5001 = vpop.f32.mrf.mxu0
      %5002 = vmatprep.mubr.bf16.mxu0 0
      %5003 = vmatmul.mubr.bf16.gmra.mxu0 %v4909
      %v5004 = vpop.f32.mrf.mxu0
      %v5005 = vadd.f32 %v4812, %v5004
      %v5006 = vpop.f32.mrf.mxu0
      %v5007 = vpop.f32.mrf.mxu0
      %v5008 = vadd.f32 %v4812, %v5007
      %v5009 = vpop.f32.mrf.mxu0
      %5010 = vmatprep.mubr.bf16.mxu0 0
      %5011 = vmatmul.mubr.bf16.gmra.mxu0 %v4912
      %v5012 = vpop.f32.mrf.mxu0
      %v5013 = vadd.f32 %v4812, %v5012
      %v5014 = vpop.f32.mrf.mxu0
      %v5015 = vpop.f32.mrf.mxu0
      %v5016 = vadd.f32 %v4812, %v5015
      %v5017 = vpop.f32.mrf.mxu0
      %5018 = vmatprep.mubr.bf16.mxu0 0
      %5019 = vmatmul.mubr.bf16.gmra.mxu0 %v4915
      %v5020 = vpop.f32.mrf.mxu0
      %v5021 = vadd.f32 %v4812, %v5020
      %v5022 = vpop.f32.mrf.mxu0
      %v5023 = vpop.f32.mrf.mxu0
      %v5024 = vadd.f32 %v4812, %v5023
      %v5025 = vpop.f32.mrf.mxu0
      %5026 = vmatprep.mubr.bf16.mxu0 0
      %5027 = vmatmul.mubr.bf16.gmra.mxu0 %v4918
      %v5028 = vpop.f32.mrf.mxu0
      %v5029 = vadd.f32 %v4812, %v5028
      %v5030 = vpop.f32.mrf.mxu0
      %v5031 = vpop.f32.mrf.mxu0
      %v5032 = vadd.f32 %v4812, %v5031
      %v5033 = vpop.f32.mrf.mxu0
      %5034 = vmatprep.mubr.bf16.mxu0 0
      %5035 = vmatmul.mubr.bf16.gmra.mxu0 %v4921
      %v5036 = vpop.f32.mrf.mxu0
      %v5037 = vadd.f32 %v4812, %v5036
      %v5038 = vpop.f32.mrf.mxu0
      %v5039 = vpop.f32.mrf.mxu0
      %v5040 = vadd.f32 %v4812, %v5039
      %v5041 = vpop.f32.mrf.mxu0
      %5042 = vmatprep.mubr.bf16.mxu0 0
      %5043 = vmatmul.mubr.bf16.gmra.mxu0 %v4924
      %v5044 = vpop.f32.mrf.mxu0
      %v5045 = vadd.f32 %v4812, %v5044
      %v5046 = vpop.f32.mrf.mxu0
      %v5047 = vpop.f32.mrf.mxu0
      %v5048 = vadd.f32 %v4812, %v5047
      %v5049 = vpop.f32.mrf.mxu0
      %5050 = vmatprep.mubr.bf16.mxu0 0
      %5051 = vmatmul.mubr.bf16.gmra.mxu0 %v4927
      %v5052 = vpop.f32.mrf.mxu0
      %v5053 = vadd.f32 %v4812, %v5052
      %v5054 = vpop.f32.mrf.mxu0
      %v5055 = vpop.f32.mrf.mxu0
      %v5056 = vadd.f32 %v4812, %v5055
      %v5057 = vpop.f32.mrf.mxu0
      %5058 = vmatprep.mubr.bf16.mxu0 0
      %5059 = vmatmul.mubr.bf16.gmra.mxu0 %v4930
      %v5060 = vpop.f32.mrf.mxu0
      %v5061 = vadd.f32 %v4812, %v5060
      %v5062 = vpop.f32.mrf.mxu0
      %v5063 = vpop.f32.mrf.mxu0
      %v5064 = vadd.f32 %v4812, %v5063
      %v5065 = vpop.f32.mrf.mxu0
      %5066 = vmatprep.mubr.bf16.mxu0 0
      %5067 = vmatmul.mubr.bf16.gmra.mxu0 %v4933
      %v5068 = vpop.f32.mrf.mxu0
      %v5069 = vadd.f32 %v4812, %v5068
      %v5070 = vpop.f32.mrf.mxu0
      %v5071 = vpop.f32.mrf.mxu0
      %v5072 = vadd.f32 %v4812, %v5071
      %v5073 = vpop.f32.mrf.mxu0
      %5074 = vmatprep.mubr.bf16.mxu0 0
      %5075 = vmatmul.mubr.bf16.gmra.mxu0 %v4936
      %v5076 = vpop.f32.mrf.mxu0
      %v5077 = vadd.f32 %v4812, %v5076
      %v5078 = vpop.f32.mrf.mxu0
      %v5079 = vpop.f32.mrf.mxu0
      %v5080 = vadd.f32 %v4812, %v5079
      %v5081 = vpop.f32.mrf.mxu0
      %5082 = vmatprep.mubr.bf16.mxu0 0
      %5083 = vmatmul.mubr.bf16.gmra.mxu0 %v4939
      %v5084 = vpop.f32.mrf.mxu0
      %v5085 = vadd.f32 %v4812, %v5084
      %v5086 = vpop.f32.mrf.mxu0
      %v5087 = vpop.f32.mrf.mxu0
      %v5088 = vadd.f32 %v4812, %v5087
      %v5089 = vpop.f32.mrf.mxu0
      %5090 = vmatprep.mubr.bf16.mxu0 0
      %5091 = vmatmul.mubr.bf16.gmra.mxu0 %v4942
      %v5092 = vpop.f32.mrf.mxu0
      %v5093 = vadd.f32 %v4812, %v5092
      %v5094 = vpop.f32.mrf.mxu0
      %v5095 = vpop.f32.mrf.mxu0
      %v5096 = vadd.f32 %v4812, %v5095
      %v5097 = vpop.f32.mrf.mxu0
      %5098 = vmatprep.mubr.bf16.mxu0 0
      %5099 = vmatmul.mubr.bf16.gmra.mxu0 %v4945
      %v5100 = vpop.f32.mrf.mxu0
      %v5101 = vadd.f32 %v4812, %v5100
      %v5102 = vpop.f32.mrf.mxu0
      %v5103 = vpop.f32.mrf.mxu0
      %v5104 = vadd.f32 %v4812, %v5103
      %v5105 = vpop.f32.mrf.mxu0
      %5106 = vmatprep.mubr.bf16.mxu0 0
      %5107 = vmatmul.mubr.bf16.gmra.mxu0 %v4948
      %v5108 = vpop.f32.mrf.mxu0
      %v5109 = vadd.f32 %v4812, %v5108
      %v5110 = vpop.f32.mrf.mxu0
      %v5111 = vpop.f32.mrf.mxu0
      %v5112 = vadd.f32 %v4812, %v5111
      %v5113 = vpop.f32.mrf.mxu0
      %5114 = vmatprep.mubr.bf16.mxu0 0
      %5115 = vmatmul.mubr.bf16.gmra.mxu0 %v4951
      %v5116 = vpop.f32.mrf.mxu0
      %v5117 = vadd.f32 %v4812, %v5116
      %v5118 = vpop.f32.mrf.mxu0
      %v5119 = vpop.f32.mrf.mxu0
      %v5120 = vadd.f32 %v4812, %v5119
      %v5121 = vpop.f32.mrf.mxu0
      %5122 = vmatprep.mubr.bf16.mxu0 0
      %5123 = vmatmul.mubr.bf16.gmra.mxu0 %v4954
      %v5124 = vpop.f32.mrf.mxu0
      %v5125 = vadd.f32 %v4812, %v5124
      %v5126 = vpop.f32.mrf.mxu0
      %v5127 = vpop.f32.mrf.mxu0
      %v5128 = vadd.f32 %v4812, %v5127
      %v5129 = vpop.f32.mrf.mxu0
      %5130 = vmatprep.mubr.bf16.mxu0 0
      %5131 = vmatmul.mubr.bf16.gmra.mxu0 %v4957
      %v5132 = vpop.f32.mrf.mxu0
      %v5133 = vadd.f32 %v4812, %v5132
      %v5134 = vpop.f32.mrf.mxu0
      %v5135 = vpop.f32.mrf.mxu0
      %v5136 = vadd.f32 %v4812, %v5135
      %v5137 = vpop.f32.mrf.mxu0
      %5138 = vdwg.mxu0
      %v5139 = vadd.f32 %v4997, %v4734
      %v5140 = vadd.f32 %v5000, %v4735
      %v5141 = vadd.f32 %v5005, %v4736
      %v5142 = vadd.f32 %v5008, %v4737
      %v5143 = vadd.f32 %v5013, %v4738
      %v5144 = vadd.f32 %v5016, %v4739
      %v5145 = vadd.f32 %v5021, %v4740
      %v5146 = vadd.f32 %v5024, %v4741
      %v5147 = vadd.f32 %v5029, %v4742
      %v5148 = vadd.f32 %v5032, %v4743
      %v5149 = vadd.f32 %v5037, %v4744
      %v5150 = vadd.f32 %v5040, %v4745
      %v5151 = vadd.f32 %v5045, %v4746
      %v5152 = vadd.f32 %v5048, %v4747
      %v5153 = vadd.f32 %v5053, %v4748
      %v5154 = vadd.f32 %v5056, %v4749
      %v5155 = vadd.f32 %v5061, %v4750
      %v5156 = vadd.f32 %v5064, %v4751
      %v5157 = vadd.f32 %v5069, %v4752
      %v5158 = vadd.f32 %v5072, %v4753
      %v5159 = vadd.f32 %v5077, %v4754
      %v5160 = vadd.f32 %v5080, %v4755
      %v5161 = vadd.f32 %v5085, %v4756
      %v5162 = vadd.f32 %v5088, %v4757
      %v5163 = vadd.f32 %v5093, %v4758
      %v5164 = vadd.f32 %v5096, %v4759
      %v5165 = vadd.f32 %v5101, %v4760
      %v5166 = vadd.f32 %v5104, %v4761
      %v5167 = vadd.f32 %v5109, %v4762
      %v5168 = vadd.f32 %v5112, %v4763
      %v5169 = vadd.f32 %v5117, %v4764
      %v5170 = vadd.f32 %v5120, %v4765
      %v5171 = vadd.f32 %v5125, %v4766
      %v5172 = vadd.f32 %v5128, %v4767
      %v5173 = vadd.f32 %v5133, %v4768
      %v5174 = vadd.f32 %v5136, %v4769
      %5175 = vst.msk [vmem:[%s483] sm:$0xff] %vm1133, %v5139
      %5176 = vst.msk [vmem:[%s483 + $0x8] sm:$0xff] %vm1133, %v5140
      %5177 = vst.msk [vmem:[%s483 + $0x10] sm:$0xff] %vm1133, %v5141
      %5178 = vst.msk [vmem:[%s483 + $0x18] sm:$0xff] %vm1133, %v5142
      %5179 = vst.msk [vmem:[%s483 + $0x20] sm:$0xff] %vm1133, %v5143
      %5180 = vst.msk [vmem:[%s483 + $0x28] sm:$0xff] %vm1133, %v5144
      %5181 = vst.msk [vmem:[%s483 + $0x30] sm:$0xff] %vm1133, %v5145
      %5182 = vst.msk [vmem:[%s483 + $0x38] sm:$0xff] %vm1133, %v5146
      %5183 = vst.msk [vmem:[%s483 + $0x40] sm:$0xff] %vm1133, %v5147
      %5184 = vst.msk [vmem:[%s483 + $0x48] sm:$0xff] %vm1133, %v5148
      %5185 = vst.msk [vmem:[%s483 + $0x50] sm:$0xff] %vm1133, %v5149
      %5186 = vst.msk [vmem:[%s483 + $0x58] sm:$0xff] %vm1133, %v5150
      %5187 = vst.msk [vmem:[%s483 + $0x60] sm:$0xff] %vm1133, %v5151
      %5188 = vst.msk [vmem:[%s483 + $0x68] sm:$0xff] %vm1133, %v5152
      %5189 = vst.msk [vmem:[%s483 + $0x70] sm:$0xff] %vm1133, %v5153
      %5190 = vst.msk [vmem:[%s483 + $0x78] sm:$0xff] %vm1133, %v5154
      %5191 = vst.msk [vmem:[%s483 + $0x80] sm:$0xff] %vm1133, %v5155
      %5192 = vst.msk [vmem:[%s483 + $0x88] sm:$0xff] %vm1133, %v5156
      %5193 = vst.msk [vmem:[%s483 + $0x90] sm:$0xff] %vm1133, %v5157
      %5194 = vst.msk [vmem:[%s483 + $0x98] sm:$0xff] %vm1133, %v5158
      %5195 = vst.msk [vmem:[%s483 + $0xa0] sm:$0xff] %vm1133, %v5159
      %5196 = vst.msk [vmem:[%s483 + $0xa8] sm:$0xff] %vm1133, %v5160
      %5197 = vst.msk [vmem:[%s483 + $0xb0] sm:$0xff] %vm1133, %v5161
      %5198 = vst.msk [vmem:[%s483 + $0xb8] sm:$0xff] %vm1133, %v5162
      %5199 = vst.msk [vmem:[%s483 + $0xc0] sm:$0xff] %vm1133, %v5163
      %5200 = vst.msk [vmem:[%s483 + $0xc8] sm:$0xff] %vm1133, %v5164
      %5201 = vst.msk [vmem:[%s483 + $0xd0] sm:$0xff] %vm1133, %v5165
      %5202 = vst.msk [vmem:[%s483 + $0xd8] sm:$0xff] %vm1133, %v5166
      %5203 = vst.msk [vmem:[%s483 + $0xe0] sm:$0xff] %vm1133, %v5167
      %5204 = vst.msk [vmem:[%s483 + $0xe8] sm:$0xff] %vm1133, %v5168
      %5205 = vst.msk [vmem:[%s483 + $0xf0] sm:$0xff] %vm1133, %v5169
      %5206 = vst.msk [vmem:[%s483 + $0xf8] sm:$0xff] %vm1133, %v5170
      %5207 = vst.msk [vmem:[%s483 + $0x100] sm:$0xff] %vm1133, %v5171
      %5208 = vst.msk [vmem:[%s483 + $0x108] sm:$0xff] %vm1133, %v5172
      %5209 = vst.msk [vmem:[%s483 + $0x110] sm:$0xff] %vm1133, %v5173
      %5210 = vst.msk [vmem:[%s483 + $0x118] sm:$0xff] %vm1133, %v5174
      %s5211 = smul.u32 36, %s25
      %p5212 = scmp.lt.s32.totalorder %s5211, 71
      %s5213 = scalar_select %p5212, %s5211, 71
      %s5214 = smul.addr %s5213, 8
      %s5215 = scalar_lea.vmem %s14, %s5214
      // Predicated region
      $region77: #{resblock_forward.1} parent=75 // pred_check
        %p5216 = pneg %p347
      $region78: #{resblock_forward.1} parent=75 // pred_check_branch
        %5218 = sbr.rel (%p5216) target = $region80
      $region79: #{resblock_forward.1} parent=75 // pred_region
        %s5219 = smul.u32 36, %s25
      $region80: #{resblock_forward.1} parent=75 // pred_fallthru
        _
    $region76: #{resblock_forward.1} parent=5 // pred_fallthru
      _
    %p5220 = scmp.le.s32.totalorder 2, %s20
    // Predicated region
    $region81: #{resblock_forward.1} parent=5 // pred_check
      %p5221 = pneg %p5220
    $region82: #{resblock_forward.1} parent=5 // pred_check_branch
      %5223 = sbr.rel (%p5221) target = $region84
    $region83: #{resblock_forward.1} parent=5 // pred_region
      %s5224 = ssub.s32 %s20, 2
      // Predicated region
      $region85: #{resblock_forward.1} parent=83 // pred_check
        %p5225 = pneg %p353
      $region86: #{resblock_forward.1} parent=83 // pred_check_branch
        %5227 = sbr.rel (%p5225) target = $region88
      $region87: #{resblock_forward.1} parent=83 // pred_region
        %s5228 = smul.u32 36, %s26
        %p5229 = scmp.lt.s32.totalorder %s5228, 71
        %s5230 = scalar_select %p5229, %s5228, 71
        %s5231 = smul.addr %s5230, 8
        %s5232 = scalar_lea.vmem %s14, %s5231
      $region88: #{resblock_forward.1} parent=83 // pred_fallthru
        _
    $region84: #{resblock_forward.1} parent=5 // pred_fallthru
      _
  $region6: #{resblock_forward.1} parent=0 // loop_footer
    %s24 = sadd.s32 1, %s20
  $region7: #{resblock_forward.1} parent=0 // loop_footer_branch
    %19 = sbr.rel target = $region3
  $region8: #{resblock_forward.1} parent=0 // loop_exit
    _

</llo_original>
